<compile_context>
chip_gen: v7x
topology: tpu7x:2x2x1
jax: 0.10.0
libtpu: 0.0.40
codegen_flags: <defaults>
</compile_context>

<pallas_src>
import math
from functools import partial

import jax
import jax.numpy as jnp
from jax.experimental import pallas as pl
from jax.experimental.pallas import tpu as pltpu

# ----- scaled-down mT5-small-style config -----
VOCAB = 100
D_MODEL = 64
N_HEADS = 4
D_KV = 16
D_FF = 128
N_LAYERS = 2
NUM_BUCKETS = 32
MAX_DISTANCE = 128
EPS = 1e-6

_GELU_C = 0.7978845608028654  # sqrt(2/pi)


# ---------------- Pallas kernel ----------------

def _rmsnorm(x, w):
    # T5LayerNorm: no mean subtraction, no bias (f32 math).
    var = jnp.mean(x * x, axis=-1, keepdims=True)
    return x * jax.lax.rsqrt(var + EPS) * w


def _encoder_stack_kernel(hid_ref, pos_bias_ref, mask_ref,
                          ln1_ref, wqkv_ref, wo_ref,
                          ln2_ref, wi_ref, wo_ff_ref,
                          final_ln_ref, out_ref):
    """One program per batch element: ALL encoder layers + final norm, VMEM-resident."""
    inner = N_HEADS * D_KV

    x = hid_ref[...]                                     # (S, D) f32 residual
    mask = mask_ref[0]                                   # (1, S) additive mask
    pos_bias = pos_bias_ref[...]                         # (H, S, S) shared bias

    for l in range(N_LAYERS):                            # static loop over layers
        ln1 = ln1_ref[l]                                 # (1, D)
        wqkv = wqkv_ref[l]                               # (D, 3*inner) bf16
        wo = wo_ref[l]                                   # (inner, D)   bf16
        ln2 = ln2_ref[l]                                 # (1, D)
        wi = wi_ref[l]                                   # (D, 2*F)     bf16
        wo_ff = wo_ff_ref[l]                             # (F, D)       bf16

        # ----- self-attention block -----
        n1 = _rmsnorm(x, ln1)

        # Fused, lane-dense QKV projection: (S, D) x (D, 3*H*Dk) in bf16, f32 acc.
        qkv = jnp.dot(n1.astype(jnp.bfloat16), wqkv,
                      preferred_element_type=jnp.float32)            # (S, 3*inner)

        attn_out = jnp.zeros_like(x)                                  # (S, D)
        for h in range(N_HEADS):                                      # static loop
            q_h = qkv[:, h * D_KV:(h + 1) * D_KV]
            k_h = qkv[:, inner + h * D_KV: inner + (h + 1) * D_KV]
            v_h = qkv[:, 2 * inner + h * D_KV: 2 * inner + (h + 1) * D_KV]

            # T5 does NOT scale scores by 1/sqrt(d_kv).
            scores = jnp.einsum('qd,kd->qk',
                                q_h.astype(jnp.bfloat16),
                                k_h.astype(jnp.bfloat16),
                                preferred_element_type=jnp.float32)   # (S, S)
            scores = scores + pos_bias[h] + mask

            m = jnp.max(scores, axis=-1, keepdims=True)
            p = jnp.exp(scores - m)
            denom = jnp.sum(p, axis=-1, keepdims=True)
            p = p * pl.reciprocal(denom, approx=True)

            ctx_h = jnp.dot(p.astype(jnp.bfloat16), v_h.astype(jnp.bfloat16),
                            preferred_element_type=jnp.float32)       # (S, Dk)
            # Accumulate the output projection head-by-head:
            #   sum_h ctx_h @ wo[h*Dk:(h+1)*Dk, :]  ==  concat(ctx) @ wo
            attn_out = attn_out + jnp.dot(
                ctx_h.astype(jnp.bfloat16), wo[h * D_KV:(h + 1) * D_KV, :],
                preferred_element_type=jnp.float32)                   # (S, D)

        h1 = x + attn_out                                # residual (f32)

        # ----- gated-GELU feed-forward block -----
        n2 = _rmsnorm(h1, ln2)

        # Fused wi0|wi1 projection: (S, D) x (D, 2*F) in bf16, f32 acc.
        hh = jnp.dot(n2.astype(jnp.bfloat16), wi,
                     preferred_element_type=jnp.float32)              # (S, 2*F)
        h0 = hh[:, :D_FF]
        hg = hh[:, D_FF:]
        # gelu_new (tanh approximation), as used by HF T5/mT5
        g = 0.5 * h0 * (1.0 + jnp.tanh(_GELU_C * (h0 + 0.044715 * h0 * h0 * h0)))
        act = (g * hg).astype(jnp.bfloat16)
        ff = jnp.dot(act, wo_ff, preferred_element_type=jnp.float32)

        x = h1 + ff                                      # next-layer residual

    # ----- final RMSNorm, fused into the same kernel -----
    out_ref[...] = _rmsnorm(x, final_ln_ref[...])


def encoder_stack(hidden, pos_bias, mask_bias,
                  ln1_all, wqkv_all, wo_all, ln2_all, wi_all, wo_ff_all,
                  final_ln, *, B, S):
    D = D_MODEL
    inner = N_HEADS * D_KV
    L = N_LAYERS
    return pl.pallas_call(
        _encoder_stack_kernel,
        out_shape=jax.ShapeDtypeStruct((B * S, D), jnp.float32),
        grid=(B,),
        in_specs=[
            pl.BlockSpec((S, D), lambda b: (b, 0)),                  # hidden (per batch)
            pl.BlockSpec((N_HEADS, S, S), lambda b: (0, 0, 0)),      # pos_bias (shared)
            pl.BlockSpec((1, 1, S), lambda b: (b, 0, 0)),            # mask (per batch)
            pl.BlockSpec((L, 1, D), lambda b: (0, 0, 0)),            # ln1 (all layers)
            pl.BlockSpec((L, D, 3 * inner), lambda b: (0, 0, 0)),    # wqkv bf16
            pl.BlockSpec((L, inner, D), lambda b: (0, 0, 0)),        # wo   bf16
            pl.BlockSpec((L, 1, D), lambda b: (0, 0, 0)),            # ln2
            pl.BlockSpec((L, D, 2 * D_FF), lambda b: (0, 0, 0)),     # wi0|wi1 bf16
            pl.BlockSpec((L, D_FF, D), lambda b: (0, 0, 0)),         # wo_ff bf16
            pl.BlockSpec((1, D), lambda b: (0, 0)),                  # final_ln
        ],
        out_specs=pl.BlockSpec((S, D), lambda b: (b, 0)),
        compiler_params=pltpu.CompilerParams(
            dimension_semantics=("parallel",)),
    )(hidden, pos_bias, mask_bias,
      ln1_all, wqkv_all, wo_all, ln2_all, wi_all, wo_ff_all, final_ln)


# ---------------- plain-JAX glue ----------------

def _relative_position_bucket(relative_position, num_buckets, max_distance):
    # Bidirectional bucketing (encoder), matches HF T5Attention._relative_position_bucket
    relative_buckets = jnp.zeros_like(relative_position)
    num_buckets //= 2
    relative_buckets += (relative_position > 0).astype(jnp.int32) * num_buckets
    relative_position = jnp.abs(relative_position)
    max_exact = num_buckets // 2
    is_small = relative_position < max_exact
    rel_pos_f = jnp.maximum(relative_position, 1).astype(jnp.float32)
    relative_position_if_large = max_exact + (
        jnp.log(rel_pos_f / max_exact)
        / math.log(max_distance / max_exact)
        * (num_buckets - max_exact)
    ).astype(jnp.int32)
    relative_position_if_large = jnp.minimum(relative_position_if_large,
                                             num_buckets - 1)
    relative_buckets += jnp.where(is_small, relative_position,
                                  relative_position_if_large)
    return relative_buckets


def compute_position_bias(rel_bias_emb, seq_len):
    # rel_bias_emb: (NUM_BUCKETS, N_HEADS)  -> (H, S, S)
    ctx = jnp.arange(seq_len, dtype=jnp.int32)[:, None]
    mem = jnp.arange(seq_len, dtype=jnp.int32)[None, :]
    rel_pos = mem - ctx
    buckets = _relative_position_bucket(rel_pos, NUM_BUCKETS, MAX_DISTANCE)
    bias = rel_bias_emb[buckets]                 # (S, S, H)
    return jnp.transpose(bias, (2, 0, 1)).astype(jnp.float32)


@partial(jax.jit, static_argnames=("with_mask",))
def _mt5_encoder_jit(params, input_ids, attention_mask, with_mask):
    B, S = input_ids.shape

    # embedding lookup (glue)
    hidden = params["embed"][input_ids].astype(jnp.float32).reshape(B * S, D_MODEL)

    # relative position bias computed once (layer 0's table), shared by all layers
    pos_bias = compute_position_bias(params["rel_bias"], S)        # (H, S, S)

    if with_mask:
        # finite large-negative (avoids -inf underflow when added to position bias)
        mask_bias = ((1.0 - attention_mask.astype(jnp.float32)) * -1e9
                     ).reshape(B, 1, S)
    else:
        mask_bias = jnp.zeros((B, 1, S), dtype=jnp.float32)

    # Stack per-layer weights along a leading L axis (trace-time; fused QKV / FF).
    layers = params["layers"]
    ln1_all = jnp.stack([lp["ln1"].reshape(1, D_MODEL) for lp in layers])
    wqkv_all = jnp.stack(
        [jnp.concatenate([lp["wq"], lp["wk"], lp["wv"]], axis=1) for lp in layers]
    ).astype(jnp.bfloat16)                                         # (L, D, 3*H*Dk)
    wo_all = jnp.stack([lp["wo"] for lp in layers]).astype(jnp.bfloat16)
    ln2_all = jnp.stack([lp["ln2"].reshape(1, D_MODEL) for lp in layers])
    wi_all = jnp.stack(
        [jnp.concatenate([lp["wi0"], lp["wi1"]], axis=1) for lp in layers]
    ).astype(jnp.bfloat16)                                         # (L, D, 2*F)
    wo_ff_all = jnp.stack([lp["wo_ff"] for lp in layers]).astype(jnp.bfloat16)

    hidden = encoder_stack(
        hidden, pos_bias, mask_bias,
        ln1_all, wqkv_all, wo_all, ln2_all, wi_all, wo_ff_all,
        params["final_ln"].reshape(1, D_MODEL),
        B=B, S=S)

    return hidden.reshape(B, S, D_MODEL)         # last_hidden_state


def mt5_encoder_forward(params, input_ids, attention_mask=None):
    if attention_mask is None:
        B, S = input_ids.shape
        attention_mask = jnp.ones((B, S), dtype=jnp.int32)
        return _mt5_encoder_jit(params, input_ids, attention_mask, False)
    return _mt5_encoder_jit(params, input_ids, attention_mask, True)


def init_params(key):
    def normal(k, shape, scale=0.05):
        return scale * jax.random.normal(k, shape, dtype=jnp.float32)

    keys = jax.random.split(key, 2 + 7 * N_LAYERS)
    ki = iter(keys)
    params = {
        "embed": normal(next(ki), (VOCAB, D_MODEL)),
        "rel_bias": normal(next(ki), (NUM_BUCKETS, N_HEADS)),
        "final_ln": jnp.ones((D_MODEL,), jnp.float32),
        "layers": [],
    }
    inner = N_HEADS * D_KV
    for _ in range(N_LAYERS):
        lp = {
            "ln1": jnp.ones((D_MODEL,), jnp.float32),
            "wq": normal(next(ki), (D_MODEL, inner)),
            "wk": normal(next(ki), (D_MODEL, inner)),
            "wv": normal(next(ki), (D_MODEL, inner)),
            "wo": normal(next(ki), (inner, D_MODEL)),
            "ln2": jnp.ones((D_MODEL,), jnp.float32),
            "wi0": normal(next(ki), (D_MODEL, D_FF)),
            "wi1": normal(next(ki), (D_MODEL, D_FF)),
            "wo_ff": normal(next(ki), (D_FF, D_MODEL)),
        }
        params["layers"].append(lp)
    return params


if __name__ == "__main__":
    key = jax.random.PRNGKey(0)
    pkey, ikey = jax.random.split(key)
    params = init_params(pkey)

    B, S = 2, 8
    input_ids = jax.random.randint(ikey, (B, S), 0, VOCAB, dtype=jnp.int32)
    # mask out the last two tokens of the second sequence
    attention_mask = jnp.ones((B, S), dtype=jnp.int32)
    attention_mask = attention_mask.at[1, -2:].set(0)

    out = mt5_encoder_forward(params, input_ids, attention_mask)
    out = jax.block_until_ready(out)

    assert out.shape == (B, S, D_MODEL)
    assert jnp.all(jnp.isfinite(out))
    print("KERNEL_OK")
</pallas_src>

<mosaic_0001>
module attributes {stable_mosaic.version = 11 : i64} {
  func.func @_encoder_stack_kernel(%arg0: i32, %arg1: memref<8x64xf32, #tpu.memory_space<vmem>>, %arg2: memref<4x8x8xf32, #tpu.memory_space<vmem>>, %arg3: memref<1x1x8xf32, #tpu.memory_space<vmem>>, %arg4: memref<2x1x64xf32, #tpu.memory_space<vmem>>, %arg5: memref<2x64x192xbf16, #tpu.memory_space<vmem>>, %arg6: memref<2x64x64xbf16, #tpu.memory_space<vmem>>, %arg7: memref<2x1x64xf32, #tpu.memory_space<vmem>>, %arg8: memref<2x64x256xbf16, #tpu.memory_space<vmem>>, %arg9: memref<2x128x64xbf16, #tpu.memory_space<vmem>>, %arg10: memref<1x64xf32, #tpu.memory_space<vmem>>, %arg11: memref<8x64xf32, #tpu.memory_space<vmem>>) attributes {dimension_semantics = [#tpu.dimension_semantics<parallel>], iteration_bounds = array<i64: 2>, scalar_prefetch = 0 : i64, scratch_operands = 0 : i64, tpu.core_type = #tpu.core_type<tc>, window_params = [{transform_indices = @transform_0, window_bounds = array<i64: 8, 64>}, {pipeline_mode = #tpu.pipeline_mode<synchronous>, transform_indices = @transform_1, window_bounds = array<i64: 4, 8, 8>}, {transform_indices = @transform_2, window_bounds = array<i64: 1, 1, 8>}, {pipeline_mode = #tpu.pipeline_mode<synchronous>, transform_indices = @transform_3, window_bounds = array<i64: 2, 1, 64>}, {pipeline_mode = #tpu.pipeline_mode<synchronous>, transform_indices = @transform_4, window_bounds = array<i64: 2, 64, 192>}, {pipeline_mode = #tpu.pipeline_mode<synchronous>, transform_indices = @transform_5, window_bounds = array<i64: 2, 64, 64>}, {pipeline_mode = #tpu.pipeline_mode<synchronous>, transform_indices = @transform_6, window_bounds = array<i64: 2, 1, 64>}, {pipeline_mode = #tpu.pipeline_mode<synchronous>, transform_indices = @transform_7, window_bounds = array<i64: 2, 64, 256>}, {pipeline_mode = #tpu.pipeline_mode<synchronous>, transform_indices = @transform_8, window_bounds = array<i64: 2, 128, 64>}, {pipeline_mode = #tpu.pipeline_mode<synchronous>, transform_indices = @transform_9, window_bounds = array<i64: 1, 64>}, {transform_indices = @transform_10, window_bounds = array<i64: 8, 64>}]} {
    %c0 = arith.constant 0 : index
    %c0_0 = arith.constant 0 : index
    %0 = vector.load %arg1[%c0, %c0_0] : memref<8x64xf32, #tpu.memory_space<vmem>>, vector<8x64xf32>
    %c0_1 = arith.constant 0 : index
    %c0_2 = arith.constant 0 : index
    %c0_3 = arith.constant 0 : index
    %1 = vector.load %arg3[%c0_1, %c0_2, %c0_3] : memref<1x1x8xf32, #tpu.memory_space<vmem>>, vector<1x1x8xf32>
    %2 = vector.shape_cast %1 : vector<1x1x8xf32> to vector<1x8xf32>
    %c0_4 = arith.constant 0 : index
    %c0_5 = arith.constant 0 : index
    %c0_6 = arith.constant 0 : index
    %3 = vector.load %arg2[%c0_4, %c0_5, %c0_6] : memref<4x8x8xf32, #tpu.memory_space<vmem>>, vector<4x8x8xf32>
    %c0_7 = arith.constant 0 : index
    %c0_8 = arith.constant 0 : index
    %c0_9 = arith.constant 0 : index
    %4 = vector.load %arg4[%c0_7, %c0_8, %c0_9] : memref<2x1x64xf32, #tpu.memory_space<vmem>>, vector<1x1x64xf32>
    %5 = vector.shape_cast %4 : vector<1x1x64xf32> to vector<1x64xf32>
    %c0_10 = arith.constant 0 : index
    %c0_11 = arith.constant 0 : index
    %c0_12 = arith.constant 0 : index
    %6 = vector.load %arg5[%c0_10, %c0_11, %c0_12] : memref<2x64x192xbf16, #tpu.memory_space<vmem>>, vector<1x64x192xbf16>
    %7 = vector.shape_cast %6 : vector<1x64x192xbf16> to vector<64x192xbf16>
    %c0_13 = arith.constant 0 : index
    %c0_14 = arith.constant 0 : index
    %c0_15 = arith.constant 0 : index
    %8 = vector.load %arg6[%c0_13, %c0_14, %c0_15] : memref<2x64x64xbf16, #tpu.memory_space<vmem>>, vector<1x64x64xbf16>
    %9 = vector.shape_cast %8 : vector<1x64x64xbf16> to vector<64x64xbf16>
    %c0_16 = arith.constant 0 : index
    %c0_17 = arith.constant 0 : index
    %c0_18 = arith.constant 0 : index
    %10 = vector.load %arg7[%c0_16, %c0_17, %c0_18] : memref<2x1x64xf32, #tpu.memory_space<vmem>>, vector<1x1x64xf32>
    %11 = vector.shape_cast %10 : vector<1x1x64xf32> to vector<1x64xf32>
    %c0_19 = arith.constant 0 : index
    %c0_20 = arith.constant 0 : index
    %c0_21 = arith.constant 0 : index
    %12 = vector.load %arg8[%c0_19, %c0_20, %c0_21] : memref<2x64x256xbf16, #tpu.memory_space<vmem>>, vector<1x64x256xbf16>
    %13 = vector.shape_cast %12 : vector<1x64x256xbf16> to vector<64x256xbf16>
    %c0_22 = arith.constant 0 : index
    %c0_23 = arith.constant 0 : index
    %c0_24 = arith.constant 0 : index
    %14 = vector.load %arg9[%c0_22, %c0_23, %c0_24] : memref<2x128x64xbf16, #tpu.memory_space<vmem>>, vector<1x128x64xbf16>
    %15 = vector.shape_cast %14 : vector<1x128x64xbf16> to vector<128x64xbf16>
    %16 = arith.mulf %0, %0 : vector<8x64xf32>
    %cst = arith.constant dense<0.000000e+00> : vector<8xf32>
    %17 = vector.multi_reduction <add>, %16, %cst [1] : vector<8x64xf32> to vector<8xf32>
    %18 = vector.shape_cast %17 : vector<8xf32> to vector<8x1xf32>
    %cst_25 = arith.constant 6.400000e+01 : f32
    %19 = vector.broadcast %cst_25 : f32 to vector<8x1xf32>
    %20 = arith.divf %18, %19 : vector<8x1xf32>
    %cst_26 = arith.constant 9.99999997E-7 : f32
    %21 = vector.broadcast %cst_26 : f32 to vector<8x1xf32>
    %22 = arith.addf %20, %21 : vector<8x1xf32>
    %23 = math.rsqrt %22 : vector<8x1xf32>
    %24 = vector.broadcast %23 : vector<8x1xf32> to vector<8x64xf32>
    %25 = arith.mulf %0, %24 : vector<8x64xf32>
    %26 = vector.broadcast %5 : vector<1x64xf32> to vector<8x64xf32>
    %27 = arith.mulf %25, %26 : vector<8x64xf32>
    %28 = arith.truncf %27 : vector<8x64xf32> to vector<8x64xbf16>
    %cst_27 = arith.constant dense<0.000000e+00> : vector<8x192xf32>
    %29 = tpu.matmul %28, %7, %cst_27 {dimension_numbers = #tpu.dot_dimension_numbers<[1], [0], [0], [1], [0, 0, 1, 1], [], []>} : vector<8x64xbf16>, vector<64x192xbf16>, vector<8x192xf32> -> vector<8x192xf32>
    %cst_28 = arith.constant 0.000000e+00 : f32
    %30 = vector.broadcast %cst_28 : f32 to vector<8x64xf32>
    %31 = vector.extract_strided_slice %29 {offsets = [0, 0], sizes = [8, 16], strides = [1, 1]} : vector<8x192xf32> to vector<8x16xf32>
    %32 = vector.extract_strided_slice %29 {offsets = [0, 64], sizes = [8, 16], strides = [1, 1]} : vector<8x192xf32> to vector<8x16xf32>
    %33 = vector.extract_strided_slice %29 {offsets = [0, 128], sizes = [8, 16], strides = [1, 1]} : vector<8x192xf32> to vector<8x16xf32>
    %34 = arith.truncf %31 : vector<8x16xf32> to vector<8x16xbf16>
    %35 = arith.truncf %32 : vector<8x16xf32> to vector<8x16xbf16>
    "tpu.trace_start"() <{level = 10 : i32, message = "qd,kd->qk"}> : () -> ()
    %cst_29 = arith.constant dense<0.000000e+00> : vector<8x8xf32>
    %36 = tpu.matmul %34, %35, %cst_29 {dimension_numbers = #tpu.dot_dimension_numbers<[1], [1], [0], [0], [0, 0, 1, 0], [], []>} : vector<8x16xbf16>, vector<8x16xbf16>, vector<8x8xf32> -> vector<8x8xf32>
    "tpu.trace_stop"() : () -> ()
    %37 = vector.extract_strided_slice %3 {offsets = [0, 0, 0], sizes = [1, 8, 8], strides = [1, 1, 1]} : vector<4x8x8xf32> to vector<1x8x8xf32>
    %38 = vector.shape_cast %37 : vector<1x8x8xf32> to vector<8x8xf32>
    %39 = arith.addf %36, %38 : vector<8x8xf32>
    %40 = vector.broadcast %2 : vector<1x8xf32> to vector<8x8xf32>
    %41 = arith.addf %39, %40 : vector<8x8xf32>
    %cst_30 = arith.constant dense<0xFF800000> : vector<8xf32>
    %42 = vector.multi_reduction <maximumf>, %41, %cst_30 [1] : vector<8x8xf32> to vector<8xf32>
    %43 = vector.shape_cast %42 : vector<8xf32> to vector<8x1xf32>
    %44 = vector.broadcast %43 : vector<8x1xf32> to vector<8x8xf32>
    %45 = arith.subf %41, %44 : vector<8x8xf32>
    %46 = math.exp %45 : vector<8x8xf32>
    %cst_31 = arith.constant dense<0.000000e+00> : vector<8xf32>
    %47 = vector.multi_reduction <add>, %46, %cst_31 [1] : vector<8x8xf32> to vector<8xf32>
    %48 = vector.shape_cast %47 : vector<8xf32> to vector<8x1xf32>
    %49 = tpu.reciprocal %48 {approx = true} : vector<8x1xf32> -> vector<8x1xf32>
    %50 = vector.broadcast %49 : vector<8x1xf32> to vector<8x8xf32>
    %51 = arith.mulf %46, %50 : vector<8x8xf32>
    %52 = arith.truncf %51 : vector<8x8xf32> to vector<8x8xbf16>
    %53 = arith.truncf %33 : vector<8x16xf32> to vector<8x16xbf16>
    %cst_32 = arith.constant dense<0.000000e+00> : vector<8x16xf32>
    %54 = tpu.matmul %52, %53, %cst_32 {dimension_numbers = #tpu.dot_dimension_numbers<[1], [0], [0], [1], [0, 0, 1, 1], [], []>} : vector<8x8xbf16>, vector<8x16xbf16>, vector<8x16xf32> -> vector<8x16xf32>
    %55 = arith.truncf %54 : vector<8x16xf32> to vector<8x16xbf16>
    %56 = vector.extract_strided_slice %9 {offsets = [0, 0], sizes = [16, 64], strides = [1, 1]} : vector<64x64xbf16> to vector<16x64xbf16>
    %cst_33 = arith.constant dense<0.000000e+00> : vector<8x64xf32>
    %57 = tpu.matmul %55, %56, %cst_33 {dimension_numbers = #tpu.dot_dimension_numbers<[1], [0], [0], [1], [0, 0, 1, 1], [], []>} : vector<8x16xbf16>, vector<16x64xbf16>, vector<8x64xf32> -> vector<8x64xf32>
    %58 = arith.addf %30, %57 : vector<8x64xf32>
    %59 = vector.extract_strided_slice %29 {offsets = [0, 16], sizes = [8, 16], strides = [1, 1]} : vector<8x192xf32> to vector<8x16xf32>
    %60 = vector.extract_strided_slice %29 {offsets = [0, 80], sizes = [8, 16], strides = [1, 1]} : vector<8x192xf32> to vector<8x16xf32>
    %61 = vector.extract_strided_slice %29 {offsets = [0, 144], sizes = [8, 16], strides = [1, 1]} : vector<8x192xf32> to vector<8x16xf32>
    %62 = arith.truncf %59 : vector<8x16xf32> to vector<8x16xbf16>
    %63 = arith.truncf %60 : vector<8x16xf32> to vector<8x16xbf16>
    "tpu.trace_start"() <{level = 10 : i32, message = "qd,kd->qk"}> : () -> ()
    %cst_34 = arith.constant dense<0.000000e+00> : vector<8x8xf32>
    %64 = tpu.matmul %62, %63, %cst_34 {dimension_numbers = #tpu.dot_dimension_numbers<[1], [1], [0], [0], [0, 0, 1, 0], [], []>} : vector<8x16xbf16>, vector<8x16xbf16>, vector<8x8xf32> -> vector<8x8xf32>
    "tpu.trace_stop"() : () -> ()
    %65 = vector.extract_strided_slice %3 {offsets = [1, 0, 0], sizes = [1, 8, 8], strides = [1, 1, 1]} : vector<4x8x8xf32> to vector<1x8x8xf32>
    %66 = vector.shape_cast %65 : vector<1x8x8xf32> to vector<8x8xf32>
    %67 = arith.addf %64, %66 : vector<8x8xf32>
    %68 = vector.broadcast %2 : vector<1x8xf32> to vector<8x8xf32>
    %69 = arith.addf %67, %68 : vector<8x8xf32>
    %cst_35 = arith.constant dense<0xFF800000> : vector<8xf32>
    %70 = vector.multi_reduction <maximumf>, %69, %cst_35 [1] : vector<8x8xf32> to vector<8xf32>
    %71 = vector.shape_cast %70 : vector<8xf32> to vector<8x1xf32>
    %72 = vector.broadcast %71 : vector<8x1xf32> to vector<8x8xf32>
    %73 = arith.subf %69, %72 : vector<8x8xf32>
    %74 = math.exp %73 : vector<8x8xf32>
    %cst_36 = arith.constant dense<0.000000e+00> : vector<8xf32>
    %75 = vector.multi_reduction <add>, %74, %cst_36 [1] : vector<8x8xf32> to vector<8xf32>
    %76 = vector.shape_cast %75 : vector<8xf32> to vector<8x1xf32>
    %77 = tpu.reciprocal %76 {approx = true} : vector<8x1xf32> -> vector<8x1xf32>
    %78 = vector.broadcast %77 : vector<8x1xf32> to vector<8x8xf32>
    %79 = arith.mulf %74, %78 : vector<8x8xf32>
    %80 = arith.truncf %79 : vector<8x8xf32> to vector<8x8xbf16>
    %81 = arith.truncf %61 : vector<8x16xf32> to vector<8x16xbf16>
    %cst_37 = arith.constant dense<0.000000e+00> : vector<8x16xf32>
    %82 = tpu.matmul %80, %81, %cst_37 {dimension_numbers = #tpu.dot_dimension_numbers<[1], [0], [0], [1], [0, 0, 1, 1], [], []>} : vector<8x8xbf16>, vector<8x16xbf16>, vector<8x16xf32> -> vector<8x16xf32>
    %83 = arith.truncf %82 : vector<8x16xf32> to vector<8x16xbf16>
    %84 = vector.extract_strided_slice %9 {offsets = [16, 0], sizes = [16, 64], strides = [1, 1]} : vector<64x64xbf16> to vector<16x64xbf16>
    %cst_38 = arith.constant dense<0.000000e+00> : vector<8x64xf32>
    %85 = tpu.matmul %83, %84, %cst_38 {dimension_numbers = #tpu.dot_dimension_numbers<[1], [0], [0], [1], [0, 0, 1, 1], [], []>} : vector<8x16xbf16>, vector<16x64xbf16>, vector<8x64xf32> -> vector<8x64xf32>
    %86 = arith.addf %58, %85 : vector<8x64xf32>
    %87 = vector.extract_strided_slice %29 {offsets = [0, 32], sizes = [8, 16], strides = [1, 1]} : vector<8x192xf32> to vector<8x16xf32>
    %88 = vector.extract_strided_slice %29 {offsets = [0, 96], sizes = [8, 16], strides = [1, 1]} : vector<8x192xf32> to vector<8x16xf32>
    %89 = vector.extract_strided_slice %29 {offsets = [0, 160], sizes = [8, 16], strides = [1, 1]} : vector<8x192xf32> to vector<8x16xf32>
    %90 = arith.truncf %87 : vector<8x16xf32> to vector<8x16xbf16>
    %91 = arith.truncf %88 : vector<8x16xf32> to vector<8x16xbf16>
    "tpu.trace_start"() <{level = 10 : i32, message = "qd,kd->qk"}> : () -> ()
    %cst_39 = arith.constant dense<0.000000e+00> : vector<8x8xf32>
    %92 = tpu.matmul %90, %91, %cst_39 {dimension_numbers = #tpu.dot_dimension_numbers<[1], [1], [0], [0], [0, 0, 1, 0], [], []>} : vector<8x16xbf16>, vector<8x16xbf16>, vector<8x8xf32> -> vector<8x8xf32>
    "tpu.trace_stop"() : () -> ()
    %93 = vector.extract_strided_slice %3 {offsets = [2, 0, 0], sizes = [1, 8, 8], strides = [1, 1, 1]} : vector<4x8x8xf32> to vector<1x8x8xf32>
    %94 = vector.shape_cast %93 : vector<1x8x8xf32> to vector<8x8xf32>
    %95 = arith.addf %92, %94 : vector<8x8xf32>
    %96 = vector.broadcast %2 : vector<1x8xf32> to vector<8x8xf32>
    %97 = arith.addf %95, %96 : vector<8x8xf32>
    %cst_40 = arith.constant dense<0xFF800000> : vector<8xf32>
    %98 = vector.multi_reduction <maximumf>, %97, %cst_40 [1] : vector<8x8xf32> to vector<8xf32>
    %99 = vector.shape_cast %98 : vector<8xf32> to vector<8x1xf32>
    %100 = vector.broadcast %99 : vector<8x1xf32> to vector<8x8xf32>
    %101 = arith.subf %97, %100 : vector<8x8xf32>
    %102 = math.exp %101 : vector<8x8xf32>
    %cst_41 = arith.constant dense<0.000000e+00> : vector<8xf32>
    %103 = vector.multi_reduction <add>, %102, %cst_41 [1] : vector<8x8xf32> to vector<8xf32>
    %104 = vector.shape_cast %103 : vector<8xf32> to vector<8x1xf32>
    %105 = tpu.reciprocal %104 {approx = true} : vector<8x1xf32> -> vector<8x1xf32>
    %106 = vector.broadcast %105 : vector<8x1xf32> to vector<8x8xf32>
    %107 = arith.mulf %102, %106 : vector<8x8xf32>
    %108 = arith.truncf %107 : vector<8x8xf32> to vector<8x8xbf16>
    %109 = arith.truncf %89 : vector<8x16xf32> to vector<8x16xbf16>
    %cst_42 = arith.constant dense<0.000000e+00> : vector<8x16xf32>
    %110 = tpu.matmul %108, %109, %cst_42 {dimension_numbers = #tpu.dot_dimension_numbers<[1], [0], [0], [1], [0, 0, 1, 1], [], []>} : vector<8x8xbf16>, vector<8x16xbf16>, vector<8x16xf32> -> vector<8x16xf32>
    %111 = arith.truncf %110 : vector<8x16xf32> to vector<8x16xbf16>
    %112 = vector.extract_strided_slice %9 {offsets = [32, 0], sizes = [16, 64], strides = [1, 1]} : vector<64x64xbf16> to vector<16x64xbf16>
    %cst_43 = arith.constant dense<0.000000e+00> : vector<8x64xf32>
    %113 = tpu.matmul %111, %112, %cst_43 {dimension_numbers = #tpu.dot_dimension_numbers<[1], [0], [0], [1], [0, 0, 1, 1], [], []>} : vector<8x16xbf16>, vector<16x64xbf16>, vector<8x64xf32> -> vector<8x64xf32>
    %114 = arith.addf %86, %113 : vector<8x64xf32>
    %115 = vector.extract_strided_slice %29 {offsets = [0, 48], sizes = [8, 16], strides = [1, 1]} : vector<8x192xf32> to vector<8x16xf32>
    %116 = vector.extract_strided_slice %29 {offsets = [0, 112], sizes = [8, 16], strides = [1, 1]} : vector<8x192xf32> to vector<8x16xf32>
    %117 = vector.extract_strided_slice %29 {offsets = [0, 176], sizes = [8, 16], strides = [1, 1]} : vector<8x192xf32> to vector<8x16xf32>
    %118 = arith.truncf %115 : vector<8x16xf32> to vector<8x16xbf16>
    %119 = arith.truncf %116 : vector<8x16xf32> to vector<8x16xbf16>
    "tpu.trace_start"() <{level = 10 : i32, message = "qd,kd->qk"}> : () -> ()
    %cst_44 = arith.constant dense<0.000000e+00> : vector<8x8xf32>
    %120 = tpu.matmul %118, %119, %cst_44 {dimension_numbers = #tpu.dot_dimension_numbers<[1], [1], [0], [0], [0, 0, 1, 0], [], []>} : vector<8x16xbf16>, vector<8x16xbf16>, vector<8x8xf32> -> vector<8x8xf32>
    "tpu.trace_stop"() : () -> ()
    %121 = vector.extract_strided_slice %3 {offsets = [3, 0, 0], sizes = [1, 8, 8], strides = [1, 1, 1]} : vector<4x8x8xf32> to vector<1x8x8xf32>
    %122 = vector.shape_cast %121 : vector<1x8x8xf32> to vector<8x8xf32>
    %123 = arith.addf %120, %122 : vector<8x8xf32>
    %124 = vector.broadcast %2 : vector<1x8xf32> to vector<8x8xf32>
    %125 = arith.addf %123, %124 : vector<8x8xf32>
    %cst_45 = arith.constant dense<0xFF800000> : vector<8xf32>
    %126 = vector.multi_reduction <maximumf>, %125, %cst_45 [1] : vector<8x8xf32> to vector<8xf32>
    %127 = vector.shape_cast %126 : vector<8xf32> to vector<8x1xf32>
    %128 = vector.broadcast %127 : vector<8x1xf32> to vector<8x8xf32>
    %129 = arith.subf %125, %128 : vector<8x8xf32>
    %130 = math.exp %129 : vector<8x8xf32>
    %cst_46 = arith.constant dense<0.000000e+00> : vector<8xf32>
    %131 = vector.multi_reduction <add>, %130, %cst_46 [1] : vector<8x8xf32> to vector<8xf32>
    %132 = vector.shape_cast %131 : vector<8xf32> to vector<8x1xf32>
    %133 = tpu.reciprocal %132 {approx = true} : vector<8x1xf32> -> vector<8x1xf32>
    %134 = vector.broadcast %133 : vector<8x1xf32> to vector<8x8xf32>
    %135 = arith.mulf %130, %134 : vector<8x8xf32>
    %136 = arith.truncf %135 : vector<8x8xf32> to vector<8x8xbf16>
    %137 = arith.truncf %117 : vector<8x16xf32> to vector<8x16xbf16>
    %cst_47 = arith.constant dense<0.000000e+00> : vector<8x16xf32>
    %138 = tpu.matmul %136, %137, %cst_47 {dimension_numbers = #tpu.dot_dimension_numbers<[1], [0], [0], [1], [0, 0, 1, 1], [], []>} : vector<8x8xbf16>, vector<8x16xbf16>, vector<8x16xf32> -> vector<8x16xf32>
    %139 = arith.truncf %138 : vector<8x16xf32> to vector<8x16xbf16>
    %140 = vector.extract_strided_slice %9 {offsets = [48, 0], sizes = [16, 64], strides = [1, 1]} : vector<64x64xbf16> to vector<16x64xbf16>
    %cst_48 = arith.constant dense<0.000000e+00> : vector<8x64xf32>
    %141 = tpu.matmul %139, %140, %cst_48 {dimension_numbers = #tpu.dot_dimension_numbers<[1], [0], [0], [1], [0, 0, 1, 1], [], []>} : vector<8x16xbf16>, vector<16x64xbf16>, vector<8x64xf32> -> vector<8x64xf32>
    %142 = arith.addf %114, %141 : vector<8x64xf32>
    %143 = arith.addf %0, %142 : vector<8x64xf32>
    %144 = arith.mulf %143, %143 : vector<8x64xf32>
    %cst_49 = arith.constant dense<0.000000e+00> : vector<8xf32>
    %145 = vector.multi_reduction <add>, %144, %cst_49 [1] : vector<8x64xf32> to vector<8xf32>
    %146 = vector.shape_cast %145 : vector<8xf32> to vector<8x1xf32>
    %cst_50 = arith.constant 6.400000e+01 : f32
    %147 = vector.broadcast %cst_50 : f32 to vector<8x1xf32>
    %148 = arith.divf %146, %147 : vector<8x1xf32>
    %cst_51 = arith.constant 9.99999997E-7 : f32
    %149 = vector.broadcast %cst_51 : f32 to vector<8x1xf32>
    %150 = arith.addf %148, %149 : vector<8x1xf32>
    %151 = math.rsqrt %150 : vector<8x1xf32>
    %152 = vector.broadcast %151 : vector<8x1xf32> to vector<8x64xf32>
    %153 = arith.mulf %143, %152 : vector<8x64xf32>
    %154 = vector.broadcast %11 : vector<1x64xf32> to vector<8x64xf32>
    %155 = arith.mulf %153, %154 : vector<8x64xf32>
    %156 = arith.truncf %155 : vector<8x64xf32> to vector<8x64xbf16>
    %cst_52 = arith.constant dense<0.000000e+00> : vector<8x256xf32>
    %157 = tpu.matmul %156, %13, %cst_52 {dimension_numbers = #tpu.dot_dimension_numbers<[1], [0], [0], [1], [0, 0, 1, 1], [], []>} : vector<8x64xbf16>, vector<64x256xbf16>, vector<8x256xf32> -> vector<8x256xf32>
    %158 = vector.extract_strided_slice %157 {offsets = [0, 0], sizes = [8, 128], strides = [1, 1]} : vector<8x256xf32> to vector<8x128xf32>
    %159 = vector.extract_strided_slice %157 {offsets = [0, 128], sizes = [8, 128], strides = [1, 1]} : vector<8x256xf32> to vector<8x128xf32>
    %cst_53 = arith.constant 5.000000e-01 : f32
    %160 = vector.broadcast %cst_53 : f32 to vector<8x128xf32>
    %161 = arith.mulf %160, %158 : vector<8x128xf32>
    %cst_54 = arith.constant 4.471500e-02 : f32
    %162 = vector.broadcast %cst_54 : f32 to vector<8x128xf32>
    %163 = arith.mulf %162, %158 : vector<8x128xf32>
    %164 = arith.mulf %163, %158 : vector<8x128xf32>
    %165 = arith.mulf %164, %158 : vector<8x128xf32>
    %166 = arith.addf %158, %165 : vector<8x128xf32>
    %cst_55 = arith.constant 0.797884583 : f32
    %167 = vector.broadcast %cst_55 : f32 to vector<8x128xf32>
    %168 = arith.mulf %167, %166 : vector<8x128xf32>
    %169 = math.tanh %168 : vector<8x128xf32>
    %cst_56 = arith.constant 1.000000e+00 : f32
    %170 = vector.broadcast %cst_56 : f32 to vector<8x128xf32>
    %171 = arith.addf %170, %169 : vector<8x128xf32>
    %172 = arith.mulf %161, %171 : vector<8x128xf32>
    %173 = arith.mulf %172, %159 : vector<8x128xf32>
    %174 = arith.truncf %173 : vector<8x128xf32> to vector<8x128xbf16>
    %cst_57 = arith.constant dense<0.000000e+00> : vector<8x64xf32>
    %175 = tpu.matmul %174, %15, %cst_57 {dimension_numbers = #tpu.dot_dimension_numbers<[1], [0], [0], [1], [0, 0, 1, 1], [], []>} : vector<8x128xbf16>, vector<128x64xbf16>, vector<8x64xf32> -> vector<8x64xf32>
    %176 = arith.addf %143, %175 : vector<8x64xf32>
    %c1 = arith.constant 1 : index
    %c0_58 = arith.constant 0 : index
    %c0_59 = arith.constant 0 : index
    %177 = vector.load %arg4[%c1, %c0_58, %c0_59] : memref<2x1x64xf32, #tpu.memory_space<vmem>>, vector<1x1x64xf32>
    %178 = vector.shape_cast %177 : vector<1x1x64xf32> to vector<1x64xf32>
    %c1_60 = arith.constant 1 : index
    %c0_61 = arith.constant 0 : index
    %c0_62 = arith.constant 0 : index
    %179 = vector.load %arg5[%c1_60, %c0_61, %c0_62] : memref<2x64x192xbf16, #tpu.memory_space<vmem>>, vector<1x64x192xbf16>
    %180 = vector.shape_cast %179 : vector<1x64x192xbf16> to vector<64x192xbf16>
    %c1_63 = arith.constant 1 : index
    %c0_64 = arith.constant 0 : index
    %c0_65 = arith.constant 0 : index
    %181 = vector.load %arg6[%c1_63, %c0_64, %c0_65] : memref<2x64x64xbf16, #tpu.memory_space<vmem>>, vector<1x64x64xbf16>
    %182 = vector.shape_cast %181 : vector<1x64x64xbf16> to vector<64x64xbf16>
    %c1_66 = arith.constant 1 : index
    %c0_67 = arith.constant 0 : index
    %c0_68 = arith.constant 0 : index
    %183 = vector.load %arg7[%c1_66, %c0_67, %c0_68] : memref<2x1x64xf32, #tpu.memory_space<vmem>>, vector<1x1x64xf32>
    %184 = vector.shape_cast %183 : vector<1x1x64xf32> to vector<1x64xf32>
    %c1_69 = arith.constant 1 : index
    %c0_70 = arith.constant 0 : index
    %c0_71 = arith.constant 0 : index
    %185 = vector.load %arg8[%c1_69, %c0_70, %c0_71] : memref<2x64x256xbf16, #tpu.memory_space<vmem>>, vector<1x64x256xbf16>
    %186 = vector.shape_cast %185 : vector<1x64x256xbf16> to vector<64x256xbf16>
    %c1_72 = arith.constant 1 : index
    %c0_73 = arith.constant 0 : index
    %c0_74 = arith.constant 0 : index
    %187 = vector.load %arg9[%c1_72, %c0_73, %c0_74] : memref<2x128x64xbf16, #tpu.memory_space<vmem>>, vector<1x128x64xbf16>
    %188 = vector.shape_cast %187 : vector<1x128x64xbf16> to vector<128x64xbf16>
    %189 = arith.mulf %176, %176 : vector<8x64xf32>
    %cst_75 = arith.constant dense<0.000000e+00> : vector<8xf32>
    %190 = vector.multi_reduction <add>, %189, %cst_75 [1] : vector<8x64xf32> to vector<8xf32>
    %191 = vector.shape_cast %190 : vector<8xf32> to vector<8x1xf32>
    %cst_76 = arith.constant 6.400000e+01 : f32
    %192 = vector.broadcast %cst_76 : f32 to vector<8x1xf32>
    %193 = arith.divf %191, %192 : vector<8x1xf32>
    %cst_77 = arith.constant 9.99999997E-7 : f32
    %194 = vector.broadcast %cst_77 : f32 to vector<8x1xf32>
    %195 = arith.addf %193, %194 : vector<8x1xf32>
    %196 = math.rsqrt %195 : vector<8x1xf32>
    %197 = vector.broadcast %196 : vector<8x1xf32> to vector<8x64xf32>
    %198 = arith.mulf %176, %197 : vector<8x64xf32>
    %199 = vector.broadcast %178 : vector<1x64xf32> to vector<8x64xf32>
    %200 = arith.mulf %198, %199 : vector<8x64xf32>
    %201 = arith.truncf %200 : vector<8x64xf32> to vector<8x64xbf16>
    %cst_78 = arith.constant dense<0.000000e+00> : vector<8x192xf32>
    %202 = tpu.matmul %201, %180, %cst_78 {dimension_numbers = #tpu.dot_dimension_numbers<[1], [0], [0], [1], [0, 0, 1, 1], [], []>} : vector<8x64xbf16>, vector<64x192xbf16>, vector<8x192xf32> -> vector<8x192xf32>
    %cst_79 = arith.constant 0.000000e+00 : f32
    %203 = vector.broadcast %cst_79 : f32 to vector<8x64xf32>
    %204 = vector.extract_strided_slice %202 {offsets = [0, 0], sizes = [8, 16], strides = [1, 1]} : vector<8x192xf32> to vector<8x16xf32>
    %205 = vector.extract_strided_slice %202 {offsets = [0, 64], sizes = [8, 16], strides = [1, 1]} : vector<8x192xf32> to vector<8x16xf32>
    %206 = vector.extract_strided_slice %202 {offsets = [0, 128], sizes = [8, 16], strides = [1, 1]} : vector<8x192xf32> to vector<8x16xf32>
    %207 = arith.truncf %204 : vector<8x16xf32> to vector<8x16xbf16>
    %208 = arith.truncf %205 : vector<8x16xf32> to vector<8x16xbf16>
    "tpu.trace_start"() <{level = 10 : i32, message = "qd,kd->qk"}> : () -> ()
    %cst_80 = arith.constant dense<0.000000e+00> : vector<8x8xf32>
    %209 = tpu.matmul %207, %208, %cst_80 {dimension_numbers = #tpu.dot_dimension_numbers<[1], [1], [0], [0], [0, 0, 1, 0], [], []>} : vector<8x16xbf16>, vector<8x16xbf16>, vector<8x8xf32> -> vector<8x8xf32>
    "tpu.trace_stop"() : () -> ()
    %210 = vector.extract_strided_slice %3 {offsets = [0, 0, 0], sizes = [1, 8, 8], strides = [1, 1, 1]} : vector<4x8x8xf32> to vector<1x8x8xf32>
    %211 = vector.shape_cast %210 : vector<1x8x8xf32> to vector<8x8xf32>
    %212 = arith.addf %209, %211 : vector<8x8xf32>
    %213 = vector.broadcast %2 : vector<1x8xf32> to vector<8x8xf32>
    %214 = arith.addf %212, %213 : vector<8x8xf32>
    %cst_81 = arith.constant dense<0xFF800000> : vector<8xf32>
    %215 = vector.multi_reduction <maximumf>, %214, %cst_81 [1] : vector<8x8xf32> to vector<8xf32>
    %216 = vector.shape_cast %215 : vector<8xf32> to vector<8x1xf32>
    %217 = vector.broadcast %216 : vector<8x1xf32> to vector<8x8xf32>
    %218 = arith.subf %214, %217 : vector<8x8xf32>
    %219 = math.exp %218 : vector<8x8xf32>
    %cst_82 = arith.constant dense<0.000000e+00> : vector<8xf32>
    %220 = vector.multi_reduction <add>, %219, %cst_82 [1] : vector<8x8xf32> to vector<8xf32>
    %221 = vector.shape_cast %220 : vector<8xf32> to vector<8x1xf32>
    %222 = tpu.reciprocal %221 {approx = true} : vector<8x1xf32> -> vector<8x1xf32>
    %223 = vector.broadcast %222 : vector<8x1xf32> to vector<8x8xf32>
    %224 = arith.mulf %219, %223 : vector<8x8xf32>
    %225 = arith.truncf %224 : vector<8x8xf32> to vector<8x8xbf16>
    %226 = arith.truncf %206 : vector<8x16xf32> to vector<8x16xbf16>
    %cst_83 = arith.constant dense<0.000000e+00> : vector<8x16xf32>
    %227 = tpu.matmul %225, %226, %cst_83 {dimension_numbers = #tpu.dot_dimension_numbers<[1], [0], [0], [1], [0, 0, 1, 1], [], []>} : vector<8x8xbf16>, vector<8x16xbf16>, vector<8x16xf32> -> vector<8x16xf32>
    %228 = arith.truncf %227 : vector<8x16xf32> to vector<8x16xbf16>
    %229 = vector.extract_strided_slice %182 {offsets = [0, 0], sizes = [16, 64], strides = [1, 1]} : vector<64x64xbf16> to vector<16x64xbf16>
    %cst_84 = arith.constant dense<0.000000e+00> : vector<8x64xf32>
    %230 = tpu.matmul %228, %229, %cst_84 {dimension_numbers = #tpu.dot_dimension_numbers<[1], [0], [0], [1], [0, 0, 1, 1], [], []>} : vector<8x16xbf16>, vector<16x64xbf16>, vector<8x64xf32> -> vector<8x64xf32>
    %231 = arith.addf %203, %230 : vector<8x64xf32>
    %232 = vector.extract_strided_slice %202 {offsets = [0, 16], sizes = [8, 16], strides = [1, 1]} : vector<8x192xf32> to vector<8x16xf32>
    %233 = vector.extract_strided_slice %202 {offsets = [0, 80], sizes = [8, 16], strides = [1, 1]} : vector<8x192xf32> to vector<8x16xf32>
    %234 = vector.extract_strided_slice %202 {offsets = [0, 144], sizes = [8, 16], strides = [1, 1]} : vector<8x192xf32> to vector<8x16xf32>
    %235 = arith.truncf %232 : vector<8x16xf32> to vector<8x16xbf16>
    %236 = arith.truncf %233 : vector<8x16xf32> to vector<8x16xbf16>
    "tpu.trace_start"() <{level = 10 : i32, message = "qd,kd->qk"}> : () -> ()
    %cst_85 = arith.constant dense<0.000000e+00> : vector<8x8xf32>
    %237 = tpu.matmul %235, %236, %cst_85 {dimension_numbers = #tpu.dot_dimension_numbers<[1], [1], [0], [0], [0, 0, 1, 0], [], []>} : vector<8x16xbf16>, vector<8x16xbf16>, vector<8x8xf32> -> vector<8x8xf32>
    "tpu.trace_stop"() : () -> ()
    %238 = vector.extract_strided_slice %3 {offsets = [1, 0, 0], sizes = [1, 8, 8], strides = [1, 1, 1]} : vector<4x8x8xf32> to vector<1x8x8xf32>
    %239 = vector.shape_cast %238 : vector<1x8x8xf32> to vector<8x8xf32>
    %240 = arith.addf %237, %239 : vector<8x8xf32>
    %241 = vector.broadcast %2 : vector<1x8xf32> to vector<8x8xf32>
    %242 = arith.addf %240, %241 : vector<8x8xf32>
    %cst_86 = arith.constant dense<0xFF800000> : vector<8xf32>
    %243 = vector.multi_reduction <maximumf>, %242, %cst_86 [1] : vector<8x8xf32> to vector<8xf32>
    %244 = vector.shape_cast %243 : vector<8xf32> to vector<8x1xf32>
    %245 = vector.broadcast %244 : vector<8x1xf32> to vector<8x8xf32>
    %246 = arith.subf %242, %245 : vector<8x8xf32>
    %247 = math.exp %246 : vector<8x8xf32>
    %cst_87 = arith.constant dense<0.000000e+00> : vector<8xf32>
    %248 = vector.multi_reduction <add>, %247, %cst_87 [1] : vector<8x8xf32> to vector<8xf32>
    %249 = vector.shape_cast %248 : vector<8xf32> to vector<8x1xf32>
    %250 = tpu.reciprocal %249 {approx = true} : vector<8x1xf32> -> vector<8x1xf32>
    %251 = vector.broadcast %250 : vector<8x1xf32> to vector<8x8xf32>
    %252 = arith.mulf %247, %251 : vector<8x8xf32>
    %253 = arith.truncf %252 : vector<8x8xf32> to vector<8x8xbf16>
    %254 = arith.truncf %234 : vector<8x16xf32> to vector<8x16xbf16>
    %cst_88 = arith.constant dense<0.000000e+00> : vector<8x16xf32>
    %255 = tpu.matmul %253, %254, %cst_88 {dimension_numbers = #tpu.dot_dimension_numbers<[1], [0], [0], [1], [0, 0, 1, 1], [], []>} : vector<8x8xbf16>, vector<8x16xbf16>, vector<8x16xf32> -> vector<8x16xf32>
    %256 = arith.truncf %255 : vector<8x16xf32> to vector<8x16xbf16>
    %257 = vector.extract_strided_slice %182 {offsets = [16, 0], sizes = [16, 64], strides = [1, 1]} : vector<64x64xbf16> to vector<16x64xbf16>
    %cst_89 = arith.constant dense<0.000000e+00> : vector<8x64xf32>
    %258 = tpu.matmul %256, %257, %cst_89 {dimension_numbers = #tpu.dot_dimension_numbers<[1], [0], [0], [1], [0, 0, 1, 1], [], []>} : vector<8x16xbf16>, vector<16x64xbf16>, vector<8x64xf32> -> vector<8x64xf32>
    %259 = arith.addf %231, %258 : vector<8x64xf32>
    %260 = vector.extract_strided_slice %202 {offsets = [0, 32], sizes = [8, 16], strides = [1, 1]} : vector<8x192xf32> to vector<8x16xf32>
    %261 = vector.extract_strided_slice %202 {offsets = [0, 96], sizes = [8, 16], strides = [1, 1]} : vector<8x192xf32> to vector<8x16xf32>
    %262 = vector.extract_strided_slice %202 {offsets = [0, 160], sizes = [8, 16], strides = [1, 1]} : vector<8x192xf32> to vector<8x16xf32>
    %263 = arith.truncf %260 : vector<8x16xf32> to vector<8x16xbf16>
    %264 = arith.truncf %261 : vector<8x16xf32> to vector<8x16xbf16>
    "tpu.trace_start"() <{level = 10 : i32, message = "qd,kd->qk"}> : () -> ()
    %cst_90 = arith.constant dense<0.000000e+00> : vector<8x8xf32>
    %265 = tpu.matmul %263, %264, %cst_90 {dimension_numbers = #tpu.dot_dimension_numbers<[1], [1], [0], [0], [0, 0, 1, 0], [], []>} : vector<8x16xbf16>, vector<8x16xbf16>, vector<8x8xf32> -> vector<8x8xf32>
    "tpu.trace_stop"() : () -> ()
    %266 = vector.extract_strided_slice %3 {offsets = [2, 0, 0], sizes = [1, 8, 8], strides = [1, 1, 1]} : vector<4x8x8xf32> to vector<1x8x8xf32>
    %267 = vector.shape_cast %266 : vector<1x8x8xf32> to vector<8x8xf32>
    %268 = arith.addf %265, %267 : vector<8x8xf32>
    %269 = vector.broadcast %2 : vector<1x8xf32> to vector<8x8xf32>
    %270 = arith.addf %268, %269 : vector<8x8xf32>
    %cst_91 = arith.constant dense<0xFF800000> : vector<8xf32>
    %271 = vector.multi_reduction <maximumf>, %270, %cst_91 [1] : vector<8x8xf32> to vector<8xf32>
    %272 = vector.shape_cast %271 : vector<8xf32> to vector<8x1xf32>
    %273 = vector.broadcast %272 : vector<8x1xf32> to vector<8x8xf32>
    %274 = arith.subf %270, %273 : vector<8x8xf32>
    %275 = math.exp %274 : vector<8x8xf32>
    %cst_92 = arith.constant dense<0.000000e+00> : vector<8xf32>
    %276 = vector.multi_reduction <add>, %275, %cst_92 [1] : vector<8x8xf32> to vector<8xf32>
    %277 = vector.shape_cast %276 : vector<8xf32> to vector<8x1xf32>
    %278 = tpu.reciprocal %277 {approx = true} : vector<8x1xf32> -> vector<8x1xf32>
    %279 = vector.broadcast %278 : vector<8x1xf32> to vector<8x8xf32>
    %280 = arith.mulf %275, %279 : vector<8x8xf32>
    %281 = arith.truncf %280 : vector<8x8xf32> to vector<8x8xbf16>
    %282 = arith.truncf %262 : vector<8x16xf32> to vector<8x16xbf16>
    %cst_93 = arith.constant dense<0.000000e+00> : vector<8x16xf32>
    %283 = tpu.matmul %281, %282, %cst_93 {dimension_numbers = #tpu.dot_dimension_numbers<[1], [0], [0], [1], [0, 0, 1, 1], [], []>} : vector<8x8xbf16>, vector<8x16xbf16>, vector<8x16xf32> -> vector<8x16xf32>
    %284 = arith.truncf %283 : vector<8x16xf32> to vector<8x16xbf16>
    %285 = vector.extract_strided_slice %182 {offsets = [32, 0], sizes = [16, 64], strides = [1, 1]} : vector<64x64xbf16> to vector<16x64xbf16>
    %cst_94 = arith.constant dense<0.000000e+00> : vector<8x64xf32>
    %286 = tpu.matmul %284, %285, %cst_94 {dimension_numbers = #tpu.dot_dimension_numbers<[1], [0], [0], [1], [0, 0, 1, 1], [], []>} : vector<8x16xbf16>, vector<16x64xbf16>, vector<8x64xf32> -> vector<8x64xf32>
    %287 = arith.addf %259, %286 : vector<8x64xf32>
    %288 = vector.extract_strided_slice %202 {offsets = [0, 48], sizes = [8, 16], strides = [1, 1]} : vector<8x192xf32> to vector<8x16xf32>
    %289 = vector.extract_strided_slice %202 {offsets = [0, 112], sizes = [8, 16], strides = [1, 1]} : vector<8x192xf32> to vector<8x16xf32>
    %290 = vector.extract_strided_slice %202 {offsets = [0, 176], sizes = [8, 16], strides = [1, 1]} : vector<8x192xf32> to vector<8x16xf32>
    %291 = arith.truncf %288 : vector<8x16xf32> to vector<8x16xbf16>
    %292 = arith.truncf %289 : vector<8x16xf32> to vector<8x16xbf16>
    "tpu.trace_start"() <{level = 10 : i32, message = "qd,kd->qk"}> : () -> ()
    %cst_95 = arith.constant dense<0.000000e+00> : vector<8x8xf32>
    %293 = tpu.matmul %291, %292, %cst_95 {dimension_numbers = #tpu.dot_dimension_numbers<[1], [1], [0], [0], [0, 0, 1, 0], [], []>} : vector<8x16xbf16>, vector<8x16xbf16>, vector<8x8xf32> -> vector<8x8xf32>
    "tpu.trace_stop"() : () -> ()
    %294 = vector.extract_strided_slice %3 {offsets = [3, 0, 0], sizes = [1, 8, 8], strides = [1, 1, 1]} : vector<4x8x8xf32> to vector<1x8x8xf32>
    %295 = vector.shape_cast %294 : vector<1x8x8xf32> to vector<8x8xf32>
    %296 = arith.addf %293, %295 : vector<8x8xf32>
    %297 = vector.broadcast %2 : vector<1x8xf32> to vector<8x8xf32>
    %298 = arith.addf %296, %297 : vector<8x8xf32>
    %cst_96 = arith.constant dense<0xFF800000> : vector<8xf32>
    %299 = vector.multi_reduction <maximumf>, %298, %cst_96 [1] : vector<8x8xf32> to vector<8xf32>
    %300 = vector.shape_cast %299 : vector<8xf32> to vector<8x1xf32>
    %301 = vector.broadcast %300 : vector<8x1xf32> to vector<8x8xf32>
    %302 = arith.subf %298, %301 : vector<8x8xf32>
    %303 = math.exp %302 : vector<8x8xf32>
    %cst_97 = arith.constant dense<0.000000e+00> : vector<8xf32>
    %304 = vector.multi_reduction <add>, %303, %cst_97 [1] : vector<8x8xf32> to vector<8xf32>
    %305 = vector.shape_cast %304 : vector<8xf32> to vector<8x1xf32>
    %306 = tpu.reciprocal %305 {approx = true} : vector<8x1xf32> -> vector<8x1xf32>
    %307 = vector.broadcast %306 : vector<8x1xf32> to vector<8x8xf32>
    %308 = arith.mulf %303, %307 : vector<8x8xf32>
    %309 = arith.truncf %308 : vector<8x8xf32> to vector<8x8xbf16>
    %310 = arith.truncf %290 : vector<8x16xf32> to vector<8x16xbf16>
    %cst_98 = arith.constant dense<0.000000e+00> : vector<8x16xf32>
    %311 = tpu.matmul %309, %310, %cst_98 {dimension_numbers = #tpu.dot_dimension_numbers<[1], [0], [0], [1], [0, 0, 1, 1], [], []>} : vector<8x8xbf16>, vector<8x16xbf16>, vector<8x16xf32> -> vector<8x16xf32>
    %312 = arith.truncf %311 : vector<8x16xf32> to vector<8x16xbf16>
    %313 = vector.extract_strided_slice %182 {offsets = [48, 0], sizes = [16, 64], strides = [1, 1]} : vector<64x64xbf16> to vector<16x64xbf16>
    %cst_99 = arith.constant dense<0.000000e+00> : vector<8x64xf32>
    %314 = tpu.matmul %312, %313, %cst_99 {dimension_numbers = #tpu.dot_dimension_numbers<[1], [0], [0], [1], [0, 0, 1, 1], [], []>} : vector<8x16xbf16>, vector<16x64xbf16>, vector<8x64xf32> -> vector<8x64xf32>
    %315 = arith.addf %287, %314 : vector<8x64xf32>
    %316 = arith.addf %176, %315 : vector<8x64xf32>
    %317 = arith.mulf %316, %316 : vector<8x64xf32>
    %cst_100 = arith.constant dense<0.000000e+00> : vector<8xf32>
    %318 = vector.multi_reduction <add>, %317, %cst_100 [1] : vector<8x64xf32> to vector<8xf32>
    %319 = vector.shape_cast %318 : vector<8xf32> to vector<8x1xf32>
    %cst_101 = arith.constant 6.400000e+01 : f32
    %320 = vector.broadcast %cst_101 : f32 to vector<8x1xf32>
    %321 = arith.divf %319, %320 : vector<8x1xf32>
    %cst_102 = arith.constant 9.99999997E-7 : f32
    %322 = vector.broadcast %cst_102 : f32 to vector<8x1xf32>
    %323 = arith.addf %321, %322 : vector<8x1xf32>
    %324 = math.rsqrt %323 : vector<8x1xf32>
    %325 = vector.broadcast %324 : vector<8x1xf32> to vector<8x64xf32>
    %326 = arith.mulf %316, %325 : vector<8x64xf32>
    %327 = vector.broadcast %184 : vector<1x64xf32> to vector<8x64xf32>
    %328 = arith.mulf %326, %327 : vector<8x64xf32>
    %329 = arith.truncf %328 : vector<8x64xf32> to vector<8x64xbf16>
    %cst_103 = arith.constant dense<0.000000e+00> : vector<8x256xf32>
    %330 = tpu.matmul %329, %186, %cst_103 {dimension_numbers = #tpu.dot_dimension_numbers<[1], [0], [0], [1], [0, 0, 1, 1], [], []>} : vector<8x64xbf16>, vector<64x256xbf16>, vector<8x256xf32> -> vector<8x256xf32>
    %331 = vector.extract_strided_slice %330 {offsets = [0, 0], sizes = [8, 128], strides = [1, 1]} : vector<8x256xf32> to vector<8x128xf32>
    %332 = vector.extract_strided_slice %330 {offsets = [0, 128], sizes = [8, 128], strides = [1, 1]} : vector<8x256xf32> to vector<8x128xf32>
    %cst_104 = arith.constant 5.000000e-01 : f32
    %333 = vector.broadcast %cst_104 : f32 to vector<8x128xf32>
    %334 = arith.mulf %333, %331 : vector<8x128xf32>
    %cst_105 = arith.constant 4.471500e-02 : f32
    %335 = vector.broadcast %cst_105 : f32 to vector<8x128xf32>
    %336 = arith.mulf %335, %331 : vector<8x128xf32>
    %337 = arith.mulf %336, %331 : vector<8x128xf32>
    %338 = arith.mulf %337, %331 : vector<8x128xf32>
    %339 = arith.addf %331, %338 : vector<8x128xf32>
    %cst_106 = arith.constant 0.797884583 : f32
    %340 = vector.broadcast %cst_106 : f32 to vector<8x128xf32>
    %341 = arith.mulf %340, %339 : vector<8x128xf32>
    %342 = math.tanh %341 : vector<8x128xf32>
    %cst_107 = arith.constant 1.000000e+00 : f32
    %343 = vector.broadcast %cst_107 : f32 to vector<8x128xf32>
    %344 = arith.addf %343, %342 : vector<8x128xf32>
    %345 = arith.mulf %334, %344 : vector<8x128xf32>
    %346 = arith.mulf %345, %332 : vector<8x128xf32>
    %347 = arith.truncf %346 : vector<8x128xf32> to vector<8x128xbf16>
    %cst_108 = arith.constant dense<0.000000e+00> : vector<8x64xf32>
    %348 = tpu.matmul %347, %188, %cst_108 {dimension_numbers = #tpu.dot_dimension_numbers<[1], [0], [0], [1], [0, 0, 1, 1], [], []>} : vector<8x128xbf16>, vector<128x64xbf16>, vector<8x64xf32> -> vector<8x64xf32>
    %349 = arith.addf %316, %348 : vector<8x64xf32>
    %c0_109 = arith.constant 0 : index
    %c0_110 = arith.constant 0 : index
    %350 = vector.load %arg10[%c0_109, %c0_110] : memref<1x64xf32, #tpu.memory_space<vmem>>, vector<1x64xf32>
    %351 = arith.mulf %349, %349 : vector<8x64xf32>
    %cst_111 = arith.constant dense<0.000000e+00> : vector<8xf32>
    %352 = vector.multi_reduction <add>, %351, %cst_111 [1] : vector<8x64xf32> to vector<8xf32>
    %353 = vector.shape_cast %352 : vector<8xf32> to vector<8x1xf32>
    %cst_112 = arith.constant 6.400000e+01 : f32
    %354 = vector.broadcast %cst_112 : f32 to vector<8x1xf32>
    %355 = arith.divf %353, %354 : vector<8x1xf32>
    %cst_113 = arith.constant 9.99999997E-7 : f32
    %356 = vector.broadcast %cst_113 : f32 to vector<8x1xf32>
    %357 = arith.addf %355, %356 : vector<8x1xf32>
    %358 = math.rsqrt %357 : vector<8x1xf32>
    %359 = vector.broadcast %358 : vector<8x1xf32> to vector<8x64xf32>
    %360 = arith.mulf %349, %359 : vector<8x64xf32>
    %361 = vector.broadcast %350 : vector<1x64xf32> to vector<8x64xf32>
    %362 = arith.mulf %360, %361 : vector<8x64xf32>
    %c0_114 = arith.constant 0 : index
    %c0_115 = arith.constant 0 : index
    %363 = vector.load %arg11[%c0_114, %c0_115] : memref<8x64xf32, #tpu.memory_space<vmem>>, vector<8x64xf32>
    tpu.vector_store %arg11[%c0_114, %c0_115], %362 {strides = array<i32>} : memref<8x64xf32, #tpu.memory_space<vmem>>, vector<8x64xf32>,
    return
  }
  func.func @transform_0(%arg0: i32) -> (i32, i32) {
    %c0_i32 = arith.constant 0 : i32
    %c0_i32_0 = arith.constant 0 : i32
    return %arg0, %c0_i32 : i32, i32
  }
  func.func @transform_1(%arg0: i32) -> (i32, i32, i32) {
    %c0_i32 = arith.constant 0 : i32
    %c0_i32_0 = arith.constant 0 : i32
    %c0_i32_1 = arith.constant 0 : i32
    %c0_i32_2 = arith.constant 0 : i32
    return %c0_i32, %c0_i32_0, %c0_i32_1 : i32, i32, i32
  }
  func.func @transform_2(%arg0: i32) -> (i32, i32, i32) {
    %c0_i32 = arith.constant 0 : i32
    %c0_i32_0 = arith.constant 0 : i32
    %c0_i32_1 = arith.constant 0 : i32
    return %arg0, %c0_i32, %c0_i32_0 : i32, i32, i32
  }
  func.func @transform_3(%arg0: i32) -> (i32, i32, i32) {
    %c0_i32 = arith.constant 0 : i32
    %c0_i32_0 = arith.constant 0 : i32
    %c0_i32_1 = arith.constant 0 : i32
    %c0_i32_2 = arith.constant 0 : i32
    return %c0_i32, %c0_i32_0, %c0_i32_1 : i32, i32, i32
  }
  func.func @transform_4(%arg0: i32) -> (i32, i32, i32) {
    %c0_i32 = arith.constant 0 : i32
    %c0_i32_0 = arith.constant 0 : i32
    %c0_i32_1 = arith.constant 0 : i32
    %c0_i32_2 = arith.constant 0 : i32
    return %c0_i32, %c0_i32_0, %c0_i32_1 : i32, i32, i32
  }
  func.func @transform_5(%arg0: i32) -> (i32, i32, i32) {
    %c0_i32 = arith.constant 0 : i32
    %c0_i32_0 = arith.constant 0 : i32
    %c0_i32_1 = arith.constant 0 : i32
    %c0_i32_2 = arith.constant 0 : i32
    return %c0_i32, %c0_i32_0, %c0_i32_1 : i32, i32, i32
  }
  func.func @transform_6(%arg0: i32) -> (i32, i32, i32) {
    %c0_i32 = arith.constant 0 : i32
    %c0_i32_0 = arith.constant 0 : i32
    %c0_i32_1 = arith.constant 0 : i32
    %c0_i32_2 = arith.constant 0 : i32
    return %c0_i32, %c0_i32_0, %c0_i32_1 : i32, i32, i32
  }
  func.func @transform_7(%arg0: i32) -> (i32, i32, i32) {
    %c0_i32 = arith.constant 0 : i32
    %c0_i32_0 = arith.constant 0 : i32
    %c0_i32_1 = arith.constant 0 : i32
    %c0_i32_2 = arith.constant 0 : i32
    return %c0_i32, %c0_i32_0, %c0_i32_1 : i32, i32, i32
  }
  func.func @transform_8(%arg0: i32) -> (i32, i32, i32) {
    %c0_i32 = arith.constant 0 : i32
    %c0_i32_0 = arith.constant 0 : i32
    %c0_i32_1 = arith.constant 0 : i32
    %c0_i32_2 = arith.constant 0 : i32
    return %c0_i32, %c0_i32_0, %c0_i32_1 : i32, i32, i32
  }
  func.func @transform_9(%arg0: i32) -> (i32, i32) {
    %c0_i32 = arith.constant 0 : i32
    %c0_i32_0 = arith.constant 0 : i32
    %c0_i32_1 = arith.constant 0 : i32
    return %c0_i32, %c0_i32_0 : i32, i32
  }
  func.func @transform_10(%arg0: i32) -> (i32, i32) {
    %c0_i32 = arith.constant 0 : i32
    %c0_i32_0 = arith.constant 0 : i32
    return %arg0, %c0_i32 : i32, i32
  }
}

</mosaic_0001>

<llo_original>
// kernel: _mt5_encoder_jit.1
$region0: #{_mt5_encoder_jit.1}
  #allocation0 [shape = 'u32[]', space=smem, size = 0x4, offset = 0x4, fixed_abs, tag = 'smem constant byte address 0x4 - core index']
  #allocation1 [shape = 'u32[144,128]{1,0:T(1,128)}', space=vmem, size = 0x12000, scoped, tag = 'internal scratch']
  %s0 = inlined_call_operand.vmem [shape: f32[16,64], index: 0, kind: input, shape index: {}]
  %s1 = inlined_call_operand.vmem [shape: f32[4,8,8], index: 1, kind: input, shape index: {}]
  %s2 = inlined_call_operand.vmem [shape: f32[2,1,8], index: 2, kind: input, shape index: {}]
  %s3 = inlined_call_operand.vmem [shape: f32[2,1,64], index: 3, kind: input, shape index: {}]
  %s4 = inlined_call_operand.vmem [shape: bf16[2,64,192], index: 4, kind: input, shape index: {}]
  %s5 = inlined_call_operand.vmem [shape: bf16[2,64,64], index: 5, kind: input, shape index: {}]
  %s6 = inlined_call_operand.vmem [shape: f32[2,1,64], index: 6, kind: input, shape index: {}]
  %s7 = inlined_call_operand.vmem [shape: bf16[2,64,256], index: 7, kind: input, shape index: {}]
  %s8 = inlined_call_operand.vmem [shape: bf16[2,128,64], index: 8, kind: input, shape index: {}]
  %s9 = inlined_call_operand.vmem [shape: f32[1,64], index: 9, kind: input, shape index: {}]
  %s10 = inlined_call_operand.hbm [shape: f32[16,64], index: 10, kind: output, shape index: {}]
  %s11 = sld [smem:[#allocation0]]
  $region73: #{_mt5_encoder_jit.1} parent=0
    _
  %s13 = ssub.s32 1, %s11
  %s14 = scalar_select 0, %s13, %s11
  $region1: #{_mt5_encoder_jit.1} parent=0
    #allocation2 [shape = 'u8[8192]{0}', space=vmem, size = 0x2000, scoped, tag = 'output window, operand 0']
    #allocation3 [shape = 's32[2]{0}', space=sflag, size = 0x8, scoped, tag = 'scoped memory for _mt5_encoder_jit.1']
    %15 = vsyncpa [#allocation3], 0
    %s16 = scalar_lea.sflag [#allocation3], 1
    %17 = vsyncpa %s16, 0
    loop: start=0, step=1, limit=4
    $region2: #{_mt5_encoder_jit.1} parent=1 // loop_pre_header
      _
    $region3: #{_mt5_encoder_jit.1} parent=1 // loop_header
      %s19 = sphi 0, %s23
      %p20 = scmp.ge.s32.totalorder %s19, 4
      %s29 = sphi 0, %s31
      %s32 = sphi 0, %s29
      %s33 = sphi 0, %s32
      %s49 = sphi 0, %s33
      %s53 = sphi 0, %s53
      %s55 = sphi 0, %s53
      %s56 = sphi 0, %s55
      %s70 = sphi 0, %s56
      %s76 = sphi 0, %s78
      %s79 = sphi 0, %s76
      %s80 = sphi 0, %s79
      %s96 = sphi 0, %s80
      %s100 = sphi 0, %s100
      %s102 = sphi 0, %s100
      %s103 = sphi 0, %s102
      %s117 = sphi 0, %s103
      %s121 = sphi 0, %s121
      %s123 = sphi 0, %s121
      %s124 = sphi 0, %s123
      %s138 = sphi 0, %s124
      %s142 = sphi 0, %s142
      %s144 = sphi 0, %s142
      %s145 = sphi 0, %s144
      %s159 = sphi 0, %s145
      %s163 = sphi 0, %s163
      %s165 = sphi 0, %s163
      %s166 = sphi 0, %s165
      %s180 = sphi 0, %s166
      %s184 = sphi 0, %s184
      %s186 = sphi 0, %s184
      %s187 = sphi 0, %s186
      %s201 = sphi 0, %s187
      %s205 = sphi 0, %s205
      %s207 = sphi 0, %s205
      %s208 = sphi 0, %s207
      %s222 = sphi 0, %s208
      %s226 = sphi 0, %s226
      %s228 = sphi 0, %s226
      %s229 = sphi 0, %s228
      %s243 = sphi 0, %s229
      %s249 = sphi 0, %s251
      %s252 = sphi 0, %s249
      %s253 = sphi 0, %s252
      %s269 = sphi 0, %s253
    $region4: #{_mt5_encoder_jit.1} parent=1 // loop_header_branch
      %22 = sbr.rel (%p20) target = $region8
    $region5: #{_mt5_encoder_jit.1} parent=1 // loop_body
      %s24 = ssub.s32 %s19, 1
      %s25 = ssub.s32 %s19, 2
      %s26 = sadd.s32 %s19, 1
      %s27 = ssub.s32 %s19, %s26
      %p28 = scmp.eq.s32.totalorder %s27, 0
      %s30 = sadd.s32 %s29, 1
      %s31 = scalar_select %p28, %s29, %s30
      %p34 = pneg %p28
      %p35 = scmp.eq.s32.totalorder %s19, 1
      %p36 = por %p34, %p35
      %p37 = scmp.ne.s32.totalorder %s29, %s32
      %p38 = scmp.eq.s32.totalorder %s19, 0
      %p39 = por %p37, %p38
      %p40 = scmp.ne.s32.totalorder %s29, %s32
      %p41 = scmp.eq.s32.totalorder %s24, 1
      %p42 = por %p40, %p41
      %p43 = scmp.ne.s32.totalorder %s32, %s33
      %p44 = scmp.eq.s32.totalorder %s24, 0
      %p45 = por %p43, %p44
      %p46 = scmp.ne.s32.totalorder %s32, %s33
      %p47 = scmp.eq.s32.totalorder %s25, 1
      %p48 = por %p46, %p47
      %p50 = scmp.ne.s32.totalorder %s33, %s49
      %p51 = scmp.eq.s32.totalorder %s25, 0
      %p52 = por %p50, %p51
      %s54 = sadd.s32 %s53, 1
      %p57 = scmp.eq.s32.totalorder %s19, 1
      %p58 = scmp.ne.s32.totalorder %s53, %s55
      %p59 = scmp.eq.s32.totalorder %s19, 0
      %p60 = por %p58, %p59
      %p61 = scmp.ne.s32.totalorder %s53, %s55
      %p62 = scmp.eq.s32.totalorder %s24, 1
      %p63 = por %p61, %p62
      %p64 = scmp.ne.s32.totalorder %s55, %s56
      %p65 = scmp.eq.s32.totalorder %s24, 0
      %p66 = por %p64, %p65
      %p67 = scmp.ne.s32.totalorder %s55, %s56
      %p68 = scmp.eq.s32.totalorder %s25, 1
      %p69 = por %p67, %p68
      %p71 = scmp.ne.s32.totalorder %s56, %s70
      %p72 = scmp.eq.s32.totalorder %s25, 0
      %p73 = por %p71, %p72
      %s74 = ssub.s32 %s19, %s26
      %p75 = scmp.eq.s32.totalorder %s74, 0
      %s77 = sadd.s32 %s76, 1
      %s78 = scalar_select %p75, %s76, %s77
      %p81 = pneg %p75
      %p82 = scmp.eq.s32.totalorder %s19, 1
      %p83 = por %p81, %p82
      %p84 = scmp.ne.s32.totalorder %s76, %s79
      %p85 = scmp.eq.s32.totalorder %s19, 0
      %p86 = por %p84, %p85
      %p87 = scmp.ne.s32.totalorder %s76, %s79
      %p88 = scmp.eq.s32.totalorder %s24, 1
      %p89 = por %p87, %p88
      %p90 = scmp.ne.s32.totalorder %s79, %s80
      %p91 = scmp.eq.s32.totalorder %s24, 0
      %p92 = por %p90, %p91
      %p93 = scmp.ne.s32.totalorder %s79, %s80
      %p94 = scmp.eq.s32.totalorder %s25, 1
      %p95 = por %p93, %p94
      %p97 = scmp.ne.s32.totalorder %s80, %s96
      %p98 = scmp.eq.s32.totalorder %s25, 0
      %p99 = por %p97, %p98
      %s101 = sadd.s32 %s100, 1
      %p104 = scmp.eq.s32.totalorder %s19, 1
      %p105 = scmp.ne.s32.totalorder %s100, %s102
      %p106 = scmp.eq.s32.totalorder %s19, 0
      %p107 = por %p105, %p106
      %p108 = scmp.ne.s32.totalorder %s100, %s102
      %p109 = scmp.eq.s32.totalorder %s24, 1
      %p110 = por %p108, %p109
      %p111 = scmp.ne.s32.totalorder %s102, %s103
      %p112 = scmp.eq.s32.totalorder %s24, 0
      %p113 = por %p111, %p112
      %p114 = scmp.ne.s32.totalorder %s102, %s103
      %p115 = scmp.eq.s32.totalorder %s25, 1
      %p116 = por %p114, %p115
      %p118 = scmp.ne.s32.totalorder %s103, %s117
      %p119 = scmp.eq.s32.totalorder %s25, 0
      %p120 = por %p118, %p119
      %s122 = sadd.s32 %s121, 1
      %p125 = scmp.eq.s32.totalorder %s19, 1
      %p126 = scmp.ne.s32.totalorder %s121, %s123
      %p127 = scmp.eq.s32.totalorder %s19, 0
      %p128 = por %p126, %p127
      %p129 = scmp.ne.s32.totalorder %s121, %s123
      %p130 = scmp.eq.s32.totalorder %s24, 1
      %p131 = por %p129, %p130
      %p132 = scmp.ne.s32.totalorder %s123, %s124
      %p133 = scmp.eq.s32.totalorder %s24, 0
      %p134 = por %p132, %p133
      %p135 = scmp.ne.s32.totalorder %s123, %s124
      %p136 = scmp.eq.s32.totalorder %s25, 1
      %p137 = por %p135, %p136
      %p139 = scmp.ne.s32.totalorder %s124, %s138
      %p140 = scmp.eq.s32.totalorder %s25, 0
      %p141 = por %p139, %p140
      %s143 = sadd.s32 %s142, 1
      %p146 = scmp.eq.s32.totalorder %s19, 1
      %p147 = scmp.ne.s32.totalorder %s142, %s144
      %p148 = scmp.eq.s32.totalorder %s19, 0
      %p149 = por %p147, %p148
      %p150 = scmp.ne.s32.totalorder %s142, %s144
      %p151 = scmp.eq.s32.totalorder %s24, 1
      %p152 = por %p150, %p151
      %p153 = scmp.ne.s32.totalorder %s144, %s145
      %p154 = scmp.eq.s32.totalorder %s24, 0
      %p155 = por %p153, %p154
      %p156 = scmp.ne.s32.totalorder %s144, %s145
      %p157 = scmp.eq.s32.totalorder %s25, 1
      %p158 = por %p156, %p157
      %p160 = scmp.ne.s32.totalorder %s145, %s159
      %p161 = scmp.eq.s32.totalorder %s25, 0
      %p162 = por %p160, %p161
      %s164 = sadd.s32 %s163, 1
      %p167 = scmp.eq.s32.totalorder %s19, 1
      %p168 = scmp.ne.s32.totalorder %s163, %s165
      %p169 = scmp.eq.s32.totalorder %s19, 0
      %p170 = por %p168, %p169
      %p171 = scmp.ne.s32.totalorder %s163, %s165
      %p172 = scmp.eq.s32.totalorder %s24, 1
      %p173 = por %p171, %p172
      %p174 = scmp.ne.s32.totalorder %s165, %s166
      %p175 = scmp.eq.s32.totalorder %s24, 0
      %p176 = por %p174, %p175
      %p177 = scmp.ne.s32.totalorder %s165, %s166
      %p178 = scmp.eq.s32.totalorder %s25, 1
      %p179 = por %p177, %p178
      %p181 = scmp.ne.s32.totalorder %s166, %s180
      %p182 = scmp.eq.s32.totalorder %s25, 0
      %p183 = por %p181, %p182
      %s185 = sadd.s32 %s184, 1
      %p188 = scmp.eq.s32.totalorder %s19, 1
      %p189 = scmp.ne.s32.totalorder %s184, %s186
      %p190 = scmp.eq.s32.totalorder %s19, 0
      %p191 = por %p189, %p190
      %p192 = scmp.ne.s32.totalorder %s184, %s186
      %p193 = scmp.eq.s32.totalorder %s24, 1
      %p194 = por %p192, %p193
      %p195 = scmp.ne.s32.totalorder %s186, %s187
      %p196 = scmp.eq.s32.totalorder %s24, 0
      %p197 = por %p195, %p196
      %p198 = scmp.ne.s32.totalorder %s186, %s187
      %p199 = scmp.eq.s32.totalorder %s25, 1
      %p200 = por %p198, %p199
      %p202 = scmp.ne.s32.totalorder %s187, %s201
      %p203 = scmp.eq.s32.totalorder %s25, 0
      %p204 = por %p202, %p203
      %s206 = sadd.s32 %s205, 1
      %p209 = scmp.eq.s32.totalorder %s19, 1
      %p210 = scmp.ne.s32.totalorder %s205, %s207
      %p211 = scmp.eq.s32.totalorder %s19, 0
      %p212 = por %p210, %p211
      %p213 = scmp.ne.s32.totalorder %s205, %s207
      %p214 = scmp.eq.s32.totalorder %s24, 1
      %p215 = por %p213, %p214
      %p216 = scmp.ne.s32.totalorder %s207, %s208
      %p217 = scmp.eq.s32.totalorder %s24, 0
      %p218 = por %p216, %p217
      %p219 = scmp.ne.s32.totalorder %s207, %s208
      %p220 = scmp.eq.s32.totalorder %s25, 1
      %p221 = por %p219, %p220
      %p223 = scmp.ne.s32.totalorder %s208, %s222
      %p224 = scmp.eq.s32.totalorder %s25, 0
      %p225 = por %p223, %p224
      %s227 = sadd.s32 %s226, 1
      %p230 = scmp.eq.s32.totalorder %s19, 1
      %p231 = scmp.ne.s32.totalorder %s226, %s228
      %p232 = scmp.eq.s32.totalorder %s19, 0
      %p233 = por %p231, %p232
      %p234 = scmp.ne.s32.totalorder %s226, %s228
      %p235 = scmp.eq.s32.totalorder %s24, 1
      %p236 = por %p234, %p235
      %p237 = scmp.ne.s32.totalorder %s228, %s229
      %p238 = scmp.eq.s32.totalorder %s24, 0
      %p239 = por %p237, %p238
      %p240 = scmp.ne.s32.totalorder %s228, %s229
      %p241 = scmp.eq.s32.totalorder %s25, 1
      %p242 = por %p240, %p241
      %p244 = scmp.ne.s32.totalorder %s229, %s243
      %p245 = scmp.eq.s32.totalorder %s25, 0
      %p246 = por %p244, %p245
      %s247 = ssub.s32 %s19, %s26
      %p248 = scmp.eq.s32.totalorder %s247, 0
      %s250 = sadd.s32 %s249, 1
      %s251 = scalar_select %p248, %s249, %s250
      %p254 = pneg %p248
      %p255 = scmp.eq.s32.totalorder %s19, 1
      %p256 = por %p254, %p255
      %p257 = scmp.ne.s32.totalorder %s249, %s252
      %p258 = scmp.eq.s32.totalorder %s19, 0
      %p259 = por %p257, %p258
      %p260 = scmp.ne.s32.totalorder %s249, %s252
      %p261 = scmp.eq.s32.totalorder %s24, 1
      %p262 = por %p260, %p261
      %p263 = scmp.ne.s32.totalorder %s252, %s253
      %p264 = scmp.eq.s32.totalorder %s24, 0
      %p265 = por %p263, %p264
      %p266 = scmp.ne.s32.totalorder %s252, %s253
      %p267 = scmp.eq.s32.totalorder %s25, 1
      %p268 = por %p266, %p267
      %p270 = scmp.ne.s32.totalorder %s253, %s269
      %p271 = scmp.eq.s32.totalorder %s25, 0
      %p272 = por %p270, %p271
      %p273 = scmp.le.s32.totalorder 1, %s19
      %p274 = scmp.lt.s32.totalorder %s19, 3
      %p275 = pnand %p273, %p274
      %p276 = pneg %p275
      // Predicated region
      $region9: #{_mt5_encoder_jit.1} parent=5 // pred_check
        _
      $region10: #{_mt5_encoder_jit.1} parent=5 // pred_check_branch
        %278 = sbr.rel (%p275) target = $region12
      $region11: #{_mt5_encoder_jit.1} parent=5 // pred_region
        %s279 = ssub.s32 %s19, 1
        // Predicated region
        $region13: #{_mt5_encoder_jit.1} parent=11 // pred_check
          %p280 = pneg %p66
        $region14: #{_mt5_encoder_jit.1} parent=11 // pred_check_branch
          %282 = sbr.rel (%p280) target = $region16
        $region15: #{_mt5_encoder_jit.1} parent=11 // pred_region
          _
        $region16: #{_mt5_encoder_jit.1} parent=11 // pred_fallthru
          _
        // Predicated region
        $region17: #{_mt5_encoder_jit.1} parent=11 // pred_check
          %p283 = pneg %p113
        $region18: #{_mt5_encoder_jit.1} parent=11 // pred_check_branch
          %285 = sbr.rel (%p283) target = $region20
        $region19: #{_mt5_encoder_jit.1} parent=11 // pred_region
          _
        $region20: #{_mt5_encoder_jit.1} parent=11 // pred_fallthru
          _
        // Predicated region
        $region21: #{_mt5_encoder_jit.1} parent=11 // pred_check
          %p286 = pneg %p134
        $region22: #{_mt5_encoder_jit.1} parent=11 // pred_check_branch
          %288 = sbr.rel (%p286) target = $region24
        $region23: #{_mt5_encoder_jit.1} parent=11 // pred_region
          _
        $region24: #{_mt5_encoder_jit.1} parent=11 // pred_fallthru
          _
        // Predicated region
        $region25: #{_mt5_encoder_jit.1} parent=11 // pred_check
          %p289 = pneg %p155
        $region26: #{_mt5_encoder_jit.1} parent=11 // pred_check_branch
          %291 = sbr.rel (%p289) target = $region28
        $region27: #{_mt5_encoder_jit.1} parent=11 // pred_region
          _
        $region28: #{_mt5_encoder_jit.1} parent=11 // pred_fallthru
          _
        // Predicated region
        $region29: #{_mt5_encoder_jit.1} parent=11 // pred_check
          %p292 = pneg %p176
        $region30: #{_mt5_encoder_jit.1} parent=11 // pred_check_branch
          %294 = sbr.rel (%p292) target = $region32
        $region31: #{_mt5_encoder_jit.1} parent=11 // pred_region
          _
        $region32: #{_mt5_encoder_jit.1} parent=11 // pred_fallthru
          _
        // Predicated region
        $region33: #{_mt5_encoder_jit.1} parent=11 // pred_check
          %p295 = pneg %p197
        $region34: #{_mt5_encoder_jit.1} parent=11 // pred_check_branch
          %297 = sbr.rel (%p295) target = $region36
        $region35: #{_mt5_encoder_jit.1} parent=11 // pred_region
          _
        $region36: #{_mt5_encoder_jit.1} parent=11 // pred_fallthru
          _
        // Predicated region
        $region37: #{_mt5_encoder_jit.1} parent=11 // pred_check
          %p298 = pneg %p218
        $region38: #{_mt5_encoder_jit.1} parent=11 // pred_check_branch
          %300 = sbr.rel (%p298) target = $region40
        $region39: #{_mt5_encoder_jit.1} parent=11 // pred_region
          _
        $region40: #{_mt5_encoder_jit.1} parent=11 // pred_fallthru
          _
        // Predicated region
        $region41: #{_mt5_encoder_jit.1} parent=11 // pred_check
          %p301 = pneg %p239
        $region42: #{_mt5_encoder_jit.1} parent=11 // pred_check_branch
          %303 = sbr.rel (%p301) target = $region44
        $region43: #{_mt5_encoder_jit.1} parent=11 // pred_region
          _
        $region44: #{_mt5_encoder_jit.1} parent=11 // pred_fallthru
          _
      $region12: #{_mt5_encoder_jit.1} parent=5 // pred_fallthru
        _
      %p304 = scmp.lt.s32.totalorder %s19, 2
      // Predicated region
      $region45: #{_mt5_encoder_jit.1} parent=5 // pred_check
        %p305 = pneg %p304
      $region46: #{_mt5_encoder_jit.1} parent=5 // pred_check_branch
        %307 = sbr.rel (%p305) target = $region48
      $region47: #{_mt5_encoder_jit.1} parent=5 // pred_region
        // Predicated region
        $region49: #{_mt5_encoder_jit.1} parent=47 // pred_check
          %p308 = pneg %p39
        $region50: #{_mt5_encoder_jit.1} parent=47 // pred_check_branch
          %310 = sbr.rel (%p308) target = $region52
        $region51: #{_mt5_encoder_jit.1} parent=47 // pred_region
          %p311 = scmp.lt.s32.totalorder %s19, 1
          %s312 = scalar_select %p311, %s19, 1
          %s313 = smul.addr %s312, 8
          %s314 = scalar_lea.vmem %s0, %s313
        $region52: #{_mt5_encoder_jit.1} parent=47 // pred_fallthru
          _
        // Predicated region
        $region53: #{_mt5_encoder_jit.1} parent=47 // pred_check
          %p315 = pneg %p86
        $region54: #{_mt5_encoder_jit.1} parent=47 // pred_check_branch
          %317 = sbr.rel (%p315) target = $region56
        $region55: #{_mt5_encoder_jit.1} parent=47 // pred_region
          %p318 = scmp.lt.s32.totalorder %s19, 1
          %s319 = scalar_select %p318, %s19, 1
          %s320 = scalar_lea.vmem %s2, %s319
        $region56: #{_mt5_encoder_jit.1} parent=47 // pred_fallthru
          _
      $region48: #{_mt5_encoder_jit.1} parent=5 // pred_fallthru
        _
      %p321 = scmp.le.s32.totalorder 1, %s19
      %p322 = scmp.lt.s32.totalorder %s19, 3
      %p323 = pnand %p321, %p322
      %p324 = pneg %p323
      // Predicated region
      $region57: #{_mt5_encoder_jit.1} parent=5 // pred_check
        _
      $region58: #{_mt5_encoder_jit.1} parent=5 // pred_check_branch
        %326 = sbr.rel (%p323) target = $region60
      $region59: #{_mt5_encoder_jit.1} parent=5 // pred_region
        %s327 = ssub.s32 %s19, 1
        %p328 = scmp.lt.s32.totalorder %s24, 1
        %s329 = scalar_select %p328, %s24, 1
        %s330 = smul.addr %s329, 8
        %s331 = scalar_lea.vmem %s0, %s330
        %p332 = pneg %p45
        %p333 = pneg %p42
        %p334 = pneg %p66
        %p335 = pneg %p63
        %p336 = scmp.lt.s32.totalorder %s24, 1
        %s337 = scalar_select %p336, %s24, 1
        %s338 = scalar_lea.vmem %s2, %s337
        %p339 = pneg %p92
        %p340 = pneg %p89
        %p341 = pneg %p113
        %p342 = pneg %p110
        %p343 = pneg %p134
        %p344 = pneg %p131
        %p345 = pneg %p155
        %p346 = pneg %p152
        %p347 = pneg %p176
        %p348 = pneg %p173
        %p349 = pneg %p197
        %p350 = pneg %p194
        %p351 = pneg %p218
        %p352 = pneg %p215
        %p353 = pneg %p239
        %p354 = pneg %p236
        %p355 = pneg %p265
        %p356 = pneg %p262
        %s357 = sand.u32 %s252, 1
        %s358 = scalar_lea.sflag [#allocation3], %s357
        %s359 = sand.u32 %s252, 1
        %s360 = smul.addr %s359, 8
        %s361 = scalar_lea.vmem [#allocation2], %s360
        %p362 = scmp.lt.s32.totalorder %s24, 1
        %s363 = scalar_select %p362, %s24, 1
        %s364 = smul.addr %s363, 8
        %s365 = scalar_lea.vmem %s0, %s364
        %p366 = scmp.lt.s32.totalorder %s24, 1
        %s367 = scalar_select %p366, %s24, 1
        %s368 = scalar_lea.vmem %s2, %s367
        %v370 = vld [vmem:[%s365] sm:$0xff]
        %v371 = vld [vmem:[%s368] sm:$0x1]
        %v372 = vld [vmem:[%s1] sm:$0xff]
        %v373 = vld [vmem:[%s1 + $0x8] sm:$0xff]
        %v374 = vld [vmem:[%s1 + $0x10] sm:$0xff]
        %v375 = vld [vmem:[%s1 + $0x18] sm:$0xff]
        %v376 = vld [vmem:[%s3] sm:$0x1]
        %v377 = vld [vmem:[%s4] sm:$0xff]
        %v378 = vld [vmem:[%s4 + $0x8] sm:$0xff]
        %v379 = vld [vmem:[%s4 + $0x10] sm:$0xff]
        %v380 = vld [vmem:[%s4 + $0x18] sm:$0xff]
        %v381 = vld [vmem:[%s4 + $0x20] sm:$0xff]
        %v382 = vld [vmem:[%s4 + $0x28] sm:$0xff]
        %v383 = vld [vmem:[%s4 + $0x30] sm:$0xff]
        %v384 = vld [vmem:[%s4 + $0x38] sm:$0xff]
        %v385 = vld [vmem:[%s5] sm:$0xf]
        %v386 = vld [vmem:[%s5 + $0x4] sm:$0xf]
        %v387 = vld [vmem:[%s5 + $0x8] sm:$0xf]
        %v388 = vld [vmem:[%s5 + $0xc] sm:$0xf]
        %v389 = vld [vmem:[%s5 + $0x10] sm:$0xf]
        %v390 = vld [vmem:[%s5 + $0x14] sm:$0xf]
        %v391 = vld [vmem:[%s5 + $0x18] sm:$0xf]
        %v392 = vld [vmem:[%s5 + $0x1c] sm:$0xf]
        %v393 = vld [vmem:[%s6] sm:$0x1]
        %v394 = vld [vmem:[%s7] sm:$0xff]
        %v395 = vld [vmem:[%s7 + $0x8] sm:$0xff]
        %v396 = vld [vmem:[%s7 + $0x10] sm:$0xff]
        %v397 = vld [vmem:[%s7 + $0x18] sm:$0xff]
        %v398 = vld [vmem:[%s7 + $0x20] sm:$0xff]
        %v399 = vld [vmem:[%s7 + $0x28] sm:$0xff]
        %v400 = vld [vmem:[%s7 + $0x30] sm:$0xff]
        %v401 = vld [vmem:[%s7 + $0x38] sm:$0xff]
        %v402 = vld [vmem:[%s8] sm:$0xf]
        %v403 = vld [vmem:[%s8 + $0x4] sm:$0xf]
        %v404 = vld [vmem:[%s8 + $0x8] sm:$0xf]
        %v405 = vld [vmem:[%s8 + $0xc] sm:$0xf]
        %v406 = vld [vmem:[%s8 + $0x10] sm:$0xf]
        %v407 = vld [vmem:[%s8 + $0x14] sm:$0xf]
        %v408 = vld [vmem:[%s8 + $0x18] sm:$0xf]
        %v409 = vld [vmem:[%s8 + $0x1c] sm:$0xf]
        %v410 = vld [vmem:[%s8 + $0x20] sm:$0xf]
        %v411 = vld [vmem:[%s8 + $0x24] sm:$0xf]
        %v412 = vld [vmem:[%s8 + $0x28] sm:$0xf]
        %v413 = vld [vmem:[%s8 + $0x2c] sm:$0xf]
        %v414 = vld [vmem:[%s8 + $0x30] sm:$0xf]
        %v415 = vld [vmem:[%s8 + $0x34] sm:$0xf]
        %v416 = vld [vmem:[%s8 + $0x38] sm:$0xf]
        %v417 = vld [vmem:[%s8 + $0x3c] sm:$0xf]
        %v418 = vmul.f32 %v370, %v370
        %vm419 = vcmask 523264
        %v420 = vsel %vm419, %v418, 0.0
        %421 = vadd.xlane.f32.xlu0 %v420
        %v422 = vpop.xlane.xlu0 %421
        %v423 = vrcp.pop 64.0
        %v424 = vmul.f32 %v422, %v423
        %v425 = vadd.f32 %v424, 1e-06
        %v426 = vrsqrt.pop %v425
        %v427 = vmul.f32 %v370, %v426
        %v429 = vlaneseq
        %v430 = vshrl.u32 %v429, 7
        %v431 = vsub.s32 0, %v430
        %v432 = vrot.slane %v376, %v431
        %v434 = vmul.f32 %v427, %v432
        %v435 = vpack.c.bf16 %v434, %v434
        %v444 = vunpack.c.l.b16 %v377
        %v445 = vunpack.c.h.b16 %v377
        %v446 = vunpack.c.l.b16 %v378
        %v447 = vunpack.c.h.b16 %v378
        %v448 = vunpack.c.l.b16 %v379
        %v449 = vunpack.c.h.b16 %v379
        %v450 = vunpack.c.l.b16 %v380
        %v451 = vunpack.c.h.b16 %v380
        %v452 = vunpack.c.l.b16 %v381
        %v453 = vunpack.c.h.b16 %v381
        %v454 = vunpack.c.l.b16 %v382
        %v455 = vunpack.c.h.b16 %v382
        %v456 = vunpack.c.l.b16 %v383
        %v457 = vunpack.c.h.b16 %v383
        %v458 = vunpack.c.l.b16 %v384
        %v459 = vunpack.c.h.b16 %v384
        %v460 = vpack.c.b16 %v446, %v444
        %v461 = vpack.c.b16 %v447, %v445
        %v462 = vpack.c.b16 %v450, %v448
        %v463 = vpack.c.b16 %v451, %v449
        %v464 = vpack.c.b16 %v454, %v452
        %v465 = vpack.c.b16 %v455, %v453
        %v466 = vpack.c.b16 %v458, %v456
        %v467 = vpack.c.b16 %v459, %v457
        %v477 = vsel %vm419, %v435, 0
        %479 = vmatprep.subr.bf16.mxu0 %v461
        %480 = vmatpush1.bf16.msra.mxu0 %v460
        %481 = vmatprep.subr.bf16.mxu0 %v463
        %482 = vmatpush1.bf16.msra.mxu0 %v462
        %483 = vmatprep.subr.bf16.mxu0 %v465
        %484 = vmatpush1.bf16.msra.mxu0 %v464
        %485 = vmatprep.subr.bf16.mxu0 %v467
        %486 = vmatpush1.bf16.msra.mxu0 %v466
        %487 = vmatprep.subr.bf16.mxu0 0
        %488 = vmatpush1.bf16.msra.mxu0 0
        %489 = vmatprep.subr.bf16.mxu0 0
        %490 = vmatpush1.bf16.msra.mxu0 0
        %491 = vmatprep.subr.bf16.mxu0 0
        %492 = vmatpush1.bf16.msra.mxu0 0
        %493 = vmatprep.subr.bf16.mxu0 0
        %494 = vmatpush1.bf16.msra.mxu0 0
        %495 = vmatprep.subr.bf16.mxu0 0
        %496 = vmatpush1.bf16.msra.mxu0 0
        %497 = vmatprep.subr.bf16.mxu0 0
        %498 = vmatpush1.bf16.msra.mxu0 0
        %499 = vmatprep.subr.bf16.mxu0 0
        %500 = vmatpush1.bf16.msra.mxu0 0
        %501 = vmatprep.subr.bf16.mxu0 0
        %502 = vmatpush1.bf16.msra.mxu0 0
        %503 = vmatprep.subr.bf16.mxu0 0
        %504 = vmatpush1.bf16.msra.mxu0 0
        %505 = vmatprep.subr.bf16.mxu0 0
        %506 = vmatpush1.bf16.msra.mxu0 0
        %507 = vmatprep.subr.bf16.mxu0 0
        %508 = vmatpush1.bf16.msra.mxu0 0
        %509 = vmatprep.subr.bf16.mxu0 0
        %510 = vmatpush1.bf16.msra.mxu0 0
        %511 = vmatprep.mubr.bf16.mxu0 0
        %512 = vmatmul.mubr.bf16.gmra.mrb[0].mxu0 %v477
        %v513 = vpop.f32.mrb[0].mxu0
        %v514 = vadd.f32 0.0, %v513
        %v515 = vpop.f32.mrb[0].mxu0
        %v516 = vadd.f32 0.0, %v515
        %v517 = vpop.f32.mrb[0].mxu0
        %v518 = vpop.f32.mrb[0].mxu0
        %519 = vdwg.mxu0
        %v520 = vpack.c.bf16 %v514, %v514
        %522 = vrot.lane.b32.xlu0 %v520, 64
        %v523 = vpop.permute.xlu0 %522
        %vm524 = vcmask 130048
        %v526 = vsel %vm524, %v520, 0
        %v529 = vsel %vm524, %v523, 0
        %531 = vmatprep.subr.bf16.mxu0 0
        %532 = vmatpush1.bf16.xpose.msra.mxu0 %v529
        %533 = vmatprep.subr.bf16.mxu0 0
        %534 = vmatpush1.bf16.xpose.msra.mxu0 0
        %535 = vmatprep.subr.bf16.mxu0 0
        %536 = vmatpush1.bf16.xpose.msra.mxu0 0
        %537 = vmatprep.subr.bf16.mxu0 0
        %538 = vmatpush1.bf16.xpose.msra.mxu0 0
        %539 = vmatprep.subr.bf16.mxu0 0
        %540 = vmatpush1.bf16.xpose.msra.mxu0 0
        %541 = vmatprep.subr.bf16.mxu0 0
        %542 = vmatpush1.bf16.xpose.msra.mxu0 0
        %543 = vmatprep.subr.bf16.mxu0 0
        %544 = vmatpush1.bf16.xpose.msra.mxu0 0
        %545 = vmatprep.subr.bf16.mxu0 0
        %546 = vmatpush1.bf16.xpose.msra.mxu0 0
        %547 = vmatprep.subr.bf16.mxu0 0
        %548 = vmatpush1.bf16.xpose.msra.mxu0 0
        %549 = vmatprep.subr.bf16.mxu0 0
        %550 = vmatpush1.bf16.xpose.msra.mxu0 0
        %551 = vmatprep.subr.bf16.mxu0 0
        %552 = vmatpush1.bf16.xpose.msra.mxu0 0
        %553 = vmatprep.subr.bf16.mxu0 0
        %554 = vmatpush1.bf16.xpose.msra.mxu0 0
        %555 = vmatprep.subr.bf16.mxu0 0
        %556 = vmatpush1.bf16.xpose.msra.mxu0 0
        %557 = vmatprep.subr.bf16.mxu0 0
        %558 = vmatpush1.bf16.xpose.msra.mxu0 0
        %559 = vmatprep.subr.bf16.mxu0 0
        %560 = vmatpush1.bf16.xpose.msra.mxu0 0
        %561 = vmatprep.subr.bf16.mxu0 0
        %562 = vmatpush1.bf16.xpose.msra.mxu0 0
        %563 = vmatprep.mubr.bf16.mxu0 0
        %564 = vmatmul.mubr.bf16.gmra.mrb[0].mxu0 %v526
        %v565 = vpop.f32.mrb[0].mxu0
        %v566 = vadd.f32 %v372, %v565
        %v567 = vpop.f32.mrb[0].mxu0
        %v568 = vpop.f32.mrb[0].mxu0
        %v569 = vpop.f32.mrb[0].mxu0
        %570 = vdwg.mxu0
        %v572 = vlaneseq
        %v573 = vshrl.u32 %v572, 7
        %v574 = vsub.s32 0, %v573
        %v575 = vrot.slane %v371, %v574
        %v577 = vadd.f32 %v566, %v575
        %vm578 = vcmask 64512
        %v579 = vsel %vm578, %v577, -inf
        %580 = vmax.xlane.f32.xlu0 %v579
        %v581 = vpop.xlane.xlu0 %580
        %v582 = vsub.f32 %v577, %v581
        %v583 = vmul.f32 %v582, 1.442695
        %v584 = vpow.pop %v583
        %v585 = vsel %vm578, %v584, 0.0
        %586 = vadd.xlane.f32.xlu0 %v585
        %v587 = vpop.xlane.xlu0 %586
        %v588 = vrcp.pop %v587
        %v589 = vmul.f32 %v584, %v588
        %v590 = vpack.c.bf16 %v589, %v589
        %v591 = vpack.c.bf16 %v516, %v516
        %v593 = vsel %vm578, %v590, 0
        %vm595 = vcmask 1043456
        %v597 = vsel %vm595, %v591, 0
        %599 = vmatprep.subr.bf16.mxu0 0
        %600 = vmatpush1.bf16.msra.mxu0 %v597
        %601 = vmatprep.subr.bf16.mxu0 0
        %602 = vmatpush1.bf16.msra.mxu0 0
        %603 = vmatprep.subr.bf16.mxu0 0
        %604 = vmatpush1.bf16.msra.mxu0 0
        %605 = vmatprep.subr.bf16.mxu0 0
        %606 = vmatpush1.bf16.msra.mxu0 0
        %607 = vmatprep.subr.bf16.mxu0 0
        %608 = vmatpush1.bf16.msra.mxu0 0
        %609 = vmatprep.subr.bf16.mxu0 0
        %610 = vmatpush1.bf16.msra.mxu0 0
        %611 = vmatprep.subr.bf16.mxu0 0
        %612 = vmatpush1.bf16.msra.mxu0 0
        %613 = vmatprep.subr.bf16.mxu0 0
        %614 = vmatpush1.bf16.msra.mxu0 0
        %615 = vmatprep.subr.bf16.mxu0 0
        %616 = vmatpush1.bf16.msra.mxu0 0
        %617 = vmatprep.subr.bf16.mxu0 0
        %618 = vmatpush1.bf16.msra.mxu0 0
        %619 = vmatprep.subr.bf16.mxu0 0
        %620 = vmatpush1.bf16.msra.mxu0 0
        %621 = vmatprep.subr.bf16.mxu0 0
        %622 = vmatpush1.bf16.msra.mxu0 0
        %623 = vmatprep.subr.bf16.mxu0 0
        %624 = vmatpush1.bf16.msra.mxu0 0
        %625 = vmatprep.subr.bf16.mxu0 0
        %626 = vmatpush1.bf16.msra.mxu0 0
        %627 = vmatprep.subr.bf16.mxu0 0
        %628 = vmatpush1.bf16.msra.mxu0 0
        %629 = vmatprep.subr.bf16.mxu0 0
        %630 = vmatpush1.bf16.msra.mxu0 0
        %631 = vmatprep.mubr.bf16.mxu0 0
        %632 = vmatmul.mubr.bf16.gmra.mrb[0].mxu0 %v593
        %v633 = vpop.f32.mrb[0].mxu0
        %v634 = vadd.f32 0.0, %v633
        %v635 = vpop.f32.mrb[0].mxu0
        %v636 = vpop.f32.mrb[0].mxu0
        %v637 = vpop.f32.mrb[0].mxu0
        %638 = vdwg.mxu0
        %v639 = vpack.c.bf16 %v634, %v634
        %640 = vrot.lane.b32.xlu0 %v520, 112
        %v641 = vpop.permute.xlu0 %640
        %642 = vrot.lane.b32.xlu0 %v520, 48
        %v643 = vpop.permute.xlu0 %642
        %v645 = vsel %vm524, %v641, 0
        %v648 = vsel %vm524, %v643, 0
        %650 = vmatprep.subr.bf16.mxu0 0
        %651 = vmatpush1.bf16.xpose.msra.mxu0 %v648
        %652 = vmatprep.subr.bf16.mxu0 0
        %653 = vmatpush1.bf16.xpose.msra.mxu0 0
        %654 = vmatprep.subr.bf16.mxu0 0
        %655 = vmatpush1.bf16.xpose.msra.mxu0 0
        %656 = vmatprep.subr.bf16.mxu0 0
        %657 = vmatpush1.bf16.xpose.msra.mxu0 0
        %658 = vmatprep.subr.bf16.mxu0 0
        %659 = vmatpush1.bf16.xpose.msra.mxu0 0
        %660 = vmatprep.subr.bf16.mxu0 0
        %661 = vmatpush1.bf16.xpose.msra.mxu0 0
        %662 = vmatprep.subr.bf16.mxu0 0
        %663 = vmatpush1.bf16.xpose.msra.mxu0 0
        %664 = vmatprep.subr.bf16.mxu0 0
        %665 = vmatpush1.bf16.xpose.msra.mxu0 0
        %666 = vmatprep.subr.bf16.mxu0 0
        %667 = vmatpush1.bf16.xpose.msra.mxu0 0
        %668 = vmatprep.subr.bf16.mxu0 0
        %669 = vmatpush1.bf16.xpose.msra.mxu0 0
        %670 = vmatprep.subr.bf16.mxu0 0
        %671 = vmatpush1.bf16.xpose.msra.mxu0 0
        %672 = vmatprep.subr.bf16.mxu0 0
        %673 = vmatpush1.bf16.xpose.msra.mxu0 0
        %674 = vmatprep.subr.bf16.mxu0 0
        %675 = vmatpush1.bf16.xpose.msra.mxu0 0
        %676 = vmatprep.subr.bf16.mxu0 0
        %677 = vmatpush1.bf16.xpose.msra.mxu0 0
        %678 = vmatprep.subr.bf16.mxu0 0
        %679 = vmatpush1.bf16.xpose.msra.mxu0 0
        %680 = vmatprep.subr.bf16.mxu0 0
        %681 = vmatpush1.bf16.xpose.msra.mxu0 0
        %682 = vmatprep.mubr.bf16.mxu0 0
        %683 = vmatmul.mubr.bf16.gmra.mrb[0].mxu0 %v645
        %v684 = vpop.f32.mrb[0].mxu0
        %v685 = vadd.f32 %v373, %v684
        %v686 = vpop.f32.mrb[0].mxu0
        %v687 = vpop.f32.mrb[0].mxu0
        %v688 = vpop.f32.mrb[0].mxu0
        %689 = vdwg.mxu0
        %v690 = vadd.f32 %v685, %v575
        %v691 = vsel %vm578, %v690, -inf
        %692 = vmax.xlane.f32.xlu0 %v691
        %v693 = vpop.xlane.xlu0 %692
        %v694 = vsub.f32 %v690, %v693
        %v695 = vmul.f32 %v694, 1.442695
        %v696 = vpow.pop %v695
        %v697 = vsel %vm578, %v696, 0.0
        %698 = vadd.xlane.f32.xlu0 %v697
        %v699 = vpop.xlane.xlu0 %698
        %v700 = vrcp.pop %v699
        %v701 = vmul.f32 %v696, %v700
        %v702 = vpack.c.bf16 %v701, %v701
        %704 = vrot.lane.b32.xlu0 %v591, 112
        %v705 = vpop.permute.xlu0 %704
        %v707 = vsel %vm578, %v702, 0
        %v710 = vsel %vm595, %v705, 0
        %712 = vmatprep.subr.bf16.mxu0 0
        %713 = vmatpush1.bf16.msra.mxu0 %v710
        %714 = vmatprep.subr.bf16.mxu0 0
        %715 = vmatpush1.bf16.msra.mxu0 0
        %716 = vmatprep.subr.bf16.mxu0 0
        %717 = vmatpush1.bf16.msra.mxu0 0
        %718 = vmatprep.subr.bf16.mxu0 0
        %719 = vmatpush1.bf16.msra.mxu0 0
        %720 = vmatprep.subr.bf16.mxu0 0
        %721 = vmatpush1.bf16.msra.mxu0 0
        %722 = vmatprep.subr.bf16.mxu0 0
        %723 = vmatpush1.bf16.msra.mxu0 0
        %724 = vmatprep.subr.bf16.mxu0 0
        %725 = vmatpush1.bf16.msra.mxu0 0
        %726 = vmatprep.subr.bf16.mxu0 0
        %727 = vmatpush1.bf16.msra.mxu0 0
        %728 = vmatprep.subr.bf16.mxu0 0
        %729 = vmatpush1.bf16.msra.mxu0 0
        %730 = vmatprep.subr.bf16.mxu0 0
        %731 = vmatpush1.bf16.msra.mxu0 0
        %732 = vmatprep.subr.bf16.mxu0 0
        %733 = vmatpush1.bf16.msra.mxu0 0
        %734 = vmatprep.subr.bf16.mxu0 0
        %735 = vmatpush1.bf16.msra.mxu0 0
        %736 = vmatprep.subr.bf16.mxu0 0
        %737 = vmatpush1.bf16.msra.mxu0 0
        %738 = vmatprep.subr.bf16.mxu0 0
        %739 = vmatpush1.bf16.msra.mxu0 0
        %740 = vmatprep.subr.bf16.mxu0 0
        %741 = vmatpush1.bf16.msra.mxu0 0
        %742 = vmatprep.subr.bf16.mxu0 0
        %743 = vmatpush1.bf16.msra.mxu0 0
        %744 = vmatprep.mubr.bf16.mxu0 0
        %745 = vmatmul.mubr.bf16.gmra.mrb[0].mxu0 %v707
        %v746 = vpop.f32.mrb[0].mxu0
        %v747 = vadd.f32 0.0, %v746
        %v748 = vpop.f32.mrb[0].mxu0
        %v749 = vpop.f32.mrb[0].mxu0
        %v750 = vpop.f32.mrb[0].mxu0
        %751 = vdwg.mxu0
        %v752 = vpack.c.bf16 %v747, %v747
        %v755 = vunpack.c.l.b16 %v387
        %v756 = vunpack.c.l.b16 %v388
        %v757 = vpack.c.b16 %v756, %v755
        %v760 = vsel %vm524, %v752, 0
        %762 = vmatprep.subr.bf16.mxu0 0
        %763 = vmatpush1.bf16.msra.mxu0 %v757
        %764 = vmatprep.subr.bf16.mxu0 0
        %765 = vmatpush1.bf16.msra.mxu0 0
        %766 = vmatprep.subr.bf16.mxu0 0
        %767 = vmatpush1.bf16.msra.mxu0 0
        %768 = vmatprep.subr.bf16.mxu0 0
        %769 = vmatpush1.bf16.msra.mxu0 0
        %770 = vmatprep.subr.bf16.mxu0 0
        %771 = vmatpush1.bf16.msra.mxu0 0
        %772 = vmatprep.subr.bf16.mxu0 0
        %773 = vmatpush1.bf16.msra.mxu0 0
        %774 = vmatprep.subr.bf16.mxu0 0
        %775 = vmatpush1.bf16.msra.mxu0 0
        %776 = vmatprep.subr.bf16.mxu0 0
        %777 = vmatpush1.bf16.msra.mxu0 0
        %778 = vmatprep.subr.bf16.mxu0 0
        %779 = vmatpush1.bf16.msra.mxu0 0
        %780 = vmatprep.subr.bf16.mxu0 0
        %781 = vmatpush1.bf16.msra.mxu0 0
        %782 = vmatprep.subr.bf16.mxu0 0
        %783 = vmatpush1.bf16.msra.mxu0 0
        %784 = vmatprep.subr.bf16.mxu0 0
        %785 = vmatpush1.bf16.msra.mxu0 0
        %786 = vmatprep.subr.bf16.mxu0 0
        %787 = vmatpush1.bf16.msra.mxu0 0
        %788 = vmatprep.subr.bf16.mxu0 0
        %789 = vmatpush1.bf16.msra.mxu0 0
        %790 = vmatprep.subr.bf16.mxu0 0
        %791 = vmatpush1.bf16.msra.mxu0 0
        %792 = vmatprep.subr.bf16.mxu0 0
        %793 = vmatpush1.bf16.msra.mxu0 0
        %794 = vmatprep.mubr.bf16.mxu0 0
        %795 = vmatmul.mubr.bf16.gmra.mrb[0].mxu0 %v760
        %v796 = vpop.f32.mrb[0].mxu0
        %v797 = vadd.f32 0.0, %v796
        %v798 = vpop.f32.mrb[0].mxu0
        %v799 = vpop.f32.mrb[0].mxu0
        %v800 = vpop.f32.mrb[0].mxu0
        %801 = vdwg.mxu0
        %v804 = vunpack.c.l.b16 %v385
        %v805 = vunpack.c.l.b16 %v386
        %v806 = vpack.c.b16 %v805, %v804
        %v809 = vsel %vm524, %v639, 0
        %811 = vmatprep.subr.bf16.mxu0 0
        %812 = vmatpush1.bf16.msra.mxu0 %v806
        %813 = vmatprep.subr.bf16.mxu0 0
        %814 = vmatpush1.bf16.msra.mxu0 0
        %815 = vmatprep.subr.bf16.mxu0 0
        %816 = vmatpush1.bf16.msra.mxu0 0
        %817 = vmatprep.subr.bf16.mxu0 0
        %818 = vmatpush1.bf16.msra.mxu0 0
        %819 = vmatprep.subr.bf16.mxu0 0
        %820 = vmatpush1.bf16.msra.mxu0 0
        %821 = vmatprep.subr.bf16.mxu0 0
        %822 = vmatpush1.bf16.msra.mxu0 0
        %823 = vmatprep.subr.bf16.mxu0 0
        %824 = vmatpush1.bf16.msra.mxu0 0
        %825 = vmatprep.subr.bf16.mxu0 0
        %826 = vmatpush1.bf16.msra.mxu0 0
        %827 = vmatprep.subr.bf16.mxu0 0
        %828 = vmatpush1.bf16.msra.mxu0 0
        %829 = vmatprep.subr.bf16.mxu0 0
        %830 = vmatpush1.bf16.msra.mxu0 0
        %831 = vmatprep.subr.bf16.mxu0 0
        %832 = vmatpush1.bf16.msra.mxu0 0
        %833 = vmatprep.subr.bf16.mxu0 0
        %834 = vmatpush1.bf16.msra.mxu0 0
        %835 = vmatprep.subr.bf16.mxu0 0
        %836 = vmatpush1.bf16.msra.mxu0 0
        %837 = vmatprep.subr.bf16.mxu0 0
        %838 = vmatpush1.bf16.msra.mxu0 0
        %839 = vmatprep.subr.bf16.mxu0 0
        %840 = vmatpush1.bf16.msra.mxu0 0
        %841 = vmatprep.subr.bf16.mxu0 0
        %842 = vmatpush1.bf16.msra.mxu0 0
        %843 = vmatprep.mubr.bf16.mxu0 0
        %844 = vmatmul.mubr.bf16.gmra.mrb[0].mxu0 %v809
        %v845 = vpop.f32.mrb[0].mxu0
        %v846 = vadd.f32 %v797, %v845
        %v847 = vpop.f32.mrb[0].mxu0
        %v848 = vpop.f32.mrb[0].mxu0
        %v849 = vpop.f32.mrb[0].mxu0
        %850 = vdwg.mxu0
        %851 = vrot.lane.b32.xlu0 %v520, 96
        %v852 = vpop.permute.xlu0 %851
        %853 = vrot.lane.b32.xlu0 %v520, 32
        %v854 = vpop.permute.xlu0 %853
        %v856 = vsel %vm524, %v852, 0
        %v859 = vsel %vm524, %v854, 0
        %861 = vmatprep.subr.bf16.mxu0 0
        %862 = vmatpush1.bf16.xpose.msra.mxu0 %v859
        %863 = vmatprep.subr.bf16.mxu0 0
        %864 = vmatpush1.bf16.xpose.msra.mxu0 0
        %865 = vmatprep.subr.bf16.mxu0 0
        %866 = vmatpush1.bf16.xpose.msra.mxu0 0
        %867 = vmatprep.subr.bf16.mxu0 0
        %868 = vmatpush1.bf16.xpose.msra.mxu0 0
        %869 = vmatprep.subr.bf16.mxu0 0
        %870 = vmatpush1.bf16.xpose.msra.mxu0 0
        %871 = vmatprep.subr.bf16.mxu0 0
        %872 = vmatpush1.bf16.xpose.msra.mxu0 0
        %873 = vmatprep.subr.bf16.mxu0 0
        %874 = vmatpush1.bf16.xpose.msra.mxu0 0
        %875 = vmatprep.subr.bf16.mxu0 0
        %876 = vmatpush1.bf16.xpose.msra.mxu0 0
        %877 = vmatprep.subr.bf16.mxu0 0
        %878 = vmatpush1.bf16.xpose.msra.mxu0 0
        %879 = vmatprep.subr.bf16.mxu0 0
        %880 = vmatpush1.bf16.xpose.msra.mxu0 0
        %881 = vmatprep.subr.bf16.mxu0 0
        %882 = vmatpush1.bf16.xpose.msra.mxu0 0
        %883 = vmatprep.subr.bf16.mxu0 0
        %884 = vmatpush1.bf16.xpose.msra.mxu0 0
        %885 = vmatprep.subr.bf16.mxu0 0
        %886 = vmatpush1.bf16.xpose.msra.mxu0 0
        %887 = vmatprep.subr.bf16.mxu0 0
        %888 = vmatpush1.bf16.xpose.msra.mxu0 0
        %889 = vmatprep.subr.bf16.mxu0 0
        %890 = vmatpush1.bf16.xpose.msra.mxu0 0
        %891 = vmatprep.subr.bf16.mxu0 0
        %892 = vmatpush1.bf16.xpose.msra.mxu0 0
        %893 = vmatprep.mubr.bf16.mxu0 0
        %894 = vmatmul.mubr.bf16.gmra.mrb[0].mxu0 %v856
        %v895 = vpop.f32.mrb[0].mxu0
        %v896 = vadd.f32 %v374, %v895
        %v897 = vpop.f32.mrb[0].mxu0
        %v898 = vpop.f32.mrb[0].mxu0
        %v899 = vpop.f32.mrb[0].mxu0
        %900 = vdwg.mxu0
        %v901 = vadd.f32 %v896, %v575
        %v902 = vsel %vm578, %v901, -inf
        %903 = vmax.xlane.f32.xlu0 %v902
        %v904 = vpop.xlane.xlu0 %903
        %v905 = vsub.f32 %v901, %v904
        %v906 = vmul.f32 %v905, 1.442695
        %v907 = vpow.pop %v906
        %v908 = vsel %vm578, %v907, 0.0
        %909 = vadd.xlane.f32.xlu0 %v908
        %v910 = vpop.xlane.xlu0 %909
        %v911 = vrcp.pop %v910
        %v912 = vmul.f32 %v907, %v911
        %v913 = vpack.c.bf16 %v912, %v912
        %914 = vrot.lane.b32.xlu0 %v591, 96
        %v915 = vpop.permute.xlu0 %914
        %v917 = vsel %vm578, %v913, 0
        %v920 = vsel %vm595, %v915, 0
        %922 = vmatprep.subr.bf16.mxu0 0
        %923 = vmatpush1.bf16.msra.mxu0 %v920
        %924 = vmatprep.subr.bf16.mxu0 0
        %925 = vmatpush1.bf16.msra.mxu0 0
        %926 = vmatprep.subr.bf16.mxu0 0
        %927 = vmatpush1.bf16.msra.mxu0 0
        %928 = vmatprep.subr.bf16.mxu0 0
        %929 = vmatpush1.bf16.msra.mxu0 0
        %930 = vmatprep.subr.bf16.mxu0 0
        %931 = vmatpush1.bf16.msra.mxu0 0
        %932 = vmatprep.subr.bf16.mxu0 0
        %933 = vmatpush1.bf16.msra.mxu0 0
        %934 = vmatprep.subr.bf16.mxu0 0
        %935 = vmatpush1.bf16.msra.mxu0 0
        %936 = vmatprep.subr.bf16.mxu0 0
        %937 = vmatpush1.bf16.msra.mxu0 0
        %938 = vmatprep.subr.bf16.mxu0 0
        %939 = vmatpush1.bf16.msra.mxu0 0
        %940 = vmatprep.subr.bf16.mxu0 0
        %941 = vmatpush1.bf16.msra.mxu0 0
        %942 = vmatprep.subr.bf16.mxu0 0
        %943 = vmatpush1.bf16.msra.mxu0 0
        %944 = vmatprep.subr.bf16.mxu0 0
        %945 = vmatpush1.bf16.msra.mxu0 0
        %946 = vmatprep.subr.bf16.mxu0 0
        %947 = vmatpush1.bf16.msra.mxu0 0
        %948 = vmatprep.subr.bf16.mxu0 0
        %949 = vmatpush1.bf16.msra.mxu0 0
        %950 = vmatprep.subr.bf16.mxu0 0
        %951 = vmatpush1.bf16.msra.mxu0 0
        %952 = vmatprep.subr.bf16.mxu0 0
        %953 = vmatpush1.bf16.msra.mxu0 0
        %954 = vmatprep.mubr.bf16.mxu0 0
        %955 = vmatmul.mubr.bf16.gmra.mrb[0].mxu0 %v917
        %v956 = vpop.f32.mrb[0].mxu0
        %v957 = vadd.f32 0.0, %v956
        %v958 = vpop.f32.mrb[0].mxu0
        %v959 = vpop.f32.mrb[0].mxu0
        %v960 = vpop.f32.mrb[0].mxu0
        %961 = vdwg.mxu0
        %v962 = vpack.c.bf16 %v957, %v957
        %v965 = vunpack.c.l.b16 %v389
        %v966 = vunpack.c.l.b16 %v390
        %v967 = vpack.c.b16 %v966, %v965
        %v970 = vsel %vm524, %v962, 0
        %972 = vmatprep.subr.bf16.mxu0 0
        %973 = vmatpush1.bf16.msra.mxu0 %v967
        %974 = vmatprep.subr.bf16.mxu0 0
        %975 = vmatpush1.bf16.msra.mxu0 0
        %976 = vmatprep.subr.bf16.mxu0 0
        %977 = vmatpush1.bf16.msra.mxu0 0
        %978 = vmatprep.subr.bf16.mxu0 0
        %979 = vmatpush1.bf16.msra.mxu0 0
        %980 = vmatprep.subr.bf16.mxu0 0
        %981 = vmatpush1.bf16.msra.mxu0 0
        %982 = vmatprep.subr.bf16.mxu0 0
        %983 = vmatpush1.bf16.msra.mxu0 0
        %984 = vmatprep.subr.bf16.mxu0 0
        %985 = vmatpush1.bf16.msra.mxu0 0
        %986 = vmatprep.subr.bf16.mxu0 0
        %987 = vmatpush1.bf16.msra.mxu0 0
        %988 = vmatprep.subr.bf16.mxu0 0
        %989 = vmatpush1.bf16.msra.mxu0 0
        %990 = vmatprep.subr.bf16.mxu0 0
        %991 = vmatpush1.bf16.msra.mxu0 0
        %992 = vmatprep.subr.bf16.mxu0 0
        %993 = vmatpush1.bf16.msra.mxu0 0
        %994 = vmatprep.subr.bf16.mxu0 0
        %995 = vmatpush1.bf16.msra.mxu0 0
        %996 = vmatprep.subr.bf16.mxu0 0
        %997 = vmatpush1.bf16.msra.mxu0 0
        %998 = vmatprep.subr.bf16.mxu0 0
        %999 = vmatpush1.bf16.msra.mxu0 0
        %1000 = vmatprep.subr.bf16.mxu0 0
        %1001 = vmatpush1.bf16.msra.mxu0 0
        %1002 = vmatprep.subr.bf16.mxu0 0
        %1003 = vmatpush1.bf16.msra.mxu0 0
        %1004 = vmatprep.mubr.bf16.mxu0 0
        %1005 = vmatmul.mubr.bf16.gmra.mrb[0].mxu0 %v970
        %v1006 = vpop.f32.mrb[0].mxu0
        %v1007 = vadd.f32 0.0, %v1006
        %v1008 = vpop.f32.mrb[0].mxu0
        %v1009 = vpop.f32.mrb[0].mxu0
        %v1010 = vpop.f32.mrb[0].mxu0
        %1011 = vdwg.mxu0
        %v1012 = vadd.f32 %v846, %v1007
        %1013 = vrot.lane.b32.xlu0 %v520, 80
        %v1014 = vpop.permute.xlu0 %1013
        %1015 = vrot.lane.b32.xlu0 %v520, 16
        %v1016 = vpop.permute.xlu0 %1015
        %v1018 = vsel %vm524, %v1014, 0
        %v1021 = vsel %vm524, %v1016, 0
        %1023 = vmatprep.subr.bf16.mxu0 0
        %1024 = vmatpush1.bf16.xpose.msra.mxu0 %v1021
        %1025 = vmatprep.subr.bf16.mxu0 0
        %1026 = vmatpush1.bf16.xpose.msra.mxu0 0
        %1027 = vmatprep.subr.bf16.mxu0 0
        %1028 = vmatpush1.bf16.xpose.msra.mxu0 0
        %1029 = vmatprep.subr.bf16.mxu0 0
        %1030 = vmatpush1.bf16.xpose.msra.mxu0 0
        %1031 = vmatprep.subr.bf16.mxu0 0
        %1032 = vmatpush1.bf16.xpose.msra.mxu0 0
        %1033 = vmatprep.subr.bf16.mxu0 0
        %1034 = vmatpush1.bf16.xpose.msra.mxu0 0
        %1035 = vmatprep.subr.bf16.mxu0 0
        %1036 = vmatpush1.bf16.xpose.msra.mxu0 0
        %1037 = vmatprep.subr.bf16.mxu0 0
        %1038 = vmatpush1.bf16.xpose.msra.mxu0 0
        %1039 = vmatprep.subr.bf16.mxu0 0
        %1040 = vmatpush1.bf16.xpose.msra.mxu0 0
        %1041 = vmatprep.subr.bf16.mxu0 0
        %1042 = vmatpush1.bf16.xpose.msra.mxu0 0
        %1043 = vmatprep.subr.bf16.mxu0 0
        %1044 = vmatpush1.bf16.xpose.msra.mxu0 0
        %1045 = vmatprep.subr.bf16.mxu0 0
        %1046 = vmatpush1.bf16.xpose.msra.mxu0 0
        %1047 = vmatprep.subr.bf16.mxu0 0
        %1048 = vmatpush1.bf16.xpose.msra.mxu0 0
        %1049 = vmatprep.subr.bf16.mxu0 0
        %1050 = vmatpush1.bf16.xpose.msra.mxu0 0
        %1051 = vmatprep.subr.bf16.mxu0 0
        %1052 = vmatpush1.bf16.xpose.msra.mxu0 0
        %1053 = vmatprep.subr.bf16.mxu0 0
        %1054 = vmatpush1.bf16.xpose.msra.mxu0 0
        %1055 = vmatprep.mubr.bf16.mxu0 0
        %1056 = vmatmul.mubr.bf16.gmra.mrb[0].mxu0 %v1018
        %v1057 = vpop.f32.mrb[0].mxu0
        %v1058 = vadd.f32 %v375, %v1057
        %v1059 = vpop.f32.mrb[0].mxu0
        %v1060 = vpop.f32.mrb[0].mxu0
        %v1061 = vpop.f32.mrb[0].mxu0
        %1062 = vdwg.mxu0
        %v1063 = vadd.f32 %v1058, %v575
        %v1064 = vsel %vm578, %v1063, -inf
        %1065 = vmax.xlane.f32.xlu0 %v1064
        %v1066 = vpop.xlane.xlu0 %1065
        %v1067 = vsub.f32 %v1063, %v1066
        %v1068 = vmul.f32 %v1067, 1.442695
        %v1069 = vpow.pop %v1068
        %v1070 = vsel %vm578, %v1069, 0.0
        %1071 = vadd.xlane.f32.xlu0 %v1070
        %v1072 = vpop.xlane.xlu0 %1071
        %v1073 = vrcp.pop %v1072
        %v1074 = vmul.f32 %v1069, %v1073
        %v1075 = vpack.c.bf16 %v1074, %v1074
        %1076 = vrot.lane.b32.xlu0 %v591, 80
        %v1077 = vpop.permute.xlu0 %1076
        %v1079 = vsel %vm578, %v1075, 0
        %v1082 = vsel %vm595, %v1077, 0
        %1084 = vmatprep.subr.bf16.mxu0 0
        %1085 = vmatpush1.bf16.msra.mxu0 %v1082
        %1086 = vmatprep.subr.bf16.mxu0 0
        %1087 = vmatpush1.bf16.msra.mxu0 0
        %1088 = vmatprep.subr.bf16.mxu0 0
        %1089 = vmatpush1.bf16.msra.mxu0 0
        %1090 = vmatprep.subr.bf16.mxu0 0
        %1091 = vmatpush1.bf16.msra.mxu0 0
        %1092 = vmatprep.subr.bf16.mxu0 0
        %1093 = vmatpush1.bf16.msra.mxu0 0
        %1094 = vmatprep.subr.bf16.mxu0 0
        %1095 = vmatpush1.bf16.msra.mxu0 0
        %1096 = vmatprep.subr.bf16.mxu0 0
        %1097 = vmatpush1.bf16.msra.mxu0 0
        %1098 = vmatprep.subr.bf16.mxu0 0
        %1099 = vmatpush1.bf16.msra.mxu0 0
        %1100 = vmatprep.subr.bf16.mxu0 0
        %1101 = vmatpush1.bf16.msra.mxu0 0
        %1102 = vmatprep.subr.bf16.mxu0 0
        %1103 = vmatpush1.bf16.msra.mxu0 0
        %1104 = vmatprep.subr.bf16.mxu0 0
        %1105 = vmatpush1.bf16.msra.mxu0 0
        %1106 = vmatprep.subr.bf16.mxu0 0
        %1107 = vmatpush1.bf16.msra.mxu0 0
        %1108 = vmatprep.subr.bf16.mxu0 0
        %1109 = vmatpush1.bf16.msra.mxu0 0
        %1110 = vmatprep.subr.bf16.mxu0 0
        %1111 = vmatpush1.bf16.msra.mxu0 0
        %1112 = vmatprep.subr.bf16.mxu0 0
        %1113 = vmatpush1.bf16.msra.mxu0 0
        %1114 = vmatprep.subr.bf16.mxu0 0
        %1115 = vmatpush1.bf16.msra.mxu0 0
        %1116 = vmatprep.mubr.bf16.mxu0 0
        %1117 = vmatmul.mubr.bf16.gmra.mrb[0].mxu0 %v1079
        %v1118 = vpop.f32.mrb[0].mxu0
        %v1119 = vadd.f32 0.0, %v1118
        %v1120 = vpop.f32.mrb[0].mxu0
        %v1121 = vpop.f32.mrb[0].mxu0
        %v1122 = vpop.f32.mrb[0].mxu0
        %1123 = vdwg.mxu0
        %v1124 = vpack.c.bf16 %v1119, %v1119
        %v1127 = vunpack.c.l.b16 %v391
        %v1128 = vunpack.c.l.b16 %v392
        %v1129 = vpack.c.b16 %v1128, %v1127
        %v1132 = vsel %vm524, %v1124, 0
        %1134 = vmatprep.subr.bf16.mxu0 0
        %1135 = vmatpush1.bf16.msra.mxu0 %v1129
        %1136 = vmatprep.subr.bf16.mxu0 0
        %1137 = vmatpush1.bf16.msra.mxu0 0
        %1138 = vmatprep.subr.bf16.mxu0 0
        %1139 = vmatpush1.bf16.msra.mxu0 0
        %1140 = vmatprep.subr.bf16.mxu0 0
        %1141 = vmatpush1.bf16.msra.mxu0 0
        %1142 = vmatprep.subr.bf16.mxu0 0
        %1143 = vmatpush1.bf16.msra.mxu0 0
        %1144 = vmatprep.subr.bf16.mxu0 0
        %1145 = vmatpush1.bf16.msra.mxu0 0
        %1146 = vmatprep.subr.bf16.mxu0 0
        %1147 = vmatpush1.bf16.msra.mxu0 0
        %1148 = vmatprep.subr.bf16.mxu0 0
        %1149 = vmatpush1.bf16.msra.mxu0 0
        %1150 = vmatprep.subr.bf16.mxu0 0
        %1151 = vmatpush1.bf16.msra.mxu0 0
        %1152 = vmatprep.subr.bf16.mxu0 0
        %1153 = vmatpush1.bf16.msra.mxu0 0
        %1154 = vmatprep.subr.bf16.mxu0 0
        %1155 = vmatpush1.bf16.msra.mxu0 0
        %1156 = vmatprep.subr.bf16.mxu0 0
        %1157 = vmatpush1.bf16.msra.mxu0 0
        %1158 = vmatprep.subr.bf16.mxu0 0
        %1159 = vmatpush1.bf16.msra.mxu0 0
        %1160 = vmatprep.subr.bf16.mxu0 0
        %1161 = vmatpush1.bf16.msra.mxu0 0
        %1162 = vmatprep.subr.bf16.mxu0 0
        %1163 = vmatpush1.bf16.msra.mxu0 0
        %1164 = vmatprep.subr.bf16.mxu0 0
        %1165 = vmatpush1.bf16.msra.mxu0 0
        %1166 = vmatprep.mubr.bf16.mxu0 0
        %1167 = vmatmul.mubr.bf16.gmra.mrb[0].mxu0 %v1132
        %v1168 = vpop.f32.mrb[0].mxu0
        %v1169 = vadd.f32 0.0, %v1168
        %v1170 = vpop.f32.mrb[0].mxu0
        %v1171 = vpop.f32.mrb[0].mxu0
        %v1172 = vpop.f32.mrb[0].mxu0
        %1173 = vdwg.mxu0
        %v1174 = vadd.f32 %v1012, %v1169
        %v1175 = vadd.f32 %v370, %v1174
        %v1176 = vmul.f32 %v1175, %v1175
        %v1177 = vsel %vm419, %v1176, 0.0
        %1178 = vadd.xlane.f32.xlu0 %v1177
        %v1179 = vpop.xlane.xlu0 %1178
        %v1180 = vmul.f32 %v1179, %v423
        %v1181 = vadd.f32 %v1180, 1e-06
        %v1182 = vrsqrt.pop %v1181
        %v1183 = vmul.f32 %v1175, %v1182
        %v1185 = vlaneseq
        %v1186 = vshrl.u32 %v1185, 7
        %v1187 = vsub.s32 0, %v1186
        %v1188 = vrot.slane %v393, %v1187
        %v1190 = vmul.f32 %v1183, %v1188
        %v1191 = vpack.c.bf16 %v1190, %v1190
        %v1200 = vunpack.c.l.b16 %v394
        %v1201 = vunpack.c.h.b16 %v394
        %v1202 = vunpack.c.l.b16 %v395
        %v1203 = vunpack.c.h.b16 %v395
        %v1204 = vunpack.c.l.b16 %v396
        %v1205 = vunpack.c.h.b16 %v396
        %v1206 = vunpack.c.l.b16 %v397
        %v1207 = vunpack.c.h.b16 %v397
        %v1208 = vunpack.c.l.b16 %v398
        %v1209 = vunpack.c.h.b16 %v398
        %v1210 = vunpack.c.l.b16 %v399
        %v1211 = vunpack.c.h.b16 %v399
        %v1212 = vunpack.c.l.b16 %v400
        %v1213 = vunpack.c.h.b16 %v400
        %v1214 = vunpack.c.l.b16 %v401
        %v1215 = vunpack.c.h.b16 %v401
        %v1216 = vpack.c.b16 %v1202, %v1200
        %v1217 = vpack.c.b16 %v1203, %v1201
        %v1218 = vpack.c.b16 %v1206, %v1204
        %v1219 = vpack.c.b16 %v1207, %v1205
        %v1220 = vpack.c.b16 %v1210, %v1208
        %v1221 = vpack.c.b16 %v1211, %v1209
        %v1222 = vpack.c.b16 %v1214, %v1212
        %v1223 = vpack.c.b16 %v1215, %v1213
        %v1233 = vsel %vm419, %v1191, 0
        %1235 = vmatprep.subr.bf16.mxu0 %v1217
        %1236 = vmatpush1.bf16.msra.mxu0 %v1216
        %1237 = vmatprep.subr.bf16.mxu0 %v1219
        %1238 = vmatpush1.bf16.msra.mxu0 %v1218
        %1239 = vmatprep.subr.bf16.mxu0 %v1221
        %1240 = vmatpush1.bf16.msra.mxu0 %v1220
        %1241 = vmatprep.subr.bf16.mxu0 %v1223
        %1242 = vmatpush1.bf16.msra.mxu0 %v1222
        %1243 = vmatprep.subr.bf16.mxu0 0
        %1244 = vmatpush1.bf16.msra.mxu0 0
        %1245 = vmatprep.subr.bf16.mxu0 0
        %1246 = vmatpush1.bf16.msra.mxu0 0
        %1247 = vmatprep.subr.bf16.mxu0 0
        %1248 = vmatpush1.bf16.msra.mxu0 0
        %1249 = vmatprep.subr.bf16.mxu0 0
        %1250 = vmatpush1.bf16.msra.mxu0 0
        %1251 = vmatprep.subr.bf16.mxu0 0
        %1252 = vmatpush1.bf16.msra.mxu0 0
        %1253 = vmatprep.subr.bf16.mxu0 0
        %1254 = vmatpush1.bf16.msra.mxu0 0
        %1255 = vmatprep.subr.bf16.mxu0 0
        %1256 = vmatpush1.bf16.msra.mxu0 0
        %1257 = vmatprep.subr.bf16.mxu0 0
        %1258 = vmatpush1.bf16.msra.mxu0 0
        %1259 = vmatprep.subr.bf16.mxu0 0
        %1260 = vmatpush1.bf16.msra.mxu0 0
        %1261 = vmatprep.subr.bf16.mxu0 0
        %1262 = vmatpush1.bf16.msra.mxu0 0
        %1263 = vmatprep.subr.bf16.mxu0 0
        %1264 = vmatpush1.bf16.msra.mxu0 0
        %1265 = vmatprep.subr.bf16.mxu0 0
        %1266 = vmatpush1.bf16.msra.mxu0 0
        %1267 = vmatprep.mubr.bf16.mxu0 0
        %1268 = vmatmul.mubr.bf16.gmra.mrb[0].mxu0 %v1233
        %v1269 = vpop.f32.mrb[0].mxu0
        %v1270 = vadd.f32 0.0, %v1269
        %v1271 = vpop.f32.mrb[0].mxu0
        %v1272 = vadd.f32 0.0, %v1271
        %v1273 = vpop.f32.mrb[0].mxu0
        %v1274 = vpop.f32.mrb[0].mxu0
        %1275 = vdwg.mxu0
        %v1276 = vmul.f32 %v1270, 0.5
        %v1277 = vmul.f32 %v1270, 0.044715
        %v1278 = vmul.f32 %v1277, %v1270
        %v1279 = vmul.f32 %v1278, %v1270
        %v1280 = vadd.f32 %v1270, %v1279
        %v1281 = vmul.f32 %v1280, 0.7978846
        %v1282 = vtanh.pop %v1281
        %v1283 = vadd.f32 %v1282, 1.0
        %v1284 = vmul.f32 %v1276, %v1283
        %v1285 = vmul.f32 %v1284, %v1272
        %v1286 = vpack.c.bf16 %v1285, %v1285
        %v1303 = vunpack.c.l.b16 %v402
        %v1304 = vunpack.c.l.b16 %v403
        %v1305 = vunpack.c.l.b16 %v404
        %v1306 = vunpack.c.l.b16 %v405
        %v1307 = vunpack.c.l.b16 %v406
        %v1308 = vunpack.c.l.b16 %v407
        %v1309 = vunpack.c.l.b16 %v408
        %v1310 = vunpack.c.l.b16 %v409
        %v1311 = vunpack.c.l.b16 %v410
        %v1312 = vunpack.c.l.b16 %v411
        %v1313 = vunpack.c.l.b16 %v412
        %v1314 = vunpack.c.l.b16 %v413
        %v1315 = vunpack.c.l.b16 %v414
        %v1316 = vunpack.c.l.b16 %v415
        %v1317 = vunpack.c.l.b16 %v416
        %v1318 = vunpack.c.l.b16 %v417
        %v1319 = vpack.c.b16 %v1304, %v1303
        %v1320 = vpack.c.b16 %v1306, %v1305
        %v1321 = vpack.c.b16 %v1308, %v1307
        %v1322 = vpack.c.b16 %v1310, %v1309
        %v1323 = vpack.c.b16 %v1312, %v1311
        %v1324 = vpack.c.b16 %v1314, %v1313
        %v1325 = vpack.c.b16 %v1316, %v1315
        %v1326 = vpack.c.b16 %v1318, %v1317
        %1335 = vmatprep.subr.bf16.mxu0 0
        %1336 = vmatpush1.bf16.msra.mxu0 %v1319
        %1337 = vmatprep.subr.bf16.mxu0 0
        %1338 = vmatpush1.bf16.msra.mxu0 %v1320
        %1339 = vmatprep.subr.bf16.mxu0 0
        %1340 = vmatpush1.bf16.msra.mxu0 %v1321
        %1341 = vmatprep.subr.bf16.mxu0 0
        %1342 = vmatpush1.bf16.msra.mxu0 %v1322
        %1343 = vmatprep.subr.bf16.mxu0 0
        %1344 = vmatpush1.bf16.msra.mxu0 %v1323
        %1345 = vmatprep.subr.bf16.mxu0 0
        %1346 = vmatpush1.bf16.msra.mxu0 %v1324
        %1347 = vmatprep.subr.bf16.mxu0 0
        %1348 = vmatpush1.bf16.msra.mxu0 %v1325
        %1349 = vmatprep.subr.bf16.mxu0 0
        %1350 = vmatpush1.bf16.msra.mxu0 %v1326
        %1351 = vmatprep.subr.bf16.mxu0 0
        %1352 = vmatpush1.bf16.msra.mxu0 0
        %1353 = vmatprep.subr.bf16.mxu0 0
        %1354 = vmatpush1.bf16.msra.mxu0 0
        %1355 = vmatprep.subr.bf16.mxu0 0
        %1356 = vmatpush1.bf16.msra.mxu0 0
        %1357 = vmatprep.subr.bf16.mxu0 0
        %1358 = vmatpush1.bf16.msra.mxu0 0
        %1359 = vmatprep.subr.bf16.mxu0 0
        %1360 = vmatpush1.bf16.msra.mxu0 0
        %1361 = vmatprep.subr.bf16.mxu0 0
        %1362 = vmatpush1.bf16.msra.mxu0 0
        %1363 = vmatprep.subr.bf16.mxu0 0
        %1364 = vmatpush1.bf16.msra.mxu0 0
        %1365 = vmatprep.subr.bf16.mxu0 0
        %1366 = vmatpush1.bf16.msra.mxu0 0
        %1367 = vmatprep.mubr.bf16.mxu0 0
        %1368 = vmatmul.mubr.bf16.gmra.mrb[0].mxu0 %v1286
        %v1369 = vpop.f32.mrb[0].mxu0
        %v1370 = vadd.f32 0.0, %v1369
        %v1371 = vpop.f32.mrb[0].mxu0
        %v1372 = vpop.f32.mrb[0].mxu0
        %v1373 = vpop.f32.mrb[0].mxu0
        %1374 = vdwg.mxu0
        %v1375 = vadd.f32 %v1175, %v1370
        %s1376 = scalar_lea.vmem %s3, 1
        %v1377 = vld [vmem:[%s1376] sm:$0x1]
        %s1378 = scalar_lea.vmem %s4, 64
        %v1379 = vld [vmem:[%s1378] sm:$0xff]
        %v1380 = vld [vmem:[%s1378 + $0x8] sm:$0xff]
        %v1381 = vld [vmem:[%s1378 + $0x10] sm:$0xff]
        %v1382 = vld [vmem:[%s1378 + $0x18] sm:$0xff]
        %v1383 = vld [vmem:[%s1378 + $0x20] sm:$0xff]
        %v1384 = vld [vmem:[%s1378 + $0x28] sm:$0xff]
        %v1385 = vld [vmem:[%s1378 + $0x30] sm:$0xff]
        %v1386 = vld [vmem:[%s1378 + $0x38] sm:$0xff]
        %s1387 = scalar_lea.vmem %s5, 32
        %v1388 = vld [vmem:[%s1387] sm:$0xf]
        %v1389 = vld [vmem:[%s1387 + $0x4] sm:$0xf]
        %v1390 = vld [vmem:[%s1387 + $0x8] sm:$0xf]
        %v1391 = vld [vmem:[%s1387 + $0xc] sm:$0xf]
        %v1392 = vld [vmem:[%s1387 + $0x10] sm:$0xf]
        %v1393 = vld [vmem:[%s1387 + $0x14] sm:$0xf]
        %v1394 = vld [vmem:[%s1387 + $0x18] sm:$0xf]
        %v1395 = vld [vmem:[%s1387 + $0x1c] sm:$0xf]
        %s1396 = scalar_lea.vmem %s6, 1
        %v1397 = vld [vmem:[%s1396] sm:$0x1]
        %s1398 = scalar_lea.vmem %s7, 64
        %v1399 = vld [vmem:[%s1398] sm:$0xff]
        %v1400 = vld [vmem:[%s1398 + $0x8] sm:$0xff]
        %v1401 = vld [vmem:[%s1398 + $0x10] sm:$0xff]
        %v1402 = vld [vmem:[%s1398 + $0x18] sm:$0xff]
        %v1403 = vld [vmem:[%s1398 + $0x20] sm:$0xff]
        %v1404 = vld [vmem:[%s1398 + $0x28] sm:$0xff]
        %v1405 = vld [vmem:[%s1398 + $0x30] sm:$0xff]
        %v1406 = vld [vmem:[%s1398 + $0x38] sm:$0xff]
        %s1407 = scalar_lea.vmem %s8, 64
        %v1408 = vld [vmem:[%s1407] sm:$0xf]
        %v1409 = vld [vmem:[%s1407 + $0x4] sm:$0xf]
        %v1410 = vld [vmem:[%s1407 + $0x8] sm:$0xf]
        %v1411 = vld [vmem:[%s1407 + $0xc] sm:$0xf]
        %v1412 = vld [vmem:[%s1407 + $0x10] sm:$0xf]
        %v1413 = vld [vmem:[%s1407 + $0x14] sm:$0xf]
        %v1414 = vld [vmem:[%s1407 + $0x18] sm:$0xf]
        %v1415 = vld [vmem:[%s1407 + $0x1c] sm:$0xf]
        %v1416 = vld [vmem:[%s1407 + $0x20] sm:$0xf]
        %v1417 = vld [vmem:[%s1407 + $0x24] sm:$0xf]
        %v1418 = vld [vmem:[%s1407 + $0x28] sm:$0xf]
        %v1419 = vld [vmem:[%s1407 + $0x2c] sm:$0xf]
        %v1420 = vld [vmem:[%s1407 + $0x30] sm:$0xf]
        %v1421 = vld [vmem:[%s1407 + $0x34] sm:$0xf]
        %v1422 = vld [vmem:[%s1407 + $0x38] sm:$0xf]
        %v1423 = vld [vmem:[%s1407 + $0x3c] sm:$0xf]
        %v1424 = vmul.f32 %v1375, %v1375
        %v1425 = vsel %vm419, %v1424, 0.0
        %1426 = vadd.xlane.f32.xlu0 %v1425
        %v1427 = vpop.xlane.xlu0 %1426
        %v1428 = vmul.f32 %v1427, %v423
        %v1429 = vadd.f32 %v1428, 1e-06
        %v1430 = vrsqrt.pop %v1429
        %v1431 = vmul.f32 %v1375, %v1430
        %v1433 = vlaneseq
        %v1434 = vshrl.u32 %v1433, 7
        %v1435 = vsub.s32 0, %v1434
        %v1436 = vrot.slane %v1377, %v1435
        %v1438 = vmul.f32 %v1431, %v1436
        %v1439 = vpack.c.bf16 %v1438, %v1438
        %v1448 = vunpack.c.l.b16 %v1379
        %v1449 = vunpack.c.h.b16 %v1379
        %v1450 = vunpack.c.l.b16 %v1380
        %v1451 = vunpack.c.h.b16 %v1380
        %v1452 = vunpack.c.l.b16 %v1381
        %v1453 = vunpack.c.h.b16 %v1381
        %v1454 = vunpack.c.l.b16 %v1382
        %v1455 = vunpack.c.h.b16 %v1382
        %v1456 = vunpack.c.l.b16 %v1383
        %v1457 = vunpack.c.h.b16 %v1383
        %v1458 = vunpack.c.l.b16 %v1384
        %v1459 = vunpack.c.h.b16 %v1384
        %v1460 = vunpack.c.l.b16 %v1385
        %v1461 = vunpack.c.h.b16 %v1385
        %v1462 = vunpack.c.l.b16 %v1386
        %v1463 = vunpack.c.h.b16 %v1386
        %v1464 = vpack.c.b16 %v1450, %v1448
        %v1465 = vpack.c.b16 %v1451, %v1449
        %v1466 = vpack.c.b16 %v1454, %v1452
        %v1467 = vpack.c.b16 %v1455, %v1453
        %v1468 = vpack.c.b16 %v1458, %v1456
        %v1469 = vpack.c.b16 %v1459, %v1457
        %v1470 = vpack.c.b16 %v1462, %v1460
        %v1471 = vpack.c.b16 %v1463, %v1461
        %v1481 = vsel %vm419, %v1439, 0
        %1483 = vmatprep.subr.bf16.mxu0 %v1465
        %1484 = vmatpush1.bf16.msra.mxu0 %v1464
        %1485 = vmatprep.subr.bf16.mxu0 %v1467
        %1486 = vmatpush1.bf16.msra.mxu0 %v1466
        %1487 = vmatprep.subr.bf16.mxu0 %v1469
        %1488 = vmatpush1.bf16.msra.mxu0 %v1468
        %1489 = vmatprep.subr.bf16.mxu0 %v1471
        %1490 = vmatpush1.bf16.msra.mxu0 %v1470
        %1491 = vmatprep.subr.bf16.mxu0 0
        %1492 = vmatpush1.bf16.msra.mxu0 0
        %1493 = vmatprep.subr.bf16.mxu0 0
        %1494 = vmatpush1.bf16.msra.mxu0 0
        %1495 = vmatprep.subr.bf16.mxu0 0
        %1496 = vmatpush1.bf16.msra.mxu0 0
        %1497 = vmatprep.subr.bf16.mxu0 0
        %1498 = vmatpush1.bf16.msra.mxu0 0
        %1499 = vmatprep.subr.bf16.mxu0 0
        %1500 = vmatpush1.bf16.msra.mxu0 0
        %1501 = vmatprep.subr.bf16.mxu0 0
        %1502 = vmatpush1.bf16.msra.mxu0 0
        %1503 = vmatprep.subr.bf16.mxu0 0
        %1504 = vmatpush1.bf16.msra.mxu0 0
        %1505 = vmatprep.subr.bf16.mxu0 0
        %1506 = vmatpush1.bf16.msra.mxu0 0
        %1507 = vmatprep.subr.bf16.mxu0 0
        %1508 = vmatpush1.bf16.msra.mxu0 0
        %1509 = vmatprep.subr.bf16.mxu0 0
        %1510 = vmatpush1.bf16.msra.mxu0 0
        %1511 = vmatprep.subr.bf16.mxu0 0
        %1512 = vmatpush1.bf16.msra.mxu0 0
        %1513 = vmatprep.subr.bf16.mxu0 0
        %1514 = vmatpush1.bf16.msra.mxu0 0
        %1515 = vmatprep.mubr.bf16.mxu0 0
        %1516 = vmatmul.mubr.bf16.gmra.mrb[0].mxu0 %v1481
        %v1517 = vpop.f32.mrb[0].mxu0
        %v1518 = vadd.f32 0.0, %v1517
        %v1519 = vpop.f32.mrb[0].mxu0
        %v1520 = vadd.f32 0.0, %v1519
        %v1521 = vpop.f32.mrb[0].mxu0
        %v1522 = vpop.f32.mrb[0].mxu0
        %1523 = vdwg.mxu0
        %v1524 = vpack.c.bf16 %v1518, %v1518
        %1526 = vrot.lane.b32.xlu0 %v1524, 64
        %v1527 = vpop.permute.xlu0 %1526
        %v1529 = vsel %vm524, %v1524, 0
        %v1532 = vsel %vm524, %v1527, 0
        %1534 = vmatprep.subr.bf16.mxu0 0
        %1535 = vmatpush1.bf16.xpose.msra.mxu0 %v1532
        %1536 = vmatprep.subr.bf16.mxu0 0
        %1537 = vmatpush1.bf16.xpose.msra.mxu0 0
        %1538 = vmatprep.subr.bf16.mxu0 0
        %1539 = vmatpush1.bf16.xpose.msra.mxu0 0
        %1540 = vmatprep.subr.bf16.mxu0 0
        %1541 = vmatpush1.bf16.xpose.msra.mxu0 0
        %1542 = vmatprep.subr.bf16.mxu0 0
        %1543 = vmatpush1.bf16.xpose.msra.mxu0 0
        %1544 = vmatprep.subr.bf16.mxu0 0
        %1545 = vmatpush1.bf16.xpose.msra.mxu0 0
        %1546 = vmatprep.subr.bf16.mxu0 0
        %1547 = vmatpush1.bf16.xpose.msra.mxu0 0
        %1548 = vmatprep.subr.bf16.mxu0 0
        %1549 = vmatpush1.bf16.xpose.msra.mxu0 0
        %1550 = vmatprep.subr.bf16.mxu0 0
        %1551 = vmatpush1.bf16.xpose.msra.mxu0 0
        %1552 = vmatprep.subr.bf16.mxu0 0
        %1553 = vmatpush1.bf16.xpose.msra.mxu0 0
        %1554 = vmatprep.subr.bf16.mxu0 0
        %1555 = vmatpush1.bf16.xpose.msra.mxu0 0
        %1556 = vmatprep.subr.bf16.mxu0 0
        %1557 = vmatpush1.bf16.xpose.msra.mxu0 0
        %1558 = vmatprep.subr.bf16.mxu0 0
        %1559 = vmatpush1.bf16.xpose.msra.mxu0 0
        %1560 = vmatprep.subr.bf16.mxu0 0
        %1561 = vmatpush1.bf16.xpose.msra.mxu0 0
        %1562 = vmatprep.subr.bf16.mxu0 0
        %1563 = vmatpush1.bf16.xpose.msra.mxu0 0
        %1564 = vmatprep.subr.bf16.mxu0 0
        %1565 = vmatpush1.bf16.xpose.msra.mxu0 0
        %1566 = vmatprep.mubr.bf16.mxu0 0
        %1567 = vmatmul.mubr.bf16.gmra.mrb[0].mxu0 %v1529
        %v1568 = vpop.f32.mrb[0].mxu0
        %v1569 = vadd.f32 %v372, %v1568
        %v1570 = vpop.f32.mrb[0].mxu0
        %v1571 = vpop.f32.mrb[0].mxu0
        %v1572 = vpop.f32.mrb[0].mxu0
        %1573 = vdwg.mxu0
        %v1574 = vadd.f32 %v1569, %v575
        %v1575 = vsel %vm578, %v1574, -inf
        %1576 = vmax.xlane.f32.xlu0 %v1575
        %v1577 = vpop.xlane.xlu0 %1576
        %v1578 = vsub.f32 %v1574, %v1577
        %v1579 = vmul.f32 %v1578, 1.442695
        %v1580 = vpow.pop %v1579
        %v1581 = vsel %vm578, %v1580, 0.0
        %1582 = vadd.xlane.f32.xlu0 %v1581
        %v1583 = vpop.xlane.xlu0 %1582
        %v1584 = vrcp.pop %v1583
        %v1585 = vmul.f32 %v1580, %v1584
        %v1586 = vpack.c.bf16 %v1585, %v1585
        %v1587 = vpack.c.bf16 %v1520, %v1520
        %v1589 = vsel %vm578, %v1586, 0
        %v1592 = vsel %vm595, %v1587, 0
        %1594 = vmatprep.subr.bf16.mxu0 0
        %1595 = vmatpush1.bf16.msra.mxu0 %v1592
        %1596 = vmatprep.subr.bf16.mxu0 0
        %1597 = vmatpush1.bf16.msra.mxu0 0
        %1598 = vmatprep.subr.bf16.mxu0 0
        %1599 = vmatpush1.bf16.msra.mxu0 0
        %1600 = vmatprep.subr.bf16.mxu0 0
        %1601 = vmatpush1.bf16.msra.mxu0 0
        %1602 = vmatprep.subr.bf16.mxu0 0
        %1603 = vmatpush1.bf16.msra.mxu0 0
        %1604 = vmatprep.subr.bf16.mxu0 0
        %1605 = vmatpush1.bf16.msra.mxu0 0
        %1606 = vmatprep.subr.bf16.mxu0 0
        %1607 = vmatpush1.bf16.msra.mxu0 0
        %1608 = vmatprep.subr.bf16.mxu0 0
        %1609 = vmatpush1.bf16.msra.mxu0 0
        %1610 = vmatprep.subr.bf16.mxu0 0
        %1611 = vmatpush1.bf16.msra.mxu0 0
        %1612 = vmatprep.subr.bf16.mxu0 0
        %1613 = vmatpush1.bf16.msra.mxu0 0
        %1614 = vmatprep.subr.bf16.mxu0 0
        %1615 = vmatpush1.bf16.msra.mxu0 0
        %1616 = vmatprep.subr.bf16.mxu0 0
        %1617 = vmatpush1.bf16.msra.mxu0 0
        %1618 = vmatprep.subr.bf16.mxu0 0
        %1619 = vmatpush1.bf16.msra.mxu0 0
        %1620 = vmatprep.subr.bf16.mxu0 0
        %1621 = vmatpush1.bf16.msra.mxu0 0
        %1622 = vmatprep.subr.bf16.mxu0 0
        %1623 = vmatpush1.bf16.msra.mxu0 0
        %1624 = vmatprep.subr.bf16.mxu0 0
        %1625 = vmatpush1.bf16.msra.mxu0 0
        %1626 = vmatprep.mubr.bf16.mxu0 0
        %1627 = vmatmul.mubr.bf16.gmra.mrb[0].mxu0 %v1589
        %v1628 = vpop.f32.mrb[0].mxu0
        %v1629 = vadd.f32 0.0, %v1628
        %v1630 = vpop.f32.mrb[0].mxu0
        %v1631 = vpop.f32.mrb[0].mxu0
        %v1632 = vpop.f32.mrb[0].mxu0
        %1633 = vdwg.mxu0
        %v1634 = vpack.c.bf16 %v1629, %v1629
        %1635 = vrot.lane.b32.xlu0 %v1524, 112
        %v1636 = vpop.permute.xlu0 %1635
        %1637 = vrot.lane.b32.xlu0 %v1524, 48
        %v1638 = vpop.permute.xlu0 %1637
        %v1640 = vsel %vm524, %v1636, 0
        %v1643 = vsel %vm524, %v1638, 0
        %1645 = vmatprep.subr.bf16.mxu0 0
        %1646 = vmatpush1.bf16.xpose.msra.mxu0 %v1643
        %1647 = vmatprep.subr.bf16.mxu0 0
        %1648 = vmatpush1.bf16.xpose.msra.mxu0 0
        %1649 = vmatprep.subr.bf16.mxu0 0
        %1650 = vmatpush1.bf16.xpose.msra.mxu0 0
        %1651 = vmatprep.subr.bf16.mxu0 0
        %1652 = vmatpush1.bf16.xpose.msra.mxu0 0
        %1653 = vmatprep.subr.bf16.mxu0 0
        %1654 = vmatpush1.bf16.xpose.msra.mxu0 0
        %1655 = vmatprep.subr.bf16.mxu0 0
        %1656 = vmatpush1.bf16.xpose.msra.mxu0 0
        %1657 = vmatprep.subr.bf16.mxu0 0
        %1658 = vmatpush1.bf16.xpose.msra.mxu0 0
        %1659 = vmatprep.subr.bf16.mxu0 0
        %1660 = vmatpush1.bf16.xpose.msra.mxu0 0
        %1661 = vmatprep.subr.bf16.mxu0 0
        %1662 = vmatpush1.bf16.xpose.msra.mxu0 0
        %1663 = vmatprep.subr.bf16.mxu0 0
        %1664 = vmatpush1.bf16.xpose.msra.mxu0 0
        %1665 = vmatprep.subr.bf16.mxu0 0
        %1666 = vmatpush1.bf16.xpose.msra.mxu0 0
        %1667 = vmatprep.subr.bf16.mxu0 0
        %1668 = vmatpush1.bf16.xpose.msra.mxu0 0
        %1669 = vmatprep.subr.bf16.mxu0 0
        %1670 = vmatpush1.bf16.xpose.msra.mxu0 0
        %1671 = vmatprep.subr.bf16.mxu0 0
        %1672 = vmatpush1.bf16.xpose.msra.mxu0 0
        %1673 = vmatprep.subr.bf16.mxu0 0
        %1674 = vmatpush1.bf16.xpose.msra.mxu0 0
        %1675 = vmatprep.subr.bf16.mxu0 0
        %1676 = vmatpush1.bf16.xpose.msra.mxu0 0
        %1677 = vmatprep.mubr.bf16.mxu0 0
        %1678 = vmatmul.mubr.bf16.gmra.mrb[0].mxu0 %v1640
        %v1679 = vpop.f32.mrb[0].mxu0
        %v1680 = vadd.f32 %v373, %v1679
        %v1681 = vpop.f32.mrb[0].mxu0
        %v1682 = vpop.f32.mrb[0].mxu0
        %v1683 = vpop.f32.mrb[0].mxu0
        %1684 = vdwg.mxu0
        %v1685 = vadd.f32 %v1680, %v575
        %v1686 = vsel %vm578, %v1685, -inf
        %1687 = vmax.xlane.f32.xlu0 %v1686
        %v1688 = vpop.xlane.xlu0 %1687
        %v1689 = vsub.f32 %v1685, %v1688
        %v1690 = vmul.f32 %v1689, 1.442695
        %v1691 = vpow.pop %v1690
        %v1692 = vsel %vm578, %v1691, 0.0
        %1693 = vadd.xlane.f32.xlu0 %v1692
        %v1694 = vpop.xlane.xlu0 %1693
        %v1695 = vrcp.pop %v1694
        %v1696 = vmul.f32 %v1691, %v1695
        %v1697 = vpack.c.bf16 %v1696, %v1696
        %1699 = vrot.lane.b32.xlu0 %v1587, 112
        %v1700 = vpop.permute.xlu0 %1699
        %v1702 = vsel %vm578, %v1697, 0
        %v1705 = vsel %vm595, %v1700, 0
        %1707 = vmatprep.subr.bf16.mxu0 0
        %1708 = vmatpush1.bf16.msra.mxu0 %v1705
        %1709 = vmatprep.subr.bf16.mxu0 0
        %1710 = vmatpush1.bf16.msra.mxu0 0
        %1711 = vmatprep.subr.bf16.mxu0 0
        %1712 = vmatpush1.bf16.msra.mxu0 0
        %1713 = vmatprep.subr.bf16.mxu0 0
        %1714 = vmatpush1.bf16.msra.mxu0 0
        %1715 = vmatprep.subr.bf16.mxu0 0
        %1716 = vmatpush1.bf16.msra.mxu0 0
        %1717 = vmatprep.subr.bf16.mxu0 0
        %1718 = vmatpush1.bf16.msra.mxu0 0
        %1719 = vmatprep.subr.bf16.mxu0 0
        %1720 = vmatpush1.bf16.msra.mxu0 0
        %1721 = vmatprep.subr.bf16.mxu0 0
        %1722 = vmatpush1.bf16.msra.mxu0 0
        %1723 = vmatprep.subr.bf16.mxu0 0
        %1724 = vmatpush1.bf16.msra.mxu0 0
        %1725 = vmatprep.subr.bf16.mxu0 0
        %1726 = vmatpush1.bf16.msra.mxu0 0
        %1727 = vmatprep.subr.bf16.mxu0 0
        %1728 = vmatpush1.bf16.msra.mxu0 0
        %1729 = vmatprep.subr.bf16.mxu0 0
        %1730 = vmatpush1.bf16.msra.mxu0 0
        %1731 = vmatprep.subr.bf16.mxu0 0
        %1732 = vmatpush1.bf16.msra.mxu0 0
        %1733 = vmatprep.subr.bf16.mxu0 0
        %1734 = vmatpush1.bf16.msra.mxu0 0
        %1735 = vmatprep.subr.bf16.mxu0 0
        %1736 = vmatpush1.bf16.msra.mxu0 0
        %1737 = vmatprep.subr.bf16.mxu0 0
        %1738 = vmatpush1.bf16.msra.mxu0 0
        %1739 = vmatprep.mubr.bf16.mxu0 0
        %1740 = vmatmul.mubr.bf16.gmra.mrb[0].mxu0 %v1702
        %v1741 = vpop.f32.mrb[0].mxu0
        %v1742 = vadd.f32 0.0, %v1741
        %v1743 = vpop.f32.mrb[0].mxu0
        %v1744 = vpop.f32.mrb[0].mxu0
        %v1745 = vpop.f32.mrb[0].mxu0
        %1746 = vdwg.mxu0
        %v1747 = vpack.c.bf16 %v1742, %v1742
        %v1750 = vunpack.c.l.b16 %v1390
        %v1751 = vunpack.c.l.b16 %v1391
        %v1752 = vpack.c.b16 %v1751, %v1750
        %v1755 = vsel %vm524, %v1747, 0
        %1757 = vmatprep.subr.bf16.mxu0 0
        %1758 = vmatpush1.bf16.msra.mxu0 %v1752
        %1759 = vmatprep.subr.bf16.mxu0 0
        %1760 = vmatpush1.bf16.msra.mxu0 0
        %1761 = vmatprep.subr.bf16.mxu0 0
        %1762 = vmatpush1.bf16.msra.mxu0 0
        %1763 = vmatprep.subr.bf16.mxu0 0
        %1764 = vmatpush1.bf16.msra.mxu0 0
        %1765 = vmatprep.subr.bf16.mxu0 0
        %1766 = vmatpush1.bf16.msra.mxu0 0
        %1767 = vmatprep.subr.bf16.mxu0 0
        %1768 = vmatpush1.bf16.msra.mxu0 0
        %1769 = vmatprep.subr.bf16.mxu0 0
        %1770 = vmatpush1.bf16.msra.mxu0 0
        %1771 = vmatprep.subr.bf16.mxu0 0
        %1772 = vmatpush1.bf16.msra.mxu0 0
        %1773 = vmatprep.subr.bf16.mxu0 0
        %1774 = vmatpush1.bf16.msra.mxu0 0
        %1775 = vmatprep.subr.bf16.mxu0 0
        %1776 = vmatpush1.bf16.msra.mxu0 0
        %1777 = vmatprep.subr.bf16.mxu0 0
        %1778 = vmatpush1.bf16.msra.mxu0 0
        %1779 = vmatprep.subr.bf16.mxu0 0
        %1780 = vmatpush1.bf16.msra.mxu0 0
        %1781 = vmatprep.subr.bf16.mxu0 0
        %1782 = vmatpush1.bf16.msra.mxu0 0
        %1783 = vmatprep.subr.bf16.mxu0 0
        %1784 = vmatpush1.bf16.msra.mxu0 0
        %1785 = vmatprep.subr.bf16.mxu0 0
        %1786 = vmatpush1.bf16.msra.mxu0 0
        %1787 = vmatprep.subr.bf16.mxu0 0
        %1788 = vmatpush1.bf16.msra.mxu0 0
        %1789 = vmatprep.mubr.bf16.mxu0 0
        %1790 = vmatmul.mubr.bf16.gmra.mrb[0].mxu0 %v1755
        %v1791 = vpop.f32.mrb[0].mxu0
        %v1792 = vadd.f32 0.0, %v1791
        %v1793 = vpop.f32.mrb[0].mxu0
        %v1794 = vpop.f32.mrb[0].mxu0
        %v1795 = vpop.f32.mrb[0].mxu0
        %1796 = vdwg.mxu0
        %v1799 = vunpack.c.l.b16 %v1388
        %v1800 = vunpack.c.l.b16 %v1389
        %v1801 = vpack.c.b16 %v1800, %v1799
        %v1804 = vsel %vm524, %v1634, 0
        %1806 = vmatprep.subr.bf16.mxu0 0
        %1807 = vmatpush1.bf16.msra.mxu0 %v1801
        %1808 = vmatprep.subr.bf16.mxu0 0
        %1809 = vmatpush1.bf16.msra.mxu0 0
        %1810 = vmatprep.subr.bf16.mxu0 0
        %1811 = vmatpush1.bf16.msra.mxu0 0
        %1812 = vmatprep.subr.bf16.mxu0 0
        %1813 = vmatpush1.bf16.msra.mxu0 0
        %1814 = vmatprep.subr.bf16.mxu0 0
        %1815 = vmatpush1.bf16.msra.mxu0 0
        %1816 = vmatprep.subr.bf16.mxu0 0
        %1817 = vmatpush1.bf16.msra.mxu0 0
        %1818 = vmatprep.subr.bf16.mxu0 0
        %1819 = vmatpush1.bf16.msra.mxu0 0
        %1820 = vmatprep.subr.bf16.mxu0 0
        %1821 = vmatpush1.bf16.msra.mxu0 0
        %1822 = vmatprep.subr.bf16.mxu0 0
        %1823 = vmatpush1.bf16.msra.mxu0 0
        %1824 = vmatprep.subr.bf16.mxu0 0
        %1825 = vmatpush1.bf16.msra.mxu0 0
        %1826 = vmatprep.subr.bf16.mxu0 0
        %1827 = vmatpush1.bf16.msra.mxu0 0
        %1828 = vmatprep.subr.bf16.mxu0 0
        %1829 = vmatpush1.bf16.msra.mxu0 0
        %1830 = vmatprep.subr.bf16.mxu0 0
        %1831 = vmatpush1.bf16.msra.mxu0 0
        %1832 = vmatprep.subr.bf16.mxu0 0
        %1833 = vmatpush1.bf16.msra.mxu0 0
        %1834 = vmatprep.subr.bf16.mxu0 0
        %1835 = vmatpush1.bf16.msra.mxu0 0
        %1836 = vmatprep.subr.bf16.mxu0 0
        %1837 = vmatpush1.bf16.msra.mxu0 0
        %1838 = vmatprep.mubr.bf16.mxu0 0
        %1839 = vmatmul.mubr.bf16.gmra.mrb[0].mxu0 %v1804
        %v1840 = vpop.f32.mrb[0].mxu0
        %v1841 = vadd.f32 %v1792, %v1840
        %v1842 = vpop.f32.mrb[0].mxu0
        %v1843 = vpop.f32.mrb[0].mxu0
        %v1844 = vpop.f32.mrb[0].mxu0
        %1845 = vdwg.mxu0
        %1846 = vrot.lane.b32.xlu0 %v1524, 96
        %v1847 = vpop.permute.xlu0 %1846
        %1848 = vrot.lane.b32.xlu0 %v1524, 32
        %v1849 = vpop.permute.xlu0 %1848
        %v1851 = vsel %vm524, %v1847, 0
        %v1854 = vsel %vm524, %v1849, 0
        %1856 = vmatprep.subr.bf16.mxu0 0
        %1857 = vmatpush1.bf16.xpose.msra.mxu0 %v1854
        %1858 = vmatprep.subr.bf16.mxu0 0
        %1859 = vmatpush1.bf16.xpose.msra.mxu0 0
        %1860 = vmatprep.subr.bf16.mxu0 0
        %1861 = vmatpush1.bf16.xpose.msra.mxu0 0
        %1862 = vmatprep.subr.bf16.mxu0 0
        %1863 = vmatpush1.bf16.xpose.msra.mxu0 0
        %1864 = vmatprep.subr.bf16.mxu0 0
        %1865 = vmatpush1.bf16.xpose.msra.mxu0 0
        %1866 = vmatprep.subr.bf16.mxu0 0
        %1867 = vmatpush1.bf16.xpose.msra.mxu0 0
        %1868 = vmatprep.subr.bf16.mxu0 0
        %1869 = vmatpush1.bf16.xpose.msra.mxu0 0
        %1870 = vmatprep.subr.bf16.mxu0 0
        %1871 = vmatpush1.bf16.xpose.msra.mxu0 0
        %1872 = vmatprep.subr.bf16.mxu0 0
        %1873 = vmatpush1.bf16.xpose.msra.mxu0 0
        %1874 = vmatprep.subr.bf16.mxu0 0
        %1875 = vmatpush1.bf16.xpose.msra.mxu0 0
        %1876 = vmatprep.subr.bf16.mxu0 0
        %1877 = vmatpush1.bf16.xpose.msra.mxu0 0
        %1878 = vmatprep.subr.bf16.mxu0 0
        %1879 = vmatpush1.bf16.xpose.msra.mxu0 0
        %1880 = vmatprep.subr.bf16.mxu0 0
        %1881 = vmatpush1.bf16.xpose.msra.mxu0 0
        %1882 = vmatprep.subr.bf16.mxu0 0
        %1883 = vmatpush1.bf16.xpose.msra.mxu0 0
        %1884 = vmatprep.subr.bf16.mxu0 0
        %1885 = vmatpush1.bf16.xpose.msra.mxu0 0
        %1886 = vmatprep.subr.bf16.mxu0 0
        %1887 = vmatpush1.bf16.xpose.msra.mxu0 0
        %1888 = vmatprep.mubr.bf16.mxu0 0
        %1889 = vmatmul.mubr.bf16.gmra.mrb[0].mxu0 %v1851
        %v1890 = vpop.f32.mrb[0].mxu0
        %v1891 = vadd.f32 %v374, %v1890
        %v1892 = vpop.f32.mrb[0].mxu0
        %v1893 = vpop.f32.mrb[0].mxu0
        %v1894 = vpop.f32.mrb[0].mxu0
        %1895 = vdwg.mxu0
        %v1896 = vadd.f32 %v1891, %v575
        %v1897 = vsel %vm578, %v1896, -inf
        %1898 = vmax.xlane.f32.xlu0 %v1897
        %v1899 = vpop.xlane.xlu0 %1898
        %v1900 = vsub.f32 %v1896, %v1899
        %v1901 = vmul.f32 %v1900, 1.442695
        %v1902 = vpow.pop %v1901
        %v1903 = vsel %vm578, %v1902, 0.0
        %1904 = vadd.xlane.f32.xlu0 %v1903
        %v1905 = vpop.xlane.xlu0 %1904
        %v1906 = vrcp.pop %v1905
        %v1907 = vmul.f32 %v1902, %v1906
        %v1908 = vpack.c.bf16 %v1907, %v1907
        %1909 = vrot.lane.b32.xlu0 %v1587, 96
        %v1910 = vpop.permute.xlu0 %1909
        %v1912 = vsel %vm578, %v1908, 0
        %v1915 = vsel %vm595, %v1910, 0
        %1917 = vmatprep.subr.bf16.mxu0 0
        %1918 = vmatpush1.bf16.msra.mxu0 %v1915
        %1919 = vmatprep.subr.bf16.mxu0 0
        %1920 = vmatpush1.bf16.msra.mxu0 0
        %1921 = vmatprep.subr.bf16.mxu0 0
        %1922 = vmatpush1.bf16.msra.mxu0 0
        %1923 = vmatprep.subr.bf16.mxu0 0
        %1924 = vmatpush1.bf16.msra.mxu0 0
        %1925 = vmatprep.subr.bf16.mxu0 0
        %1926 = vmatpush1.bf16.msra.mxu0 0
        %1927 = vmatprep.subr.bf16.mxu0 0
        %1928 = vmatpush1.bf16.msra.mxu0 0
        %1929 = vmatprep.subr.bf16.mxu0 0
        %1930 = vmatpush1.bf16.msra.mxu0 0
        %1931 = vmatprep.subr.bf16.mxu0 0
        %1932 = vmatpush1.bf16.msra.mxu0 0
        %1933 = vmatprep.subr.bf16.mxu0 0
        %1934 = vmatpush1.bf16.msra.mxu0 0
        %1935 = vmatprep.subr.bf16.mxu0 0
        %1936 = vmatpush1.bf16.msra.mxu0 0
        %1937 = vmatprep.subr.bf16.mxu0 0
        %1938 = vmatpush1.bf16.msra.mxu0 0
        %1939 = vmatprep.subr.bf16.mxu0 0
        %1940 = vmatpush1.bf16.msra.mxu0 0
        %1941 = vmatprep.subr.bf16.mxu0 0
        %1942 = vmatpush1.bf16.msra.mxu0 0
        %1943 = vmatprep.subr.bf16.mxu0 0
        %1944 = vmatpush1.bf16.msra.mxu0 0
        %1945 = vmatprep.subr.bf16.mxu0 0
        %1946 = vmatpush1.bf16.msra.mxu0 0
        %1947 = vmatprep.subr.bf16.mxu0 0
        %1948 = vmatpush1.bf16.msra.mxu0 0
        %1949 = vmatprep.mubr.bf16.mxu0 0
        %1950 = vmatmul.mubr.bf16.gmra.mrb[0].mxu0 %v1912
        %v1951 = vpop.f32.mrb[0].mxu0
        %v1952 = vadd.f32 0.0, %v1951
        %v1953 = vpop.f32.mrb[0].mxu0
        %v1954 = vpop.f32.mrb[0].mxu0
        %v1955 = vpop.f32.mrb[0].mxu0
        %1956 = vdwg.mxu0
        %v1957 = vpack.c.bf16 %v1952, %v1952
        %v1960 = vunpack.c.l.b16 %v1392
        %v1961 = vunpack.c.l.b16 %v1393
        %v1962 = vpack.c.b16 %v1961, %v1960
        %v1965 = vsel %vm524, %v1957, 0
        %1967 = vmatprep.subr.bf16.mxu0 0
        %1968 = vmatpush1.bf16.msra.mxu0 %v1962
        %1969 = vmatprep.subr.bf16.mxu0 0
        %1970 = vmatpush1.bf16.msra.mxu0 0
        %1971 = vmatprep.subr.bf16.mxu0 0
        %1972 = vmatpush1.bf16.msra.mxu0 0
        %1973 = vmatprep.subr.bf16.mxu0 0
        %1974 = vmatpush1.bf16.msra.mxu0 0
        %1975 = vmatprep.subr.bf16.mxu0 0
        %1976 = vmatpush1.bf16.msra.mxu0 0
        %1977 = vmatprep.subr.bf16.mxu0 0
        %1978 = vmatpush1.bf16.msra.mxu0 0
        %1979 = vmatprep.subr.bf16.mxu0 0
        %1980 = vmatpush1.bf16.msra.mxu0 0
        %1981 = vmatprep.subr.bf16.mxu0 0
        %1982 = vmatpush1.bf16.msra.mxu0 0
        %1983 = vmatprep.subr.bf16.mxu0 0
        %1984 = vmatpush1.bf16.msra.mxu0 0
        %1985 = vmatprep.subr.bf16.mxu0 0
        %1986 = vmatpush1.bf16.msra.mxu0 0
        %1987 = vmatprep.subr.bf16.mxu0 0
        %1988 = vmatpush1.bf16.msra.mxu0 0
        %1989 = vmatprep.subr.bf16.mxu0 0
        %1990 = vmatpush1.bf16.msra.mxu0 0
        %1991 = vmatprep.subr.bf16.mxu0 0
        %1992 = vmatpush1.bf16.msra.mxu0 0
        %1993 = vmatprep.subr.bf16.mxu0 0
        %1994 = vmatpush1.bf16.msra.mxu0 0
        %1995 = vmatprep.subr.bf16.mxu0 0
        %1996 = vmatpush1.bf16.msra.mxu0 0
        %1997 = vmatprep.subr.bf16.mxu0 0
        %1998 = vmatpush1.bf16.msra.mxu0 0
        %1999 = vmatprep.mubr.bf16.mxu0 0
        %2000 = vmatmul.mubr.bf16.gmra.mrb[0].mxu0 %v1965
        %v2001 = vpop.f32.mrb[0].mxu0
        %v2002 = vadd.f32 0.0, %v2001
        %v2003 = vpop.f32.mrb[0].mxu0
        %v2004 = vpop.f32.mrb[0].mxu0
        %v2005 = vpop.f32.mrb[0].mxu0
        %2006 = vdwg.mxu0
        %v2007 = vadd.f32 %v1841, %v2002
        %2008 = vrot.lane.b32.xlu0 %v1524, 80
        %v2009 = vpop.permute.xlu0 %2008
        %2010 = vrot.lane.b32.xlu0 %v1524, 16
        %v2011 = vpop.permute.xlu0 %2010
        %v2013 = vsel %vm524, %v2009, 0
        %v2016 = vsel %vm524, %v2011, 0
        %2018 = vmatprep.subr.bf16.mxu0 0
        %2019 = vmatpush1.bf16.xpose.msra.mxu0 %v2016
        %2020 = vmatprep.subr.bf16.mxu0 0
        %2021 = vmatpush1.bf16.xpose.msra.mxu0 0
        %2022 = vmatprep.subr.bf16.mxu0 0
        %2023 = vmatpush1.bf16.xpose.msra.mxu0 0
        %2024 = vmatprep.subr.bf16.mxu0 0
        %2025 = vmatpush1.bf16.xpose.msra.mxu0 0
        %2026 = vmatprep.subr.bf16.mxu0 0
        %2027 = vmatpush1.bf16.xpose.msra.mxu0 0
        %2028 = vmatprep.subr.bf16.mxu0 0
        %2029 = vmatpush1.bf16.xpose.msra.mxu0 0
        %2030 = vmatprep.subr.bf16.mxu0 0
        %2031 = vmatpush1.bf16.xpose.msra.mxu0 0
        %2032 = vmatprep.subr.bf16.mxu0 0
        %2033 = vmatpush1.bf16.xpose.msra.mxu0 0
        %2034 = vmatprep.subr.bf16.mxu0 0
        %2035 = vmatpush1.bf16.xpose.msra.mxu0 0
        %2036 = vmatprep.subr.bf16.mxu0 0
        %2037 = vmatpush1.bf16.xpose.msra.mxu0 0
        %2038 = vmatprep.subr.bf16.mxu0 0
        %2039 = vmatpush1.bf16.xpose.msra.mxu0 0
        %2040 = vmatprep.subr.bf16.mxu0 0
        %2041 = vmatpush1.bf16.xpose.msra.mxu0 0
        %2042 = vmatprep.subr.bf16.mxu0 0
        %2043 = vmatpush1.bf16.xpose.msra.mxu0 0
        %2044 = vmatprep.subr.bf16.mxu0 0
        %2045 = vmatpush1.bf16.xpose.msra.mxu0 0
        %2046 = vmatprep.subr.bf16.mxu0 0
        %2047 = vmatpush1.bf16.xpose.msra.mxu0 0
        %2048 = vmatprep.subr.bf16.mxu0 0
        %2049 = vmatpush1.bf16.xpose.msra.mxu0 0
        %2050 = vmatprep.mubr.bf16.mxu0 0
        %2051 = vmatmul.mubr.bf16.gmra.mrb[0].mxu0 %v2013
        %v2052 = vpop.f32.mrb[0].mxu0
        %v2053 = vadd.f32 %v375, %v2052
        %v2054 = vpop.f32.mrb[0].mxu0
        %v2055 = vpop.f32.mrb[0].mxu0
        %v2056 = vpop.f32.mrb[0].mxu0
        %2057 = vdwg.mxu0
        %v2058 = vadd.f32 %v2053, %v575
        %v2059 = vsel %vm578, %v2058, -inf
        %2060 = vmax.xlane.f32.xlu0 %v2059
        %v2061 = vpop.xlane.xlu0 %2060
        %v2062 = vsub.f32 %v2058, %v2061
        %v2063 = vmul.f32 %v2062, 1.442695
        %v2064 = vpow.pop %v2063
        %v2065 = vsel %vm578, %v2064, 0.0
        %2066 = vadd.xlane.f32.xlu0 %v2065
        %v2067 = vpop.xlane.xlu0 %2066
        %v2068 = vrcp.pop %v2067
        %v2069 = vmul.f32 %v2064, %v2068
        %v2070 = vpack.c.bf16 %v2069, %v2069
        %2071 = vrot.lane.b32.xlu0 %v1587, 80
        %v2072 = vpop.permute.xlu0 %2071
        %v2074 = vsel %vm578, %v2070, 0
        %v2077 = vsel %vm595, %v2072, 0
        %2079 = vmatprep.subr.bf16.mxu0 0
        %2080 = vmatpush1.bf16.msra.mxu0 %v2077
        %2081 = vmatprep.subr.bf16.mxu0 0
        %2082 = vmatpush1.bf16.msra.mxu0 0
        %2083 = vmatprep.subr.bf16.mxu0 0
        %2084 = vmatpush1.bf16.msra.mxu0 0
        %2085 = vmatprep.subr.bf16.mxu0 0
        %2086 = vmatpush1.bf16.msra.mxu0 0
        %2087 = vmatprep.subr.bf16.mxu0 0
        %2088 = vmatpush1.bf16.msra.mxu0 0
        %2089 = vmatprep.subr.bf16.mxu0 0
        %2090 = vmatpush1.bf16.msra.mxu0 0
        %2091 = vmatprep.subr.bf16.mxu0 0
        %2092 = vmatpush1.bf16.msra.mxu0 0
        %2093 = vmatprep.subr.bf16.mxu0 0
        %2094 = vmatpush1.bf16.msra.mxu0 0
        %2095 = vmatprep.subr.bf16.mxu0 0
        %2096 = vmatpush1.bf16.msra.mxu0 0
        %2097 = vmatprep.subr.bf16.mxu0 0
        %2098 = vmatpush1.bf16.msra.mxu0 0
        %2099 = vmatprep.subr.bf16.mxu0 0
        %2100 = vmatpush1.bf16.msra.mxu0 0
        %2101 = vmatprep.subr.bf16.mxu0 0
        %2102 = vmatpush1.bf16.msra.mxu0 0
        %2103 = vmatprep.subr.bf16.mxu0 0
        %2104 = vmatpush1.bf16.msra.mxu0 0
        %2105 = vmatprep.subr.bf16.mxu0 0
        %2106 = vmatpush1.bf16.msra.mxu0 0
        %2107 = vmatprep.subr.bf16.mxu0 0
        %2108 = vmatpush1.bf16.msra.mxu0 0
        %2109 = vmatprep.subr.bf16.mxu0 0
        %2110 = vmatpush1.bf16.msra.mxu0 0
        %2111 = vmatprep.mubr.bf16.mxu0 0
        %2112 = vmatmul.mubr.bf16.gmra.mrb[0].mxu0 %v2074
        %v2113 = vpop.f32.mrb[0].mxu0
        %v2114 = vadd.f32 0.0, %v2113
        %v2115 = vpop.f32.mrb[0].mxu0
        %v2116 = vpop.f32.mrb[0].mxu0
        %v2117 = vpop.f32.mrb[0].mxu0
        %2118 = vdwg.mxu0
        %v2119 = vpack.c.bf16 %v2114, %v2114
        %v2122 = vunpack.c.l.b16 %v1394
        %v2123 = vunpack.c.l.b16 %v1395
        %v2124 = vpack.c.b16 %v2123, %v2122
        %v2127 = vsel %vm524, %v2119, 0
        %2129 = vmatprep.subr.bf16.mxu0 0
        %2130 = vmatpush1.bf16.msra.mxu0 %v2124
        %2131 = vmatprep.subr.bf16.mxu0 0
        %2132 = vmatpush1.bf16.msra.mxu0 0
        %2133 = vmatprep.subr.bf16.mxu0 0
        %2134 = vmatpush1.bf16.msra.mxu0 0
        %2135 = vmatprep.subr.bf16.mxu0 0
        %2136 = vmatpush1.bf16.msra.mxu0 0
        %2137 = vmatprep.subr.bf16.mxu0 0
        %2138 = vmatpush1.bf16.msra.mxu0 0
        %2139 = vmatprep.subr.bf16.mxu0 0
        %2140 = vmatpush1.bf16.msra.mxu0 0
        %2141 = vmatprep.subr.bf16.mxu0 0
        %2142 = vmatpush1.bf16.msra.mxu0 0
        %2143 = vmatprep.subr.bf16.mxu0 0
        %2144 = vmatpush1.bf16.msra.mxu0 0
        %2145 = vmatprep.subr.bf16.mxu0 0
        %2146 = vmatpush1.bf16.msra.mxu0 0
        %2147 = vmatprep.subr.bf16.mxu0 0
        %2148 = vmatpush1.bf16.msra.mxu0 0
        %2149 = vmatprep.subr.bf16.mxu0 0
        %2150 = vmatpush1.bf16.msra.mxu0 0
        %2151 = vmatprep.subr.bf16.mxu0 0
        %2152 = vmatpush1.bf16.msra.mxu0 0
        %2153 = vmatprep.subr.bf16.mxu0 0
        %2154 = vmatpush1.bf16.msra.mxu0 0
        %2155 = vmatprep.subr.bf16.mxu0 0
        %2156 = vmatpush1.bf16.msra.mxu0 0
        %2157 = vmatprep.subr.bf16.mxu0 0
        %2158 = vmatpush1.bf16.msra.mxu0 0
        %2159 = vmatprep.subr.bf16.mxu0 0
        %2160 = vmatpush1.bf16.msra.mxu0 0
        %2161 = vmatprep.mubr.bf16.mxu0 0
        %2162 = vmatmul.mubr.bf16.gmra.mrb[0].mxu0 %v2127
        %v2163 = vpop.f32.mrb[0].mxu0
        %v2164 = vadd.f32 0.0, %v2163
        %v2165 = vpop.f32.mrb[0].mxu0
        %v2166 = vpop.f32.mrb[0].mxu0
        %v2167 = vpop.f32.mrb[0].mxu0
        %2168 = vdwg.mxu0
        %v2169 = vadd.f32 %v2007, %v2164
        %v2170 = vadd.f32 %v1375, %v2169
        %v2171 = vmul.f32 %v2170, %v2170
        %v2172 = vsel %vm419, %v2171, 0.0
        %2173 = vadd.xlane.f32.xlu0 %v2172
        %v2174 = vpop.xlane.xlu0 %2173
        %v2175 = vmul.f32 %v2174, %v423
        %v2176 = vadd.f32 %v2175, 1e-06
        %v2177 = vrsqrt.pop %v2176
        %v2178 = vmul.f32 %v2170, %v2177
        %v2180 = vlaneseq
        %v2181 = vshrl.u32 %v2180, 7
        %v2182 = vsub.s32 0, %v2181
        %v2183 = vrot.slane %v1397, %v2182
        %v2185 = vmul.f32 %v2178, %v2183
        %v2186 = vpack.c.bf16 %v2185, %v2185
        %v2195 = vunpack.c.l.b16 %v1399
        %v2196 = vunpack.c.h.b16 %v1399
        %v2197 = vunpack.c.l.b16 %v1400
        %v2198 = vunpack.c.h.b16 %v1400
        %v2199 = vunpack.c.l.b16 %v1401
        %v2200 = vunpack.c.h.b16 %v1401
        %v2201 = vunpack.c.l.b16 %v1402
        %v2202 = vunpack.c.h.b16 %v1402
        %v2203 = vunpack.c.l.b16 %v1403
        %v2204 = vunpack.c.h.b16 %v1403
        %v2205 = vunpack.c.l.b16 %v1404
        %v2206 = vunpack.c.h.b16 %v1404
        %v2207 = vunpack.c.l.b16 %v1405
        %v2208 = vunpack.c.h.b16 %v1405
        %v2209 = vunpack.c.l.b16 %v1406
        %v2210 = vunpack.c.h.b16 %v1406
        %v2211 = vpack.c.b16 %v2197, %v2195
        %v2212 = vpack.c.b16 %v2198, %v2196
        %v2213 = vpack.c.b16 %v2201, %v2199
        %v2214 = vpack.c.b16 %v2202, %v2200
        %v2215 = vpack.c.b16 %v2205, %v2203
        %v2216 = vpack.c.b16 %v2206, %v2204
        %v2217 = vpack.c.b16 %v2209, %v2207
        %v2218 = vpack.c.b16 %v2210, %v2208
        %v2228 = vsel %vm419, %v2186, 0
        %2230 = vmatprep.subr.bf16.mxu0 %v2212
        %2231 = vmatpush1.bf16.msra.mxu0 %v2211
        %2232 = vmatprep.subr.bf16.mxu0 %v2214
        %2233 = vmatpush1.bf16.msra.mxu0 %v2213
        %2234 = vmatprep.subr.bf16.mxu0 %v2216
        %2235 = vmatpush1.bf16.msra.mxu0 %v2215
        %2236 = vmatprep.subr.bf16.mxu0 %v2218
        %2237 = vmatpush1.bf16.msra.mxu0 %v2217
        %2238 = vmatprep.subr.bf16.mxu0 0
        %2239 = vmatpush1.bf16.msra.mxu0 0
        %2240 = vmatprep.subr.bf16.mxu0 0
        %2241 = vmatpush1.bf16.msra.mxu0 0
        %2242 = vmatprep.subr.bf16.mxu0 0
        %2243 = vmatpush1.bf16.msra.mxu0 0
        %2244 = vmatprep.subr.bf16.mxu0 0
        %2245 = vmatpush1.bf16.msra.mxu0 0
        %2246 = vmatprep.subr.bf16.mxu0 0
        %2247 = vmatpush1.bf16.msra.mxu0 0
        %2248 = vmatprep.subr.bf16.mxu0 0
        %2249 = vmatpush1.bf16.msra.mxu0 0
        %2250 = vmatprep.subr.bf16.mxu0 0
        %2251 = vmatpush1.bf16.msra.mxu0 0
        %2252 = vmatprep.subr.bf16.mxu0 0
        %2253 = vmatpush1.bf16.msra.mxu0 0
        %2254 = vmatprep.subr.bf16.mxu0 0
        %2255 = vmatpush1.bf16.msra.mxu0 0
        %2256 = vmatprep.subr.bf16.mxu0 0
        %2257 = vmatpush1.bf16.msra.mxu0 0
        %2258 = vmatprep.subr.bf16.mxu0 0
        %2259 = vmatpush1.bf16.msra.mxu0 0
        %2260 = vmatprep.subr.bf16.mxu0 0
        %2261 = vmatpush1.bf16.msra.mxu0 0
        %2262 = vmatprep.mubr.bf16.mxu0 0
        %2263 = vmatmul.mubr.bf16.gmra.mrb[0].mxu0 %v2228
        %v2264 = vpop.f32.mrb[0].mxu0
        %v2265 = vadd.f32 0.0, %v2264
        %v2266 = vpop.f32.mrb[0].mxu0
        %v2267 = vadd.f32 0.0, %v2266
        %v2268 = vpop.f32.mrb[0].mxu0
        %v2269 = vpop.f32.mrb[0].mxu0
        %2270 = vdwg.mxu0
        %v2271 = vmul.f32 %v2265, 0.5
        %v2272 = vmul.f32 %v2265, 0.044715
        %v2273 = vmul.f32 %v2272, %v2265
        %v2274 = vmul.f32 %v2273, %v2265
        %v2275 = vadd.f32 %v2265, %v2274
        %v2276 = vmul.f32 %v2275, 0.7978846
        %v2277 = vtanh.pop %v2276
        %v2278 = vadd.f32 %v2277, 1.0
        %v2279 = vmul.f32 %v2271, %v2278
        %v2280 = vmul.f32 %v2279, %v2267
        %v2281 = vpack.c.bf16 %v2280, %v2280
        %v2298 = vunpack.c.l.b16 %v1408
        %v2299 = vunpack.c.l.b16 %v1409
        %v2300 = vunpack.c.l.b16 %v1410
        %v2301 = vunpack.c.l.b16 %v1411
        %v2302 = vunpack.c.l.b16 %v1412
        %v2303 = vunpack.c.l.b16 %v1413
        %v2304 = vunpack.c.l.b16 %v1414
        %v2305 = vunpack.c.l.b16 %v1415
        %v2306 = vunpack.c.l.b16 %v1416
        %v2307 = vunpack.c.l.b16 %v1417
        %v2308 = vunpack.c.l.b16 %v1418
        %v2309 = vunpack.c.l.b16 %v1419
        %v2310 = vunpack.c.l.b16 %v1420
        %v2311 = vunpack.c.l.b16 %v1421
        %v2312 = vunpack.c.l.b16 %v1422
        %v2313 = vunpack.c.l.b16 %v1423
        %v2314 = vpack.c.b16 %v2299, %v2298
        %v2315 = vpack.c.b16 %v2301, %v2300
        %v2316 = vpack.c.b16 %v2303, %v2302
        %v2317 = vpack.c.b16 %v2305, %v2304
        %v2318 = vpack.c.b16 %v2307, %v2306
        %v2319 = vpack.c.b16 %v2309, %v2308
        %v2320 = vpack.c.b16 %v2311, %v2310
        %v2321 = vpack.c.b16 %v2313, %v2312
        %2330 = vmatprep.subr.bf16.mxu0 0
        %2331 = vmatpush1.bf16.msra.mxu0 %v2314
        %2332 = vmatprep.subr.bf16.mxu0 0
        %2333 = vmatpush1.bf16.msra.mxu0 %v2315
        %2334 = vmatprep.subr.bf16.mxu0 0
        %2335 = vmatpush1.bf16.msra.mxu0 %v2316
        %2336 = vmatprep.subr.bf16.mxu0 0
        %2337 = vmatpush1.bf16.msra.mxu0 %v2317
        %2338 = vmatprep.subr.bf16.mxu0 0
        %2339 = vmatpush1.bf16.msra.mxu0 %v2318
        %2340 = vmatprep.subr.bf16.mxu0 0
        %2341 = vmatpush1.bf16.msra.mxu0 %v2319
        %2342 = vmatprep.subr.bf16.mxu0 0
        %2343 = vmatpush1.bf16.msra.mxu0 %v2320
        %2344 = vmatprep.subr.bf16.mxu0 0
        %2345 = vmatpush1.bf16.msra.mxu0 %v2321
        %2346 = vmatprep.subr.bf16.mxu0 0
        %2347 = vmatpush1.bf16.msra.mxu0 0
        %2348 = vmatprep.subr.bf16.mxu0 0
        %2349 = vmatpush1.bf16.msra.mxu0 0
        %2350 = vmatprep.subr.bf16.mxu0 0
        %2351 = vmatpush1.bf16.msra.mxu0 0
        %2352 = vmatprep.subr.bf16.mxu0 0
        %2353 = vmatpush1.bf16.msra.mxu0 0
        %2354 = vmatprep.subr.bf16.mxu0 0
        %2355 = vmatpush1.bf16.msra.mxu0 0
        %2356 = vmatprep.subr.bf16.mxu0 0
        %2357 = vmatpush1.bf16.msra.mxu0 0
        %2358 = vmatprep.subr.bf16.mxu0 0
        %2359 = vmatpush1.bf16.msra.mxu0 0
        %2360 = vmatprep.subr.bf16.mxu0 0
        %2361 = vmatpush1.bf16.msra.mxu0 0
        %2362 = vmatprep.mubr.bf16.mxu0 0
        %2363 = vmatmul.mubr.bf16.gmra.mrb[0].mxu0 %v2281
        %v2364 = vpop.f32.mrb[0].mxu0
        %v2365 = vadd.f32 0.0, %v2364
        %v2366 = vpop.f32.mrb[0].mxu0
        %v2367 = vpop.f32.mrb[0].mxu0
        %v2368 = vpop.f32.mrb[0].mxu0
        %2369 = vdwg.mxu0
        %v2370 = vadd.f32 %v2170, %v2365
        %v2371 = vld [vmem:[%s9] sm:$0x1]
        %v2372 = vmul.f32 %v2370, %v2370
        %v2373 = vsel %vm419, %v2372, 0.0
        %2374 = vadd.xlane.f32.xlu0 %v2373
        %v2375 = vpop.xlane.xlu0 %2374
        %v2376 = vmul.f32 %v2375, %v423
        %v2377 = vadd.f32 %v2376, 1e-06
        %v2378 = vrsqrt.pop %v2377
        %v2379 = vmul.f32 %v2370, %v2378
        %v2381 = vlaneseq
        %v2382 = vshrl.u32 %v2381, 7
        %v2383 = vsub.s32 0, %v2382
        %v2384 = vrot.slane %v2371, %v2383
        %v2386 = vmul.f32 %v2379, %v2384
        %2387 = vst.msk [vmem:[%s361] sm:$0xff] %vm419, %v2386
        %s2388 = sand.u32 %s252, 1
        %s2389 = scalar_lea.sflag [#allocation3], %s2388
        %s2390 = sand.u32 %s252, 1
        %s2391 = smul.addr %s2390, 8
        %s2392 = scalar_lea.vmem [#allocation2], %s2391
        // Predicated region
        $region61: #{_mt5_encoder_jit.1} parent=59 // pred_check
          %p2393 = pneg %p262
        $region62: #{_mt5_encoder_jit.1} parent=59 // pred_check_branch
          %2395 = sbr.rel (%p2393) target = $region64
        $region63: #{_mt5_encoder_jit.1} parent=59 // pred_region
          %s2397 = ssub.s32 128, 128
          %2398 = vsyncadd %s2389, %s2397
          %s2399 = smul.addr %s24, 128
          %s2400 = scalar_lea.hbm %s10, %s2399
          %s2402 = sshll.u32 %s2392, 4
          %s2403 = int_to_ptr.vmem [resolvable:$true] %s2402
          %2405 = dma.vmem_to_hbm [thread:$0]  %s2403, 128, %s2400, %s2389
        $region64: #{_mt5_encoder_jit.1} parent=59 // pred_fallthru
          _
      $region60: #{_mt5_encoder_jit.1} parent=5 // pred_fallthru
        _
      %p2406 = scmp.le.s32.totalorder 2, %s19
      // Predicated region
      $region65: #{_mt5_encoder_jit.1} parent=5 // pred_check
        %p2407 = pneg %p2406
      $region66: #{_mt5_encoder_jit.1} parent=5 // pred_check_branch
        %2409 = sbr.rel (%p2407) target = $region68
      $region67: #{_mt5_encoder_jit.1} parent=5 // pred_region
        %s2410 = ssub.s32 %s19, 2
        // Predicated region
        $region69: #{_mt5_encoder_jit.1} parent=67 // pred_check
          %p2411 = pneg %p268
        $region70: #{_mt5_encoder_jit.1} parent=67 // pred_check_branch
          %2413 = sbr.rel (%p2411) target = $region72
        $region71: #{_mt5_encoder_jit.1} parent=67 // pred_region
          %s2414 = sand.u32 %s253, 1
          %s2415 = scalar_lea.sflag [#allocation3], %s2414
          %s2416 = sand.u32 %s253, 1
          %s2417 = smul.addr %s2416, 8
          %s2418 = scalar_lea.vmem [#allocation2], %s2417
          %2419 = dma.done %s2415, 128
        $region72: #{_mt5_encoder_jit.1} parent=67 // pred_fallthru
          _
      $region68: #{_mt5_encoder_jit.1} parent=5 // pred_fallthru
        _
    $region6: #{_mt5_encoder_jit.1} parent=1 // loop_footer
      %s23 = sadd.s32 1, %s19
    $region7: #{_mt5_encoder_jit.1} parent=1 // loop_footer_branch
      %18 = sbr.rel target = $region3
    $region8: #{_mt5_encoder_jit.1} parent=1 // loop_exit
      _
    %2420 = vsyncpa [#allocation3], 1
    %s2421 = scalar_lea.sflag [#allocation3], 1
    %2422 = vsyncpa %s2421, 1

</llo_original>
